<compile_context>
chip_gen: v7x
topology: tpu7x:2x2x1
jax: 0.10.0
libtpu: 0.0.40
codegen_flags: <defaults>
</compile_context>

<pallas_src>
import functools

import jax
import jax.numpy as jnp
import numpy as np
from jax.experimental import pallas as pl
from jax.experimental.pallas import tpu as pltpu

BN_EPS = 1e-5
LN_EPS = 1e-5


# --------------------------------------------------------------------------
# Fused Pallas kernel (no grid loop, no scratch: everything lives in vregs)
# --------------------------------------------------------------------------

def _fused_forward_kernel(
    x_ref, add_ref,
    s1u_ref, s1d_ref, w1_ref, b1_ref,
    le_ref, lo_ref, re_ref, ro_ref,
    s2u_ref, s2d_ref, w2_ref, b2_ref,
    lsel_ref, wmask_ref, sumc_ref, avgr_ref,
    ca1_ref, ca2_ref, bcast_ref, msa_ref,
    attnw_ref, attnb_ref,
    addw_ref, addb_ref, addg_ref, addbb_ref,
    c1wi_ref, c1wa_ref, c1b_ref, clng_ref, clnb_ref, c2w_ref, c2b_ref,
    out_ref,
):
    f32 = jnp.float32
    B = avgr_ref.shape[0]
    HW3 = avgr_ref.shape[1] // B

    def mm(a, b):
        # One operand is a packed (possibly bf16) matrix; cast the other to match.
        dt = a.dtype if a.dtype != jnp.float32 else b.dtype
        return jnp.dot(a.astype(dt), b.astype(dt), preferred_element_type=f32)

    def sigmoid(v):
        return 1.0 / (1.0 + jnp.exp(-v))

    def layernorm(v, g, b):
        mu = jnp.mean(v, axis=-1, keepdims=True)
        var = jnp.mean((v - mu) ** 2, axis=-1, keepdims=True)
        return (v - mu) * jax.lax.rsqrt(var + LN_EPS) * g + b

    # ---------------- conv1 (+folded BN) + ReLU ----------------
    # rows = B*H (batch folded into M), lanes = W*Cin; K = 3*W*Cin in one dot.
    xf = x_ref[...]                                                   # (B*H, W)
    im1 = jnp.concatenate(
        [mm(s1u_ref[...], xf), xf, mm(s1d_ref[...], xf)], axis=-1)    # (B*H, 3*W)
    y1 = jnp.maximum(mm(im1, w1_ref[...]) + b1_ref[...], 0.0)         # (B*H, W*C1)

    # ---------------- 2x2 max-pool (exact 0/1 selection matmuls + VPU max) --------
    m = jnp.maximum(mm(le_ref[...], y1), mm(lo_ref[...], y1))         # (B*H2, W*C1)
    m = jnp.maximum(mm(m, re_ref[...]), mm(m, ro_ref[...]))           # (B*H2, W2*C1)

    # ---------------- conv2 (+folded BN) + ReLU ----------------
    im2 = jnp.concatenate(
        [mm(s2u_ref[...], m), m, mm(s2d_ref[...], m)], axis=-1)       # (B*H2, 3*W2*C1)
    z = jnp.maximum(mm(im2, w2_ref[...]) + b2_ref[...], 0.0)          # (B*H2, W2*C2)

    # ------- 2x2 avg-pool straight into batch-contiguous position-major layout ----
    # xc[b*HW3 + h3*W3 + w3, c] = mean of the 2x2 window (no per-w3 loop / stores).
    xc = mm(mm(lsel_ref[...], z) * wmask_ref[...], sumc_ref[...])     # (B*HW3, C2)
    c2 = xc.shape[-1]

    # ---------------- CBAM channel attention (batched over B and {avg,max}) -------
    ch_avg = mm(avgr_ref[...], xc)                                    # (B, C2)
    ch_max = jnp.concatenate(
        [jnp.max(xc[b * HW3:(b + 1) * HW3, :], axis=0, keepdims=True)
         for b in range(B)], axis=0)                                  # (B, C2)
    desc = jnp.concatenate([ch_avg, ch_max], axis=-1)                 # (B, 2*C2)
    hidden = jnp.maximum(mm(desc, ca1_ref[...]), 0.0)                 # (B, 2*(C2//8))
    mlp_out = mm(hidden, ca2_ref[...])                                # (B, 2*C2)
    gate_c = sigmoid(mlp_out[:, :c2] + mlp_out[:, c2:])               # (B, C2)
    xc = xc * mm(bcast_ref[...], gate_c)                              # broadcast gate

    # ---------------- CBAM spatial attention (7x7 conv folded into msa) -----------
    sp_avg = jnp.mean(xc, axis=-1, keepdims=True)                     # (B*HW3, 1)
    sp_max = jnp.max(xc, axis=-1, keepdims=True)                      # (B*HW3, 1)
    sp = jnp.concatenate([sp_avg, sp_max], axis=0)                    # (2*B*HW3, 1)
    att = sigmoid(mm(msa_ref[...], sp))                               # (B*HW3, 1)
    xg = xc * att

    # ---------------- global average pool + 1x1 conv (commuted: both linear) ------
    pooled = mm(avgr_ref[...], xg)                                    # (B, C2)
    feat = mm(pooled, attnw_ref[...]) + attnb_ref[...]                # (B, 64)

    # ---------------- additional-feature branch (Dropout = identity) --------------
    a = mm(add_ref[...], addw_ref[...]) + addb_ref[...]               # (B, 32)
    a = jnp.maximum(layernorm(a, addg_ref[...], addbb_ref[...]), 0.0)

    # ---------------- classifier (concat realized as a split matmul) --------------
    h = mm(feat, c1wi_ref[...]) + mm(a, c1wa_ref[...]) + c1b_ref[...]  # (B, 256)
    h = jnp.maximum(layernorm(h, clng_ref[...], clnb_ref[...]), 0.0)
    out_ref[...] = (mm(h, c2w_ref[...]) + c2b_ref[...]).astype(out_ref.dtype)


# --------------------------------------------------------------------------
# One-time (outside jit) weight re-packing — pure numpy, no XLA glue per call
# --------------------------------------------------------------------------

def _conv_as_k_matrix(w, scale, width):
    """3x3 / stride 1 / pad 1 conv (+ folded BN scale) -> one (3*width*cin,
    width*cout) matrix for rows laid out w-major / channel-minor, with the three
    kernel-row bands stacked along K.  W-boundary zero pad is folded in."""
    cout, cin, kh, kw = w.shape
    wf = np.asarray(w, np.float64) * np.asarray(scale, np.float64)[:, None, None, None]
    blocks = []
    for ki in range(kh):
        m = np.zeros((width * cin, width * cout), np.float64)
        for kj in range(kw):
            band = np.eye(width, width, k=1 - kj)
            m += np.kron(band, wf[:, :, ki, kj].T)
        blocks.append(m)
    return np.concatenate(blocks, axis=0)


def _row_shift(batch, h, delta):
    """(B*h, B*h) 0/1 matrix: row b*h+r selects row b*h+r+delta (zero row at the
    per-batch H boundary -> folds the H zero padding of the conv)."""
    m = np.zeros((batch * h, batch * h), np.float32)
    for b in range(batch):
        for r in range(h):
            s = r + delta
            if 0 <= s < h:
                m[b * h + r, b * h + s] = 1.0
    return m


def _pool_rows(batch, h, parity):
    h2 = h // 2
    m = np.zeros((batch * h2, batch * h), np.float32)
    for b in range(batch):
        for r in range(h2):
            m[b * h2 + r, b * h + 2 * r + parity] = 1.0
    return m


def _pool_lanes(w, c, parity):
    w2 = w // 2
    m = np.zeros((w * c, w2 * c), np.float32)
    for j in range(w2):
        for ch in range(c):
            m[(2 * j + parity) * c + ch, j * c + ch] = 1.0
    return m


def _avgpool_rowsel(batch, h2, h3, w3):
    hw3 = h3 * w3
    m = np.zeros((batch * hw3, batch * h2), np.float32)
    for b in range(batch):
        for i in range(h3):
            for j in range(w3):
                r = b * hw3 + i * w3 + j
                m[r, b * h2 + 2 * i] = 0.5
                m[r, b * h2 + 2 * i + 1] = 0.5
    return m


def _avgpool_lanemask(batch, h3, w3, w2, c):
    hw3 = h3 * w3
    m = np.zeros((batch * hw3, w2 * c), np.float32)
    for b in range(batch):
        for i in range(h3):
            for j in range(w3):
                r = b * hw3 + i * w3 + j
                m[r, (2 * j) * c:(2 * j + 2) * c] = 1.0
    return m


def _spatial_matrices(sa_w, h3, w3):
    """Fold the 7x7 (2ch->1ch, pad 3, no bias) spatial-attention conv into two
    (HW3, HW3) matrices (avg / max channel); position order p = h*W3 + w."""
    pos_h = np.repeat(np.arange(h3), w3)
    pos_w = np.tile(np.arange(w3), h3)
    dh = pos_h[None, :] - pos_h[:, None] + 3
    dw = pos_w[None, :] - pos_w[:, None] + 3
    valid = ((dh >= 0) & (dh <= 6) & (dw >= 0) & (dw <= 6)).astype(np.float64)
    dh_c = np.clip(dh, 0, 6)
    dw_c = np.clip(dw, 0, 6)
    k_avg = np.asarray(sa_w, np.float64)[0, 0][dh_c, dw_c] * valid
    k_max = np.asarray(sa_w, np.float64)[0, 1][dh_c, dw_c] * valid
    return k_avg, k_max


def pack_params(p, batch, height, width, dot_dtype=jnp.bfloat16):
    """Fold BN, build all band / select / shift / attention matrices once (numpy)."""
    B, H, W = batch, height, width
    H2, W2, H3, W3 = H // 2, W // 2, H // 4, W // 4
    HW3 = H3 * W3
    C1 = p["conv1_w"].shape[0]
    C2 = p["conv2_w"].shape[0]
    C3 = p["attn_w"].shape[0]
    Cr = p["ca_w1t"].shape[1]

    f = lambda a: np.asarray(a, np.float64)
    dd = lambda a: jnp.asarray(np.asarray(a, np.float32), dot_dtype)   # dot operands
    ew = lambda a: jnp.asarray(np.asarray(a, np.float32))              # elementwise f32

    # BatchNorm running stats folded into conv weights / per-channel shifts.
    s1 = f(p["bn1_g"]) / np.sqrt(f(p["bn1_v"]) + BN_EPS)
    t1 = (f(p["conv1_b"]) - f(p["bn1_m"])) * s1 + f(p["bn1_b"])
    s2 = f(p["bn2_g"]) / np.sqrt(f(p["bn2_v"]) + BN_EPS)
    t2 = (f(p["conv2_b"]) - f(p["bn2_m"])) * s2 + f(p["bn2_b"])

    w1 = _conv_as_k_matrix(f(p["conv1_w"]), s1, W)                     # (3*W, W*C1)
    w2 = _conv_as_k_matrix(f(p["conv2_w"]), s2, W2)                    # (3*W2*C1, W2*C2)

    k_avg, k_max = _spatial_matrices(f(p["sa_w"]), H3, W3)
    msa = np.concatenate(
        [np.kron(np.eye(B), k_avg), np.kron(np.eye(B), k_max)], axis=1)  # (B*HW3, 2*B*HW3)

    # Channel-attention MLP, block-diagonal so {avg,max} run in the same dots.
    ca1 = np.zeros((2 * C2, 2 * Cr), np.float64)
    ca1[:C2, :Cr] = f(p["ca_w1t"]); ca1[C2:, Cr:] = f(p["ca_w1t"])
    ca2 = np.zeros((2 * Cr, 2 * C2), np.float64)
    ca2[:Cr, :C2] = f(p["ca_w2t"]); ca2[Cr:, C2:] = f(p["ca_w2t"])

    avgr = np.kron(np.eye(B), np.full((1, HW3), 1.0 / HW3))             # (B, B*HW3)
    bcast = np.kron(np.eye(B), np.ones((HW3, 1)))                       # (B*HW3, B)
    sumc = np.tile(0.5 * np.eye(C2), (W2, 1))                           # (W2*C2, C2)
    c1wt = f(p["cls1_w"]).T                                             # (96, 256)

    return (
        dd(_row_shift(B, H, -1)), dd(_row_shift(B, H, +1)), dd(w1),
        ew(np.tile(t1, W)[None, :]),
        dd(_pool_rows(B, H, 0)), dd(_pool_rows(B, H, 1)),
        dd(_pool_lanes(W, C1, 0)), dd(_pool_lanes(W, C1, 1)),
        dd(_row_shift(B, H2, -1)), dd(_row_shift(B, H2, +1)), dd(w2),
        ew(np.tile(t2, W2)[None, :]),
        dd(_avgpool_rowsel(B, H2, H3, W3)),
        ew(_avgpool_lanemask(B, H3, W3, W2, C2)),
        dd(sumc),
        dd(avgr),
        dd(ca1), dd(ca2), dd(bcast), dd(msa),
        dd(f(p["attn_w"]).reshape(C3, C2).T), ew(f(p["attn_b"])[None, :]),
        dd(f(p["add_w"]).T), ew(f(p["add_b"])[None, :]),
        ew(f(p["add_ln_g"])[None, :]), ew(f(p["add_ln_b"])[None, :]),
        dd(c1wt[:C3]), dd(c1wt[C3:]), ew(f(p["cls1_b"])[None, :]),
        ew(f(p["cls_ln_g"])[None, :]), ew(f(p["cls_ln_b"])[None, :]),
        dd(f(p["cls2_w"]).T), ew(f(p["cls2_b"])[None, :]),
    )


# --------------------------------------------------------------------------
# Parameters (deterministic synthetic init) and forward pass
# --------------------------------------------------------------------------

def init_params(key, num_additional_features, num_classes):
    ks = iter(jax.random.split(key, 40))

    def nrm(shape, s=0.05):
        return s * jax.random.normal(next(ks), shape, jnp.float32)

    p = {}
    p["conv1_w"] = nrm((16, 1, 3, 3)); p["conv1_b"] = nrm((16,))
    p["bn1_g"] = 1.0 + nrm((16,)); p["bn1_b"] = nrm((16,))
    p["bn1_m"] = nrm((16,)); p["bn1_v"] = 1.0 + jnp.abs(nrm((16,)))
    p["conv2_w"] = nrm((32, 16, 3, 3)); p["conv2_b"] = nrm((32,))
    p["bn2_g"] = 1.0 + nrm((32,)); p["bn2_b"] = nrm((32,))
    p["bn2_m"] = nrm((32,)); p["bn2_v"] = 1.0 + jnp.abs(nrm((32,)))
    p["ca_w1t"] = nrm((32, 4))      # ChannelAttention Conv2d(32,4,1).weight.T
    p["ca_w2t"] = nrm((4, 32))      # ChannelAttention Conv2d(4,32,1).weight.T
    p["sa_w"] = nrm((1, 2, 7, 7))   # SpatialAttention 7x7 conv weight
    p["attn_w"] = nrm((64, 32, 1, 1)); p["attn_b"] = nrm((64,))
    p["add_w"] = nrm((32, num_additional_features)); p["add_b"] = nrm((32,))
    p["add_ln_g"] = 1.0 + nrm((32,)); p["add_ln_b"] = nrm((32,))
    p["cls1_w"] = nrm((256, 96)); p["cls1_b"] = nrm((256,))
    p["cls_ln_g"] = 1.0 + nrm((256,)); p["cls_ln_b"] = nrm((256,))
    p["cls2_w"] = nrm((num_classes, 256)); p["cls2_b"] = nrm((num_classes,))
    return p


def forward(packed, x, additional_features):
    B = x.shape[0]
    H, W = x.shape[2], x.shape[3]
    num_classes = packed[-1].shape[-1]

    inputs = [x.reshape(B * H, W), additional_features, *packed]
    in_specs = [pl.BlockSpec(a.shape, lambda i: (0, 0)) for a in inputs]

    return pl.pallas_call(
        _fused_forward_kernel,
        out_shape=jax.ShapeDtypeStruct((B, num_classes), jnp.float32),
        grid=(1,),
        in_specs=in_specs,
        out_specs=pl.BlockSpec((B, num_classes), lambda i: (0, 0)),
        compiler_params=pltpu.CompilerParams(
            dimension_semantics=("arbitrary",),
        ),
    )(*inputs)


if __name__ == "__main__":
    num_additional = 18
    num_classes = 10
    B, H, W = 2, 16, 16

    key = jax.random.PRNGKey(0)
    kx, ka, kp = jax.random.split(key, 3)
    x = jax.random.normal(kx, (B, 1, H, W), jnp.float32)
    additional = jax.random.normal(ka, (B, num_additional), jnp.float32)
    params = init_params(kp, num_additional, num_classes)

    # One-time weight packing (kept OUTSIDE jit so it never re-runs per call).
    packed = pack_params(params, B, H, W, dot_dtype=jnp.bfloat16)

    fwd = jax.jit(forward)
    out = jax.block_until_ready(fwd(packed, x, additional))
    assert out.shape == (B, num_classes), out.shape
    assert bool(jnp.all(jnp.isfinite(out)))
    print("KERNEL_OK")
</pallas_src>

<mosaic_0001>
module attributes {stable_mosaic.version = 11 : i64} {
  func.func @_fused_forward_kernel(%arg0: i32, %arg1: memref<32x16xf32, #tpu.memory_space<vmem>>, %arg2: memref<2x18xf32, #tpu.memory_space<vmem>>, %arg3: memref<32x32xbf16, #tpu.memory_space<vmem>>, %arg4: memref<32x32xbf16, #tpu.memory_space<vmem>>, %arg5: memref<48x256xbf16, #tpu.memory_space<vmem>>, %arg6: memref<1x256xf32, #tpu.memory_space<vmem>>, %arg7: memref<16x32xbf16, #tpu.memory_space<vmem>>, %arg8: memref<16x32xbf16, #tpu.memory_space<vmem>>, %arg9: memref<256x128xbf16, #tpu.memory_space<vmem>>, %arg10: memref<256x128xbf16, #tpu.memory_space<vmem>>, %arg11: memref<16x16xbf16, #tpu.memory_space<vmem>>, %arg12: memref<16x16xbf16, #tpu.memory_space<vmem>>, %arg13: memref<384x256xbf16, #tpu.memory_space<vmem>>, %arg14: memref<1x256xf32, #tpu.memory_space<vmem>>, %arg15: memref<32x16xbf16, #tpu.memory_space<vmem>>, %arg16: memref<32x256xf32, #tpu.memory_space<vmem>>, %arg17: memref<256x32xbf16, #tpu.memory_space<vmem>>, %arg18: memref<2x32xbf16, #tpu.memory_space<vmem>>, %arg19: memref<64x8xbf16, #tpu.memory_space<vmem>>, %arg20: memref<8x64xbf16, #tpu.memory_space<vmem>>, %arg21: memref<32x2xbf16, #tpu.memory_space<vmem>>, %arg22: memref<32x64xbf16, #tpu.memory_space<vmem>>, %arg23: memref<32x64xbf16, #tpu.memory_space<vmem>>, %arg24: memref<1x64xf32, #tpu.memory_space<vmem>>, %arg25: memref<18x32xbf16, #tpu.memory_space<vmem>>, %arg26: memref<1x32xf32, #tpu.memory_space<vmem>>, %arg27: memref<1x32xf32, #tpu.memory_space<vmem>>, %arg28: memref<1x32xf32, #tpu.memory_space<vmem>>, %arg29: memref<64x256xbf16, #tpu.memory_space<vmem>>, %arg30: memref<32x256xbf16, #tpu.memory_space<vmem>>, %arg31: memref<1x256xf32, #tpu.memory_space<vmem>>, %arg32: memref<1x256xf32, #tpu.memory_space<vmem>>, %arg33: memref<1x256xf32, #tpu.memory_space<vmem>>, %arg34: memref<256x10xbf16, #tpu.memory_space<vmem>>, %arg35: memref<1x10xf32, #tpu.memory_space<vmem>>, %arg36: memref<2x10xf32, #tpu.memory_space<vmem>>) attributes {dimension_semantics = [#tpu.dimension_semantics<arbitrary>], iteration_bounds = array<i64: 1>, scalar_prefetch = 0 : i64, scratch_operands = 0 : i64, tpu.core_type = #tpu.core_type<tc>, window_params = [{pipeline_mode = #tpu.pipeline_mode<synchronous>, transform_indices = @transform_0, window_bounds = array<i64: 32, 16>}, {pipeline_mode = #tpu.pipeline_mode<synchronous>, transform_indices = @transform_1, window_bounds = array<i64: 2, 18>}, {pipeline_mode = #tpu.pipeline_mode<synchronous>, transform_indices = @transform_2, window_bounds = array<i64: 32, 32>}, {pipeline_mode = #tpu.pipeline_mode<synchronous>, transform_indices = @transform_3, window_bounds = array<i64: 32, 32>}, {pipeline_mode = #tpu.pipeline_mode<synchronous>, transform_indices = @transform_4, window_bounds = array<i64: 48, 256>}, {pipeline_mode = #tpu.pipeline_mode<synchronous>, transform_indices = @transform_5, window_bounds = array<i64: 1, 256>}, {pipeline_mode = #tpu.pipeline_mode<synchronous>, transform_indices = @transform_6, window_bounds = array<i64: 16, 32>}, {pipeline_mode = #tpu.pipeline_mode<synchronous>, transform_indices = @transform_7, window_bounds = array<i64: 16, 32>}, {pipeline_mode = #tpu.pipeline_mode<synchronous>, transform_indices = @transform_8, window_bounds = array<i64: 256, 128>}, {pipeline_mode = #tpu.pipeline_mode<synchronous>, transform_indices = @transform_9, window_bounds = array<i64: 256, 128>}, {pipeline_mode = #tpu.pipeline_mode<synchronous>, transform_indices = @transform_10, window_bounds = array<i64: 16, 16>}, {pipeline_mode = #tpu.pipeline_mode<synchronous>, transform_indices = @transform_11, window_bounds = array<i64: 16, 16>}, {pipeline_mode = #tpu.pipeline_mode<synchronous>, transform_indices = @transform_12, window_bounds = array<i64: 384, 256>}, {pipeline_mode = #tpu.pipeline_mode<synchronous>, transform_indices = @transform_13, window_bounds = array<i64: 1, 256>}, {pipeline_mode = #tpu.pipeline_mode<synchronous>, transform_indices = @transform_14, window_bounds = array<i64: 32, 16>}, {pipeline_mode = #tpu.pipeline_mode<synchronous>, transform_indices = @transform_15, window_bounds = array<i64: 32, 256>}, {pipeline_mode = #tpu.pipeline_mode<synchronous>, transform_indices = @transform_16, window_bounds = array<i64: 256, 32>}, {pipeline_mode = #tpu.pipeline_mode<synchronous>, transform_indices = @transform_17, window_bounds = array<i64: 2, 32>}, {pipeline_mode = #tpu.pipeline_mode<synchronous>, transform_indices = @transform_18, window_bounds = array<i64: 64, 8>}, {pipeline_mode = #tpu.pipeline_mode<synchronous>, transform_indices = @transform_19, window_bounds = array<i64: 8, 64>}, {pipeline_mode = #tpu.pipeline_mode<synchronous>, transform_indices = @transform_20, window_bounds = array<i64: 32, 2>}, {pipeline_mode = #tpu.pipeline_mode<synchronous>, transform_indices = @transform_21, window_bounds = array<i64: 32, 64>}, {pipeline_mode = #tpu.pipeline_mode<synchronous>, transform_indices = @transform_22, window_bounds = array<i64: 32, 64>}, {pipeline_mode = #tpu.pipeline_mode<synchronous>, transform_indices = @transform_23, window_bounds = array<i64: 1, 64>}, {pipeline_mode = #tpu.pipeline_mode<synchronous>, transform_indices = @transform_24, window_bounds = array<i64: 18, 32>}, {pipeline_mode = #tpu.pipeline_mode<synchronous>, transform_indices = @transform_25, window_bounds = array<i64: 1, 32>}, {pipeline_mode = #tpu.pipeline_mode<synchronous>, transform_indices = @transform_26, window_bounds = array<i64: 1, 32>}, {pipeline_mode = #tpu.pipeline_mode<synchronous>, transform_indices = @transform_27, window_bounds = array<i64: 1, 32>}, {pipeline_mode = #tpu.pipeline_mode<synchronous>, transform_indices = @transform_28, window_bounds = array<i64: 64, 256>}, {pipeline_mode = #tpu.pipeline_mode<synchronous>, transform_indices = @transform_29, window_bounds = array<i64: 32, 256>}, {pipeline_mode = #tpu.pipeline_mode<synchronous>, transform_indices = @transform_30, window_bounds = array<i64: 1, 256>}, {pipeline_mode = #tpu.pipeline_mode<synchronous>, transform_indices = @transform_31, window_bounds = array<i64: 1, 256>}, {pipeline_mode = #tpu.pipeline_mode<synchronous>, transform_indices = @transform_32, window_bounds = array<i64: 1, 256>}, {pipeline_mode = #tpu.pipeline_mode<synchronous>, transform_indices = @transform_33, window_bounds = array<i64: 256, 10>}, {pipeline_mode = #tpu.pipeline_mode<synchronous>, transform_indices = @transform_34, window_bounds = array<i64: 1, 10>}, {pipeline_mode = #tpu.pipeline_mode<synchronous>, transform_indices = @transform_35, window_bounds = array<i64: 2, 10>}]} {
    %c0 = arith.constant 0 : index
    %c0_0 = arith.constant 0 : index
    %0 = vector.load %arg1[%c0, %c0_0] : memref<32x16xf32, #tpu.memory_space<vmem>>, vector<32x16xf32>
    %c0_1 = arith.constant 0 : index
    %c0_2 = arith.constant 0 : index
    %1 = vector.load %arg3[%c0_1, %c0_2] : memref<32x32xbf16, #tpu.memory_space<vmem>>, vector<32x32xbf16>
    %2 = arith.truncf %0 : vector<32x16xf32> to vector<32x16xbf16>
    %cst = arith.constant dense<0.000000e+00> : vector<32x16xf32>
    %3 = tpu.matmul %1, %2, %cst {dimension_numbers = #tpu.dot_dimension_numbers<[1], [0], [0], [1], [0, 0, 1, 1], [], []>} : vector<32x32xbf16>, vector<32x16xbf16>, vector<32x16xf32> -> vector<32x16xf32>
    %c0_3 = arith.constant 0 : index
    %c0_4 = arith.constant 0 : index
    %4 = vector.load %arg4[%c0_3, %c0_4] : memref<32x32xbf16, #tpu.memory_space<vmem>>, vector<32x32xbf16>
    %5 = arith.truncf %0 : vector<32x16xf32> to vector<32x16xbf16>
    %cst_5 = arith.constant dense<0.000000e+00> : vector<32x16xf32>
    %6 = tpu.matmul %4, %5, %cst_5 {dimension_numbers = #tpu.dot_dimension_numbers<[1], [0], [0], [1], [0, 0, 1, 1], [], []>} : vector<32x32xbf16>, vector<32x16xbf16>, vector<32x16xf32> -> vector<32x16xf32>
    %7 = tpu.concatenate %3, %0, %6 in 1 : vector<32x16xf32>, vector<32x16xf32>, vector<32x16xf32> -> vector<32x48xf32>
    %c0_6 = arith.constant 0 : index
    %c0_7 = arith.constant 0 : index
    %8 = vector.load %arg5[%c0_6, %c0_7] : memref<48x256xbf16, #tpu.memory_space<vmem>>, vector<48x256xbf16>
    %9 = arith.truncf %7 : vector<32x48xf32> to vector<32x48xbf16>
    %cst_8 = arith.constant dense<0.000000e+00> : vector<32x256xf32>
    %10 = tpu.matmul %9, %8, %cst_8 {dimension_numbers = #tpu.dot_dimension_numbers<[1], [0], [0], [1], [0, 0, 1, 1], [], []>} : vector<32x48xbf16>, vector<48x256xbf16>, vector<32x256xf32> -> vector<32x256xf32>
    %c0_9 = arith.constant 0 : index
    %c0_10 = arith.constant 0 : index
    %11 = vector.load %arg6[%c0_9, %c0_10] : memref<1x256xf32, #tpu.memory_space<vmem>>, vector<1x256xf32>
    %12 = vector.broadcast %11 : vector<1x256xf32> to vector<32x256xf32>
    %13 = arith.addf %10, %12 : vector<32x256xf32>
    %cst_11 = arith.constant 0.000000e+00 : f32
    %14 = vector.broadcast %cst_11 : f32 to vector<32x256xf32>
    %15 = arith.maximumf %13, %14 : vector<32x256xf32>
    %c0_12 = arith.constant 0 : index
    %c0_13 = arith.constant 0 : index
    %16 = vector.load %arg7[%c0_12, %c0_13] : memref<16x32xbf16, #tpu.memory_space<vmem>>, vector<16x32xbf16>
    %17 = arith.truncf %15 : vector<32x256xf32> to vector<32x256xbf16>
    %cst_14 = arith.constant dense<0.000000e+00> : vector<16x256xf32>
    %18 = tpu.matmul %16, %17, %cst_14 {dimension_numbers = #tpu.dot_dimension_numbers<[1], [0], [0], [1], [0, 0, 1, 1], [], []>} : vector<16x32xbf16>, vector<32x256xbf16>, vector<16x256xf32> -> vector<16x256xf32>
    %c0_15 = arith.constant 0 : index
    %c0_16 = arith.constant 0 : index
    %19 = vector.load %arg8[%c0_15, %c0_16] : memref<16x32xbf16, #tpu.memory_space<vmem>>, vector<16x32xbf16>
    %20 = arith.truncf %15 : vector<32x256xf32> to vector<32x256xbf16>
    %cst_17 = arith.constant dense<0.000000e+00> : vector<16x256xf32>
    %21 = tpu.matmul %19, %20, %cst_17 {dimension_numbers = #tpu.dot_dimension_numbers<[1], [0], [0], [1], [0, 0, 1, 1], [], []>} : vector<16x32xbf16>, vector<32x256xbf16>, vector<16x256xf32> -> vector<16x256xf32>
    %22 = arith.maximumf %18, %21 : vector<16x256xf32>
    %c0_18 = arith.constant 0 : index
    %c0_19 = arith.constant 0 : index
    %23 = vector.load %arg9[%c0_18, %c0_19] : memref<256x128xbf16, #tpu.memory_space<vmem>>, vector<256x128xbf16>
    %24 = arith.truncf %22 : vector<16x256xf32> to vector<16x256xbf16>
    %cst_20 = arith.constant dense<0.000000e+00> : vector<16x128xf32>
    %25 = tpu.matmul %24, %23, %cst_20 {dimension_numbers = #tpu.dot_dimension_numbers<[1], [0], [0], [1], [0, 0, 1, 1], [], []>} : vector<16x256xbf16>, vector<256x128xbf16>, vector<16x128xf32> -> vector<16x128xf32>
    %c0_21 = arith.constant 0 : index
    %c0_22 = arith.constant 0 : index
    %26 = vector.load %arg10[%c0_21, %c0_22] : memref<256x128xbf16, #tpu.memory_space<vmem>>, vector<256x128xbf16>
    %27 = arith.truncf %22 : vector<16x256xf32> to vector<16x256xbf16>
    %cst_23 = arith.constant dense<0.000000e+00> : vector<16x128xf32>
    %28 = tpu.matmul %27, %26, %cst_23 {dimension_numbers = #tpu.dot_dimension_numbers<[1], [0], [0], [1], [0, 0, 1, 1], [], []>} : vector<16x256xbf16>, vector<256x128xbf16>, vector<16x128xf32> -> vector<16x128xf32>
    %29 = arith.maximumf %25, %28 : vector<16x128xf32>
    %c0_24 = arith.constant 0 : index
    %c0_25 = arith.constant 0 : index
    %30 = vector.load %arg11[%c0_24, %c0_25] : memref<16x16xbf16, #tpu.memory_space<vmem>>, vector<16x16xbf16>
    %31 = arith.truncf %29 : vector<16x128xf32> to vector<16x128xbf16>
    %cst_26 = arith.constant dense<0.000000e+00> : vector<16x128xf32>
    %32 = tpu.matmul %30, %31, %cst_26 {dimension_numbers = #tpu.dot_dimension_numbers<[1], [0], [0], [1], [0, 0, 1, 1], [], []>} : vector<16x16xbf16>, vector<16x128xbf16>, vector<16x128xf32> -> vector<16x128xf32>
    %c0_27 = arith.constant 0 : index
    %c0_28 = arith.constant 0 : index
    %33 = vector.load %arg12[%c0_27, %c0_28] : memref<16x16xbf16, #tpu.memory_space<vmem>>, vector<16x16xbf16>
    %34 = arith.truncf %29 : vector<16x128xf32> to vector<16x128xbf16>
    %cst_29 = arith.constant dense<0.000000e+00> : vector<16x128xf32>
    %35 = tpu.matmul %33, %34, %cst_29 {dimension_numbers = #tpu.dot_dimension_numbers<[1], [0], [0], [1], [0, 0, 1, 1], [], []>} : vector<16x16xbf16>, vector<16x128xbf16>, vector<16x128xf32> -> vector<16x128xf32>
    %36 = tpu.concatenate %32, %29, %35 in 1 : vector<16x128xf32>, vector<16x128xf32>, vector<16x128xf32> -> vector<16x384xf32>
    %c0_30 = arith.constant 0 : index
    %c0_31 = arith.constant 0 : index
    %37 = vector.load %arg13[%c0_30, %c0_31] : memref<384x256xbf16, #tpu.memory_space<vmem>>, vector<384x256xbf16>
    %38 = arith.truncf %36 : vector<16x384xf32> to vector<16x384xbf16>
    %cst_32 = arith.constant dense<0.000000e+00> : vector<16x256xf32>
    %39 = tpu.matmul %38, %37, %cst_32 {dimension_numbers = #tpu.dot_dimension_numbers<[1], [0], [0], [1], [0, 0, 1, 1], [], []>} : vector<16x384xbf16>, vector<384x256xbf16>, vector<16x256xf32> -> vector<16x256xf32>
    %c0_33 = arith.constant 0 : index
    %c0_34 = arith.constant 0 : index
    %40 = vector.load %arg14[%c0_33, %c0_34] : memref<1x256xf32, #tpu.memory_space<vmem>>, vector<1x256xf32>
    %41 = vector.broadcast %40 : vector<1x256xf32> to vector<16x256xf32>
    %42 = arith.addf %39, %41 : vector<16x256xf32>
    %cst_35 = arith.constant 0.000000e+00 : f32
    %43 = vector.broadcast %cst_35 : f32 to vector<16x256xf32>
    %44 = arith.maximumf %42, %43 : vector<16x256xf32>
    %c0_36 = arith.constant 0 : index
    %c0_37 = arith.constant 0 : index
    %45 = vector.load %arg15[%c0_36, %c0_37] : memref<32x16xbf16, #tpu.memory_space<vmem>>, vector<32x16xbf16>
    %46 = arith.truncf %44 : vector<16x256xf32> to vector<16x256xbf16>
    %cst_38 = arith.constant dense<0.000000e+00> : vector<32x256xf32>
    %47 = tpu.matmul %45, %46, %cst_38 {dimension_numbers = #tpu.dot_dimension_numbers<[1], [0], [0], [1], [0, 0, 1, 1], [], []>} : vector<32x16xbf16>, vector<16x256xbf16>, vector<32x256xf32> -> vector<32x256xf32>
    %c0_39 = arith.constant 0 : index
    %c0_40 = arith.constant 0 : index
    %48 = vector.load %arg16[%c0_39, %c0_40] : memref<32x256xf32, #tpu.memory_space<vmem>>, vector<32x256xf32>
    %49 = arith.mulf %47, %48 : vector<32x256xf32>
    %c0_41 = arith.constant 0 : index
    %c0_42 = arith.constant 0 : index
    %50 = vector.load %arg17[%c0_41, %c0_42] : memref<256x32xbf16, #tpu.memory_space<vmem>>, vector<256x32xbf16>
    %51 = arith.truncf %49 : vector<32x256xf32> to vector<32x256xbf16>
    %cst_43 = arith.constant dense<0.000000e+00> : vector<32x32xf32>
    %52 = tpu.matmul %51, %50, %cst_43 {dimension_numbers = #tpu.dot_dimension_numbers<[1], [0], [0], [1], [0, 0, 1, 1], [], []>} : vector<32x256xbf16>, vector<256x32xbf16>, vector<32x32xf32> -> vector<32x32xf32>
    %c0_44 = arith.constant 0 : index
    %c0_45 = arith.constant 0 : index
    %53 = vector.load %arg18[%c0_44, %c0_45] : memref<2x32xbf16, #tpu.memory_space<vmem>>, vector<2x32xbf16>
    %54 = arith.truncf %52 : vector<32x32xf32> to vector<32x32xbf16>
    %cst_46 = arith.constant dense<0.000000e+00> : vector<2x32xf32>
    %55 = tpu.matmul %53, %54, %cst_46 {dimension_numbers = #tpu.dot_dimension_numbers<[1], [0], [0], [1], [0, 0, 1, 1], [], []>} : vector<2x32xbf16>, vector<32x32xbf16>, vector<2x32xf32> -> vector<2x32xf32>
    %56 = vector.extract_strided_slice %52 {offsets = [0, 0], sizes = [16, 32], strides = [1, 1]} : vector<32x32xf32> to vector<16x32xf32>
    %cst_47 = arith.constant dense<0xFF800000> : vector<32xf32>
    %57 = vector.multi_reduction <maximumf>, %56, %cst_47 [0] : vector<16x32xf32> to vector<32xf32>
    %58 = vector.shape_cast %57 : vector<32xf32> to vector<1x32xf32>
    %59 = vector.extract_strided_slice %52 {offsets = [16, 0], sizes = [16, 32], strides = [1, 1]} : vector<32x32xf32> to vector<16x32xf32>
    %cst_48 = arith.constant dense<0xFF800000> : vector<32xf32>
    %60 = vector.multi_reduction <maximumf>, %59, %cst_48 [0] : vector<16x32xf32> to vector<32xf32>
    %61 = vector.shape_cast %60 : vector<32xf32> to vector<1x32xf32>
    %62 = tpu.concatenate %58, %61 in 0 : vector<1x32xf32>, vector<1x32xf32> -> vector<2x32xf32>
    %63 = tpu.concatenate %55, %62 in 1 : vector<2x32xf32>, vector<2x32xf32> -> vector<2x64xf32>
    %c0_49 = arith.constant 0 : index
    %c0_50 = arith.constant 0 : index
    %64 = vector.load %arg19[%c0_49, %c0_50] : memref<64x8xbf16, #tpu.memory_space<vmem>>, vector<64x8xbf16>
    %65 = arith.truncf %63 : vector<2x64xf32> to vector<2x64xbf16>
    %cst_51 = arith.constant dense<0.000000e+00> : vector<2x8xf32>
    %66 = tpu.matmul %65, %64, %cst_51 {dimension_numbers = #tpu.dot_dimension_numbers<[1], [0], [0], [1], [0, 0, 1, 1], [], []>} : vector<2x64xbf16>, vector<64x8xbf16>, vector<2x8xf32> -> vector<2x8xf32>
    %cst_52 = arith.constant 0.000000e+00 : f32
    %67 = vector.broadcast %cst_52 : f32 to vector<2x8xf32>
    %68 = arith.maximumf %66, %67 : vector<2x8xf32>
    %c0_53 = arith.constant 0 : index
    %c0_54 = arith.constant 0 : index
    %69 = vector.load %arg20[%c0_53, %c0_54] : memref<8x64xbf16, #tpu.memory_space<vmem>>, vector<8x64xbf16>
    %70 = arith.truncf %68 : vector<2x8xf32> to vector<2x8xbf16>
    %cst_55 = arith.constant dense<0.000000e+00> : vector<2x64xf32>
    %71 = tpu.matmul %70, %69, %cst_55 {dimension_numbers = #tpu.dot_dimension_numbers<[1], [0], [0], [1], [0, 0, 1, 1], [], []>} : vector<2x8xbf16>, vector<8x64xbf16>, vector<2x64xf32> -> vector<2x64xf32>
    %72 = vector.extract_strided_slice %71 {offsets = [0, 0], sizes = [2, 32], strides = [1, 1]} : vector<2x64xf32> to vector<2x32xf32>
    %73 = vector.extract_strided_slice %71 {offsets = [0, 32], sizes = [2, 32], strides = [1, 1]} : vector<2x64xf32> to vector<2x32xf32>
    %74 = arith.addf %72, %73 : vector<2x32xf32>
    %cst_56 = arith.constant 0.000000e+00 : f32
    %75 = vector.broadcast %cst_56 : f32 to vector<2x32xf32>
    %76 = arith.subf %75, %74 : vector<2x32xf32>
    %77 = math.exp %76 : vector<2x32xf32>
    %cst_57 = arith.constant 1.000000e+00 : f32
    %78 = vector.broadcast %cst_57 : f32 to vector<2x32xf32>
    %79 = arith.addf %78, %77 : vector<2x32xf32>
    %cst_58 = arith.constant 1.000000e+00 : f32
    %80 = vector.broadcast %cst_58 : f32 to vector<2x32xf32>
    %81 = arith.divf %80, %79 : vector<2x32xf32>
    %c0_59 = arith.constant 0 : index
    %c0_60 = arith.constant 0 : index
    %82 = vector.load %arg21[%c0_59, %c0_60] : memref<32x2xbf16, #tpu.memory_space<vmem>>, vector<32x2xbf16>
    %83 = arith.truncf %81 : vector<2x32xf32> to vector<2x32xbf16>
    %cst_61 = arith.constant dense<0.000000e+00> : vector<32x32xf32>
    %84 = tpu.matmul %82, %83, %cst_61 {dimension_numbers = #tpu.dot_dimension_numbers<[1], [0], [0], [1], [0, 0, 1, 1], [], []>} : vector<32x2xbf16>, vector<2x32xbf16>, vector<32x32xf32> -> vector<32x32xf32>
    %85 = arith.mulf %52, %84 : vector<32x32xf32>
    %cst_62 = arith.constant dense<0.000000e+00> : vector<32xf32>
    %86 = vector.multi_reduction <add>, %85, %cst_62 [1] : vector<32x32xf32> to vector<32xf32>
    %87 = vector.shape_cast %86 : vector<32xf32> to vector<32x1xf32>
    %cst_63 = arith.constant 3.200000e+01 : f32
    %88 = vector.broadcast %cst_63 : f32 to vector<32x1xf32>
    %89 = arith.divf %87, %88 : vector<32x1xf32>
    %cst_64 = arith.constant dense<0xFF800000> : vector<32xf32>
    %90 = vector.multi_reduction <maximumf>, %85, %cst_64 [1] : vector<32x32xf32> to vector<32xf32>
    %91 = vector.shape_cast %90 : vector<32xf32> to vector<32x1xf32>
    %92 = tpu.concatenate %89, %91 in 0 : vector<32x1xf32>, vector<32x1xf32> -> vector<64x1xf32>
    %c0_65 = arith.constant 0 : index
    %c0_66 = arith.constant 0 : index
    %93 = vector.load %arg22[%c0_65, %c0_66] : memref<32x64xbf16, #tpu.memory_space<vmem>>, vector<32x64xbf16>
    %94 = arith.truncf %92 : vector<64x1xf32> to vector<64x1xbf16>
    %cst_67 = arith.constant dense<0.000000e+00> : vector<32x1xf32>
    %95 = tpu.matmul %93, %94, %cst_67 {dimension_numbers = #tpu.dot_dimension_numbers<[1], [0], [0], [1], [0, 0, 1, 1], [], []>} : vector<32x64xbf16>, vector<64x1xbf16>, vector<32x1xf32> -> vector<32x1xf32>
    %cst_68 = arith.constant 0.000000e+00 : f32
    %96 = vector.broadcast %cst_68 : f32 to vector<32x1xf32>
    %97 = arith.subf %96, %95 : vector<32x1xf32>
    %98 = math.exp %97 : vector<32x1xf32>
    %cst_69 = arith.constant 1.000000e+00 : f32
    %99 = vector.broadcast %cst_69 : f32 to vector<32x1xf32>
    %100 = arith.addf %99, %98 : vector<32x1xf32>
    %cst_70 = arith.constant 1.000000e+00 : f32
    %101 = vector.broadcast %cst_70 : f32 to vector<32x1xf32>
    %102 = arith.divf %101, %100 : vector<32x1xf32>
    %103 = vector.broadcast %102 : vector<32x1xf32> to vector<32x32xf32>
    %104 = arith.mulf %85, %103 : vector<32x32xf32>
    %c0_71 = arith.constant 0 : index
    %c0_72 = arith.constant 0 : index
    %105 = vector.load %arg18[%c0_71, %c0_72] : memref<2x32xbf16, #tpu.memory_space<vmem>>, vector<2x32xbf16>
    %106 = arith.truncf %104 : vector<32x32xf32> to vector<32x32xbf16>
    %cst_73 = arith.constant dense<0.000000e+00> : vector<2x32xf32>
    %107 = tpu.matmul %105, %106, %cst_73 {dimension_numbers = #tpu.dot_dimension_numbers<[1], [0], [0], [1], [0, 0, 1, 1], [], []>} : vector<2x32xbf16>, vector<32x32xbf16>, vector<2x32xf32> -> vector<2x32xf32>
    %c0_74 = arith.constant 0 : index
    %c0_75 = arith.constant 0 : index
    %108 = vector.load %arg23[%c0_74, %c0_75] : memref<32x64xbf16, #tpu.memory_space<vmem>>, vector<32x64xbf16>
    %109 = arith.truncf %107 : vector<2x32xf32> to vector<2x32xbf16>
    %cst_76 = arith.constant dense<0.000000e+00> : vector<2x64xf32>
    %110 = tpu.matmul %109, %108, %cst_76 {dimension_numbers = #tpu.dot_dimension_numbers<[1], [0], [0], [1], [0, 0, 1, 1], [], []>} : vector<2x32xbf16>, vector<32x64xbf16>, vector<2x64xf32> -> vector<2x64xf32>
    %c0_77 = arith.constant 0 : index
    %c0_78 = arith.constant 0 : index
    %111 = vector.load %arg24[%c0_77, %c0_78] : memref<1x64xf32, #tpu.memory_space<vmem>>, vector<1x64xf32>
    %112 = vector.broadcast %111 : vector<1x64xf32> to vector<2x64xf32>
    %113 = arith.addf %110, %112 : vector<2x64xf32>
    %c0_79 = arith.constant 0 : index
    %c0_80 = arith.constant 0 : index
    %114 = vector.load %arg2[%c0_79, %c0_80] : memref<2x18xf32, #tpu.memory_space<vmem>>, vector<2x18xf32>
    %c0_81 = arith.constant 0 : index
    %c0_82 = arith.constant 0 : index
    %115 = vector.load %arg25[%c0_81, %c0_82] : memref<18x32xbf16, #tpu.memory_space<vmem>>, vector<18x32xbf16>
    %116 = arith.truncf %114 : vector<2x18xf32> to vector<2x18xbf16>
    %cst_83 = arith.constant dense<0.000000e+00> : vector<2x32xf32>
    %117 = tpu.matmul %116, %115, %cst_83 {dimension_numbers = #tpu.dot_dimension_numbers<[1], [0], [0], [1], [0, 0, 1, 1], [], []>} : vector<2x18xbf16>, vector<18x32xbf16>, vector<2x32xf32> -> vector<2x32xf32>
    %c0_84 = arith.constant 0 : index
    %c0_85 = arith.constant 0 : index
    %118 = vector.load %arg26[%c0_84, %c0_85] : memref<1x32xf32, #tpu.memory_space<vmem>>, vector<1x32xf32>
    %119 = vector.broadcast %118 : vector<1x32xf32> to vector<2x32xf32>
    %120 = arith.addf %117, %119 : vector<2x32xf32>
    %c0_86 = arith.constant 0 : index
    %c0_87 = arith.constant 0 : index
    %121 = vector.load %arg27[%c0_86, %c0_87] : memref<1x32xf32, #tpu.memory_space<vmem>>, vector<1x32xf32>
    %c0_88 = arith.constant 0 : index
    %c0_89 = arith.constant 0 : index
    %122 = vector.load %arg28[%c0_88, %c0_89] : memref<1x32xf32, #tpu.memory_space<vmem>>, vector<1x32xf32>
    %cst_90 = arith.constant dense<0.000000e+00> : vector<2xf32>
    %123 = vector.multi_reduction <add>, %120, %cst_90 [1] : vector<2x32xf32> to vector<2xf32>
    %124 = vector.shape_cast %123 : vector<2xf32> to vector<2x1xf32>
    %cst_91 = arith.constant 3.200000e+01 : f32
    %125 = vector.broadcast %cst_91 : f32 to vector<2x1xf32>
    %126 = arith.divf %124, %125 : vector<2x1xf32>
    %127 = vector.broadcast %126 : vector<2x1xf32> to vector<2x32xf32>
    %128 = arith.subf %120, %127 : vector<2x32xf32>
    %129 = arith.mulf %128, %128 : vector<2x32xf32>
    %cst_92 = arith.constant dense<0.000000e+00> : vector<2xf32>
    %130 = vector.multi_reduction <add>, %129, %cst_92 [1] : vector<2x32xf32> to vector<2xf32>
    %131 = vector.shape_cast %130 : vector<2xf32> to vector<2x1xf32>
    %cst_93 = arith.constant 3.200000e+01 : f32
    %132 = vector.broadcast %cst_93 : f32 to vector<2x1xf32>
    %133 = arith.divf %131, %132 : vector<2x1xf32>
    %134 = vector.broadcast %126 : vector<2x1xf32> to vector<2x32xf32>
    %135 = arith.subf %120, %134 : vector<2x32xf32>
    %cst_94 = arith.constant 9.99999974E-6 : f32
    %136 = vector.broadcast %cst_94 : f32 to vector<2x1xf32>
    %137 = arith.addf %133, %136 : vector<2x1xf32>
    %138 = math.rsqrt %137 : vector<2x1xf32>
    %139 = vector.broadcast %138 : vector<2x1xf32> to vector<2x32xf32>
    %140 = arith.mulf %135, %139 : vector<2x32xf32>
    %141 = vector.broadcast %121 : vector<1x32xf32> to vector<2x32xf32>
    %142 = arith.mulf %140, %141 : vector<2x32xf32>
    %143 = vector.broadcast %122 : vector<1x32xf32> to vector<2x32xf32>
    %144 = arith.addf %142, %143 : vector<2x32xf32>
    %cst_95 = arith.constant 0.000000e+00 : f32
    %145 = vector.broadcast %cst_95 : f32 to vector<2x32xf32>
    %146 = arith.maximumf %144, %145 : vector<2x32xf32>
    %c0_96 = arith.constant 0 : index
    %c0_97 = arith.constant 0 : index
    %147 = vector.load %arg29[%c0_96, %c0_97] : memref<64x256xbf16, #tpu.memory_space<vmem>>, vector<64x256xbf16>
    %148 = arith.truncf %113 : vector<2x64xf32> to vector<2x64xbf16>
    %cst_98 = arith.constant dense<0.000000e+00> : vector<2x256xf32>
    %149 = tpu.matmul %148, %147, %cst_98 {dimension_numbers = #tpu.dot_dimension_numbers<[1], [0], [0], [1], [0, 0, 1, 1], [], []>} : vector<2x64xbf16>, vector<64x256xbf16>, vector<2x256xf32> -> vector<2x256xf32>
    %c0_99 = arith.constant 0 : index
    %c0_100 = arith.constant 0 : index
    %150 = vector.load %arg30[%c0_99, %c0_100] : memref<32x256xbf16, #tpu.memory_space<vmem>>, vector<32x256xbf16>
    %151 = arith.truncf %146 : vector<2x32xf32> to vector<2x32xbf16>
    %cst_101 = arith.constant dense<0.000000e+00> : vector<2x256xf32>
    %152 = tpu.matmul %151, %150, %cst_101 {dimension_numbers = #tpu.dot_dimension_numbers<[1], [0], [0], [1], [0, 0, 1, 1], [], []>} : vector<2x32xbf16>, vector<32x256xbf16>, vector<2x256xf32> -> vector<2x256xf32>
    %153 = arith.addf %149, %152 : vector<2x256xf32>
    %c0_102 = arith.constant 0 : index
    %c0_103 = arith.constant 0 : index
    %154 = vector.load %arg31[%c0_102, %c0_103] : memref<1x256xf32, #tpu.memory_space<vmem>>, vector<1x256xf32>
    %155 = vector.broadcast %154 : vector<1x256xf32> to vector<2x256xf32>
    %156 = arith.addf %153, %155 : vector<2x256xf32>
    %c0_104 = arith.constant 0 : index
    %c0_105 = arith.constant 0 : index
    %157 = vector.load %arg32[%c0_104, %c0_105] : memref<1x256xf32, #tpu.memory_space<vmem>>, vector<1x256xf32>
    %c0_106 = arith.constant 0 : index
    %c0_107 = arith.constant 0 : index
    %158 = vector.load %arg33[%c0_106, %c0_107] : memref<1x256xf32, #tpu.memory_space<vmem>>, vector<1x256xf32>
    %cst_108 = arith.constant dense<0.000000e+00> : vector<2xf32>
    %159 = vector.multi_reduction <add>, %156, %cst_108 [1] : vector<2x256xf32> to vector<2xf32>
    %160 = vector.shape_cast %159 : vector<2xf32> to vector<2x1xf32>
    %cst_109 = arith.constant 2.560000e+02 : f32
    %161 = vector.broadcast %cst_109 : f32 to vector<2x1xf32>
    %162 = arith.divf %160, %161 : vector<2x1xf32>
    %163 = vector.broadcast %162 : vector<2x1xf32> to vector<2x256xf32>
    %164 = arith.subf %156, %163 : vector<2x256xf32>
    %165 = arith.mulf %164, %164 : vector<2x256xf32>
    %cst_110 = arith.constant dense<0.000000e+00> : vector<2xf32>
    %166 = vector.multi_reduction <add>, %165, %cst_110 [1] : vector<2x256xf32> to vector<2xf32>
    %167 = vector.shape_cast %166 : vector<2xf32> to vector<2x1xf32>
    %cst_111 = arith.constant 2.560000e+02 : f32
    %168 = vector.broadcast %cst_111 : f32 to vector<2x1xf32>
    %169 = arith.divf %167, %168 : vector<2x1xf32>
    %170 = vector.broadcast %162 : vector<2x1xf32> to vector<2x256xf32>
    %171 = arith.subf %156, %170 : vector<2x256xf32>
    %cst_112 = arith.constant 9.99999974E-6 : f32
    %172 = vector.broadcast %cst_112 : f32 to vector<2x1xf32>
    %173 = arith.addf %169, %172 : vector<2x1xf32>
    %174 = math.rsqrt %173 : vector<2x1xf32>
    %175 = vector.broadcast %174 : vector<2x1xf32> to vector<2x256xf32>
    %176 = arith.mulf %171, %175 : vector<2x256xf32>
    %177 = vector.broadcast %157 : vector<1x256xf32> to vector<2x256xf32>
    %178 = arith.mulf %176, %177 : vector<2x256xf32>
    %179 = vector.broadcast %158 : vector<1x256xf32> to vector<2x256xf32>
    %180 = arith.addf %178, %179 : vector<2x256xf32>
    %cst_113 = arith.constant 0.000000e+00 : f32
    %181 = vector.broadcast %cst_113 : f32 to vector<2x256xf32>
    %182 = arith.maximumf %180, %181 : vector<2x256xf32>
    %c0_114 = arith.constant 0 : index
    %c0_115 = arith.constant 0 : index
    %183 = vector.load %arg34[%c0_114, %c0_115] : memref<256x10xbf16, #tpu.memory_space<vmem>>, vector<256x10xbf16>
    %184 = arith.truncf %182 : vector<2x256xf32> to vector<2x256xbf16>
    %cst_116 = arith.constant dense<0.000000e+00> : vector<2x10xf32>
    %185 = tpu.matmul %184, %183, %cst_116 {dimension_numbers = #tpu.dot_dimension_numbers<[1], [0], [0], [1], [0, 0, 1, 1], [], []>} : vector<2x256xbf16>, vector<256x10xbf16>, vector<2x10xf32> -> vector<2x10xf32>
    %c0_117 = arith.constant 0 : index
    %c0_118 = arith.constant 0 : index
    %186 = vector.load %arg35[%c0_117, %c0_118] : memref<1x10xf32, #tpu.memory_space<vmem>>, vector<1x10xf32>
    %187 = vector.broadcast %186 : vector<1x10xf32> to vector<2x10xf32>
    %188 = arith.addf %185, %187 : vector<2x10xf32>
    %c0_119 = arith.constant 0 : index
    %c0_120 = arith.constant 0 : index
    %189 = vector.load %arg36[%c0_119, %c0_120] : memref<2x10xf32, #tpu.memory_space<vmem>>, vector<2x10xf32>
    tpu.vector_store %arg36[%c0_119, %c0_120], %188 {strides = array<i32>} : memref<2x10xf32, #tpu.memory_space<vmem>>, vector<2x10xf32>,
    return
  }
  func.func @transform_0(%arg0: i32) -> (i32, i32) {
    %c0_i32 = arith.constant 0 : i32
    %c0_i32_0 = arith.constant 0 : i32
    %c0_i32_1 = arith.constant 0 : i32
    return %c0_i32, %c0_i32_0 : i32, i32
  }
  func.func @transform_1(%arg0: i32) -> (i32, i32) {
    %c0_i32 = arith.constant 0 : i32
    %c0_i32_0 = arith.constant 0 : i32
    %c0_i32_1 = arith.constant 0 : i32
    return %c0_i32, %c0_i32_0 : i32, i32
  }
  func.func @transform_2(%arg0: i32) -> (i32, i32) {
    %c0_i32 = arith.constant 0 : i32
    %c0_i32_0 = arith.constant 0 : i32
    %c0_i32_1 = arith.constant 0 : i32
    return %c0_i32, %c0_i32_0 : i32, i32
  }
  func.func @transform_3(%arg0: i32) -> (i32, i32) {
    %c0_i32 = arith.constant 0 : i32
    %c0_i32_0 = arith.constant 0 : i32
    %c0_i32_1 = arith.constant 0 : i32
    return %c0_i32, %c0_i32_0 : i32, i32
  }
  func.func @transform_4(%arg0: i32) -> (i32, i32) {
    %c0_i32 = arith.constant 0 : i32
    %c0_i32_0 = arith.constant 0 : i32
    %c0_i32_1 = arith.constant 0 : i32
    return %c0_i32, %c0_i32_0 : i32, i32
  }
  func.func @transform_5(%arg0: i32) -> (i32, i32) {
    %c0_i32 = arith.constant 0 : i32
    %c0_i32_0 = arith.constant 0 : i32
    %c0_i32_1 = arith.constant 0 : i32
    return %c0_i32, %c0_i32_0 : i32, i32
  }
  func.func @transform_6(%arg0: i32) -> (i32, i32) {
    %c0_i32 = arith.constant 0 : i32
    %c0_i32_0 = arith.constant 0 : i32
    %c0_i32_1 = arith.constant 0 : i32
    return %c0_i32, %c0_i32_0 : i32, i32
  }
  func.func @transform_7(%arg0: i32) -> (i32, i32) {
    %c0_i32 = arith.constant 0 : i32
    %c0_i32_0 = arith.constant 0 : i32
    %c0_i32_1 = arith.constant 0 : i32
    return %c0_i32, %c0_i32_0 : i32, i32
  }
  func.func @transform_8(%arg0: i32) -> (i32, i32) {
    %c0_i32 = arith.constant 0 : i32
    %c0_i32_0 = arith.constant 0 : i32
    %c0_i32_1 = arith.constant 0 : i32
    return %c0_i32, %c0_i32_0 : i32, i32
  }
  func.func @transform_9(%arg0: i32) -> (i32, i32) {
    %c0_i32 = arith.constant 0 : i32
    %c0_i32_0 = arith.constant 0 : i32
    %c0_i32_1 = arith.constant 0 : i32
    return %c0_i32, %c0_i32_0 : i32, i32
  }
  func.func @transform_10(%arg0: i32) -> (i32, i32) {
    %c0_i32 = arith.constant 0 : i32
    %c0_i32_0 = arith.constant 0 : i32
    %c0_i32_1 = arith.constant 0 : i32
    return %c0_i32, %c0_i32_0 : i32, i32
  }
  func.func @transform_11(%arg0: i32) -> (i32, i32) {
    %c0_i32 = arith.constant 0 : i32
    %c0_i32_0 = arith.constant 0 : i32
    %c0_i32_1 = arith.constant 0 : i32
    return %c0_i32, %c0_i32_0 : i32, i32
  }
  func.func @transform_12(%arg0: i32) -> (i32, i32) {
    %c0_i32 = arith.constant 0 : i32
    %c0_i32_0 = arith.constant 0 : i32
    %c0_i32_1 = arith.constant 0 : i32
    return %c0_i32, %c0_i32_0 : i32, i32
  }
  func.func @transform_13(%arg0: i32) -> (i32, i32) {
    %c0_i32 = arith.constant 0 : i32
    %c0_i32_0 = arith.constant 0 : i32
    %c0_i32_1 = arith.constant 0 : i32
    return %c0_i32, %c0_i32_0 : i32, i32
  }
  func.func @transform_14(%arg0: i32) -> (i32, i32) {
    %c0_i32 = arith.constant 0 : i32
    %c0_i32_0 = arith.constant 0 : i32
    %c0_i32_1 = arith.constant 0 : i32
    return %c0_i32, %c0_i32_0 : i32, i32
  }
  func.func @transform_15(%arg0: i32) -> (i32, i32) {
    %c0_i32 = arith.constant 0 : i32
    %c0_i32_0 = arith.constant 0 : i32
    %c0_i32_1 = arith.constant 0 : i32
    return %c0_i32, %c0_i32_0 : i32, i32
  }
  func.func @transform_16(%arg0: i32) -> (i32, i32) {
    %c0_i32 = arith.constant 0 : i32
    %c0_i32_0 = arith.constant 0 : i32
    %c0_i32_1 = arith.constant 0 : i32
    return %c0_i32, %c0_i32_0 : i32, i32
  }
  func.func @transform_17(%arg0: i32) -> (i32, i32) {
    %c0_i32 = arith.constant 0 : i32
    %c0_i32_0 = arith.constant 0 : i32
    %c0_i32_1 = arith.constant 0 : i32
    return %c0_i32, %c0_i32_0 : i32, i32
  }
  func.func @transform_18(%arg0: i32) -> (i32, i32) {
    %c0_i32 = arith.constant 0 : i32
    %c0_i32_0 = arith.constant 0 : i32
    %c0_i32_1 = arith.constant 0 : i32
    return %c0_i32, %c0_i32_0 : i32, i32
  }
  func.func @transform_19(%arg0: i32) -> (i32, i32) {
    %c0_i32 = arith.constant 0 : i32
    %c0_i32_0 = arith.constant 0 : i32
    %c0_i32_1 = arith.constant 0 : i32
    return %c0_i32, %c0_i32_0 : i32, i32
  }
  func.func @transform_20(%arg0: i32) -> (i32, i32) {
    %c0_i32 = arith.constant 0 : i32
    %c0_i32_0 = arith.constant 0 : i32
    %c0_i32_1 = arith.constant 0 : i32
    return %c0_i32, %c0_i32_0 : i32, i32
  }
  func.func @transform_21(%arg0: i32) -> (i32, i32) {
    %c0_i32 = arith.constant 0 : i32
    %c0_i32_0 = arith.constant 0 : i32
    %c0_i32_1 = arith.constant 0 : i32
    return %c0_i32, %c0_i32_0 : i32, i32
  }
  func.func @transform_22(%arg0: i32) -> (i32, i32) {
    %c0_i32 = arith.constant 0 : i32
    %c0_i32_0 = arith.constant 0 : i32
    %c0_i32_1 = arith.constant 0 : i32
    return %c0_i32, %c0_i32_0 : i32, i32
  }
  func.func @transform_23(%arg0: i32) -> (i32, i32) {
    %c0_i32 = arith.constant 0 : i32
    %c0_i32_0 = arith.constant 0 : i32
    %c0_i32_1 = arith.constant 0 : i32
    return %c0_i32, %c0_i32_0 : i32, i32
  }
  func.func @transform_24(%arg0: i32) -> (i32, i32) {
    %c0_i32 = arith.constant 0 : i32
    %c0_i32_0 = arith.constant 0 : i32
    %c0_i32_1 = arith.constant 0 : i32
    return %c0_i32, %c0_i32_0 : i32, i32
  }
  func.func @transform_25(%arg0: i32) -> (i32, i32) {
    %c0_i32 = arith.constant 0 : i32
    %c0_i32_0 = arith.constant 0 : i32
    %c0_i32_1 = arith.constant 0 : i32
    return %c0_i32, %c0_i32_0 : i32, i32
  }
  func.func @transform_26(%arg0: i32) -> (i32, i32) {
    %c0_i32 = arith.constant 0 : i32
    %c0_i32_0 = arith.constant 0 : i32
    %c0_i32_1 = arith.constant 0 : i32
    return %c0_i32, %c0_i32_0 : i32, i32
  }
  func.func @transform_27(%arg0: i32) -> (i32, i32) {
    %c0_i32 = arith.constant 0 : i32
    %c0_i32_0 = arith.constant 0 : i32
    %c0_i32_1 = arith.constant 0 : i32
    return %c0_i32, %c0_i32_0 : i32, i32
  }
  func.func @transform_28(%arg0: i32) -> (i32, i32) {
    %c0_i32 = arith.constant 0 : i32
    %c0_i32_0 = arith.constant 0 : i32
    %c0_i32_1 = arith.constant 0 : i32
    return %c0_i32, %c0_i32_0 : i32, i32
  }
  func.func @transform_29(%arg0: i32) -> (i32, i32) {
    %c0_i32 = arith.constant 0 : i32
    %c0_i32_0 = arith.constant 0 : i32
    %c0_i32_1 = arith.constant 0 : i32
    return %c0_i32, %c0_i32_0 : i32, i32
  }
  func.func @transform_30(%arg0: i32) -> (i32, i32) {
    %c0_i32 = arith.constant 0 : i32
    %c0_i32_0 = arith.constant 0 : i32
    %c0_i32_1 = arith.constant 0 : i32
    return %c0_i32, %c0_i32_0 : i32, i32
  }
  func.func @transform_31(%arg0: i32) -> (i32, i32) {
    %c0_i32 = arith.constant 0 : i32
    %c0_i32_0 = arith.constant 0 : i32
    %c0_i32_1 = arith.constant 0 : i32
    return %c0_i32, %c0_i32_0 : i32, i32
  }
  func.func @transform_32(%arg0: i32) -> (i32, i32) {
    %c0_i32 = arith.constant 0 : i32
    %c0_i32_0 = arith.constant 0 : i32
    %c0_i32_1 = arith.constant 0 : i32
    return %c0_i32, %c0_i32_0 : i32, i32
  }
  func.func @transform_33(%arg0: i32) -> (i32, i32) {
    %c0_i32 = arith.constant 0 : i32
    %c0_i32_0 = arith.constant 0 : i32
    %c0_i32_1 = arith.constant 0 : i32
    return %c0_i32, %c0_i32_0 : i32, i32
  }
  func.func @transform_34(%arg0: i32) -> (i32, i32) {
    %c0_i32 = arith.constant 0 : i32
    %c0_i32_0 = arith.constant 0 : i32
    %c0_i32_1 = arith.constant 0 : i32
    return %c0_i32, %c0_i32_0 : i32, i32
  }
  func.func @transform_35(%arg0: i32) -> (i32, i32) {
    %c0_i32 = arith.constant 0 : i32
    %c0_i32_0 = arith.constant 0 : i32
    %c0_i32_1 = arith.constant 0 : i32
    return %c0_i32, %c0_i32_0 : i32, i32
  }
}

</mosaic_0001>

<llo_original>
// kernel: forward.1
$region0: #{forward.1}
  #allocation0 [shape = 'u32[]', space=smem, size = 0x4, offset = 0x4, fixed_abs, tag = 'smem constant byte address 0x4 - core index']
  #allocation1 [shape = 'u32[144,128]{1,0:T(1,128)}', space=vmem, size = 0x12000, scoped, tag = 'internal scratch']
  %s0 = inlined_call_operand.smem [shape: u32[36], index: -1, kind: input, shape index: {}]
  %s1 = sld [smem:[%s0]]
  %s2 = scalar_lea.smem %s0, 1
  %s3 = sld [smem:[%s2]]
  %s4 = scalar_lea.smem %s0, 2
  %s5 = sld [smem:[%s4]]
  %s6 = scalar_lea.smem %s0, 3
  %s7 = sld [smem:[%s6]]
  %s8 = scalar_lea.smem %s0, 4
  %s9 = sld [smem:[%s8]]
  %s10 = scalar_lea.smem %s0, 5
  %s11 = sld [smem:[%s10]]
  %s12 = scalar_lea.smem %s0, 6
  %s13 = sld [smem:[%s12]]
  %s14 = scalar_lea.smem %s0, 7
  %s15 = sld [smem:[%s14]]
  %s16 = scalar_lea.smem %s0, 8
  %s17 = sld [smem:[%s16]]
  %s18 = scalar_lea.smem %s0, 9
  %s19 = sld [smem:[%s18]]
  %s20 = scalar_lea.smem %s0, 10
  %s21 = sld [smem:[%s20]]
  %s22 = scalar_lea.smem %s0, 11
  %s23 = sld [smem:[%s22]]
  %s24 = scalar_lea.smem %s0, 12
  %s25 = sld [smem:[%s24]]
  %s26 = scalar_lea.smem %s0, 13
  %s27 = sld [smem:[%s26]]
  %s28 = scalar_lea.smem %s0, 14
  %s29 = sld [smem:[%s28]]
  %s30 = scalar_lea.smem %s0, 15
  %s31 = sld [smem:[%s30]]
  %s32 = scalar_lea.smem %s0, 16
  %s33 = sld [smem:[%s32]]
  %s34 = scalar_lea.smem %s0, 17
  %s35 = sld [smem:[%s34]]
  %s36 = scalar_lea.smem %s0, 18
  %s37 = sld [smem:[%s36]]
  %s38 = scalar_lea.smem %s0, 19
  %s39 = sld [smem:[%s38]]
  %s40 = scalar_lea.smem %s0, 20
  %s41 = sld [smem:[%s40]]
  %s42 = scalar_lea.smem %s0, 21
  %s43 = sld [smem:[%s42]]
  %s44 = scalar_lea.smem %s0, 22
  %s45 = sld [smem:[%s44]]
  %s46 = scalar_lea.smem %s0, 23
  %s47 = sld [smem:[%s46]]
  %s48 = scalar_lea.smem %s0, 24
  %s49 = sld [smem:[%s48]]
  %s50 = scalar_lea.smem %s0, 25
  %s51 = sld [smem:[%s50]]
  %s52 = scalar_lea.smem %s0, 26
  %s53 = sld [smem:[%s52]]
  %s54 = scalar_lea.smem %s0, 27
  %s55 = sld [smem:[%s54]]
  %s56 = scalar_lea.smem %s0, 28
  %s57 = sld [smem:[%s56]]
  %s58 = scalar_lea.smem %s0, 29
  %s59 = sld [smem:[%s58]]
  %s60 = scalar_lea.smem %s0, 30
  %s61 = sld [smem:[%s60]]
  %s62 = scalar_lea.smem %s0, 31
  %s63 = sld [smem:[%s62]]
  %s64 = scalar_lea.smem %s0, 32
  %s65 = sld [smem:[%s64]]
  %s66 = scalar_lea.smem %s0, 33
  %s67 = sld [smem:[%s66]]
  %s68 = scalar_lea.smem %s0, 34
  %s69 = sld [smem:[%s68]]
  %s70 = scalar_lea.smem %s0, 35
  %s71 = sld [smem:[%s70]]
  %s72 = sld [smem:[#allocation0]]
  $region250: #{forward.1} parent=0
    _
  %s74 = ssub.s32 1, %s72
  %s75 = scalar_select 0, %s74, %s72
  $region1: #{forward.1} parent=0
    #allocation2 [shape = 'u8[8192]{0}', space=vmem, size = 0x2000, scoped, tag = 'input window, operand 2, single buffered']
    #allocation3 [shape = 's32[1]{0}', space=sflag, size = 0x4, scoped, tag = 'scoped memory for forward.1']
    #allocation4 [shape = 's32[1]{0}', space=sflag, size = 0x4, scoped, tag = 'scoped memory for forward.1']
    #allocation5 [shape = 'u8[8192]{0}', space=vmem, size = 0x2000, scoped, tag = 'input window, operand 3, single buffered']
    #allocation6 [shape = 's32[1]{0}', space=sflag, size = 0x4, scoped, tag = 'scoped memory for forward.1']
    #allocation7 [shape = 'u8[24576]{0}', space=vmem, size = 0x6000, scoped, tag = 'input window, operand 4, single buffered']
    #allocation8 [shape = 'u8[1024]{0}', space=vmem, size = 0x400, scoped, tag = 'input window, operand 5, single buffered']
    #allocation9 [shape = 's32[1]{0}', space=sflag, size = 0x4, scoped, tag = 'scoped memory for forward.1']
    #allocation10 [shape = 'u8[4096]{0}', space=vmem, size = 0x1000, scoped, tag = 'input window, operand 6, single buffered']
    #allocation11 [shape = 'u8[4096]{0}', space=vmem, size = 0x1000, scoped, tag = 'input window, operand 7, single buffered']
    #allocation12 [shape = 's32[1]{0}', space=sflag, size = 0x4, scoped, tag = 'scoped memory for forward.1']
    #allocation13 [shape = 'u8[65536]{0}', space=vmem, size = 0x10000, scoped, tag = 'input window, operand 8, single buffered']
    #allocation14 [shape = 'u8[65536]{0}', space=vmem, size = 0x10000, scoped, tag = 'input window, operand 9, single buffered']
    #allocation15 [shape = 's32[1]{0}', space=sflag, size = 0x4, scoped, tag = 'scoped memory for forward.1']
    #allocation16 [shape = 'u8[4096]{0}', space=vmem, size = 0x1000, scoped, tag = 'input window, operand 10, single buffered']
    #allocation17 [shape = 'u8[4096]{0}', space=vmem, size = 0x1000, scoped, tag = 'input window, operand 11, single buffered']
    #allocation18 [shape = 's32[1]{0}', space=sflag, size = 0x4, scoped, tag = 'scoped memory for forward.1']
    #allocation19 [shape = 'u8[1024]{0}', space=vmem, size = 0x400, scoped, tag = 'input window, operand 13, single buffered']
    #allocation20 [shape = 'u8[32768]{0}', space=vmem, size = 0x8000, scoped, tag = 'input window, operand 15, single buffered']
    #allocation21 [shape = 's32[1]{0}', space=sflag, size = 0x4, scoped, tag = 'scoped memory for forward.1']
    #allocation22 [shape = 'u8[512]{0}', space=vmem, size = 0x400, scoped, tag = 'input window, operand 17, single buffered']
    #allocation23 [shape = 'u8[2048]{0}', space=vmem, size = 0x800, scoped, tag = 'input window, operand 19, single buffered']
    #allocation24 [shape = 's32[1]{0}', space=sflag, size = 0x4, scoped, tag = 'scoped memory for forward.1']
    #allocation25 [shape = 'u8[8192]{0}', space=vmem, size = 0x2000, scoped, tag = 'input window, operand 21, single buffered']
    #allocation26 [shape = 'u8[8192]{0}', space=vmem, size = 0x2000, scoped, tag = 'input window, operand 22, single buffered']
    #allocation27 [shape = 's32[1]{0}', space=sflag, size = 0x4, scoped, tag = 'scoped memory for forward.1']
    #allocation28 [shape = 'u8[512]{0}', space=vmem, size = 0x400, scoped, tag = 'input window, operand 23, single buffered']
    #allocation29 [shape = 'u8[6144]{0}', space=vmem, size = 0x1800, scoped, tag = 'input window, operand 24, single buffered']
    #allocation30 [shape = 's32[1]{0}', space=sflag, size = 0x4, scoped, tag = 'scoped memory for forward.1']
    #allocation31 [shape = 'u8[512]{0}', space=vmem, size = 0x400, scoped, tag = 'input window, operand 25, single buffered']
    #allocation32 [shape = 'u8[512]{0}', space=vmem, size = 0x400, scoped, tag = 'input window, operand 26, single buffered']
    #allocation33 [shape = 's32[1]{0}', space=sflag, size = 0x4, scoped, tag = 'scoped memory for forward.1']
    #allocation34 [shape = 'u8[512]{0}', space=vmem, size = 0x400, scoped, tag = 'input window, operand 27, single buffered']
    #allocation35 [shape = 'u8[16384]{0}', space=vmem, size = 0x4000, scoped, tag = 'input window, operand 29, single buffered']
    #allocation36 [shape = 's32[1]{0}', space=sflag, size = 0x4, scoped, tag = 'scoped memory for forward.1']
    #allocation37 [shape = 'u8[1024]{0}', space=vmem, size = 0x400, scoped, tag = 'input window, operand 30, single buffered']
    #allocation38 [shape = 'u8[1024]{0}', space=vmem, size = 0x400, scoped, tag = 'input window, operand 31, single buffered']
    #allocation39 [shape = 's32[1]{0}', space=sflag, size = 0x4, scoped, tag = 'scoped memory for forward.1']
    #allocation40 [shape = 'u8[1024]{0}', space=vmem, size = 0x400, scoped, tag = 'input window, operand 32, single buffered']
    #allocation41 [shape = 'u8[1024]{0}', space=vmem, size = 0x400, scoped, tag = 'output window, operand 0, single buffered']
    %76 = vsyncpa [#allocation3], 0
    %77 = vsyncpa [#allocation6], 0
    %78 = vsyncpa [#allocation9], 0
    %79 = vsyncpa [#allocation12], 0
    %80 = vsyncpa [#allocation15], 0
    %81 = vsyncpa [#allocation18], 0
    %82 = vsyncpa [#allocation21], 0
    %83 = vsyncpa [#allocation24], 0
    %84 = vsyncpa [#allocation27], 0
    %85 = vsyncpa [#allocation30], 0
    %86 = vsyncpa [#allocation33], 0
    %87 = vsyncpa [#allocation36], 0
    %88 = vsyncpa [#allocation39], 0
    %89 = vsyncpa [#allocation4], 0
    // Predicated region
    $region2: #{forward.1} parent=1 // pred_check
      _
    $region3: #{forward.1} parent=1 // pred_check_branch
      %91 = sbr.rel (0) target = $region5
    $region4: #{forward.1} parent=1 // pred_region
      _
    $region5: #{forward.1} parent=1 // pred_fallthru
      _
    // Predicated region
    $region6: #{forward.1} parent=1 // pred_check
      _
    $region7: #{forward.1} parent=1 // pred_check_branch
      %93 = sbr.rel (0) target = $region9
    $region8: #{forward.1} parent=1 // pred_region
      _
    $region9: #{forward.1} parent=1 // pred_fallthru
      _
    // Predicated region
    $region10: #{forward.1} parent=1 // pred_check
      _
    $region11: #{forward.1} parent=1 // pred_check_branch
      %95 = sbr.rel (0) target = $region13
    $region12: #{forward.1} parent=1 // pred_region
      %s97 = ssub.s32 256, 256
      %98 = vsyncadd [#allocation3], %s97
      %s99 = sshll.u32 [#allocation2], 4
      %s100 = int_to_ptr.vmem [resolvable:$true] %s99
      %105 = dma.hbm_to_vmem [thread:$0]  %s5, 256, %s100, [#allocation3], 64, 64, 4
    $region13: #{forward.1} parent=1 // pred_fallthru
      _
    // Predicated region
    $region14: #{forward.1} parent=1 // pred_check
      _
    $region15: #{forward.1} parent=1 // pred_check_branch
      %107 = sbr.rel (0) target = $region17
    $region16: #{forward.1} parent=1 // pred_region
      %s109 = ssub.s32 256, 256
      %110 = vsyncadd [#allocation6], %s109
      %s111 = sshll.u32 [#allocation5], 4
      %s112 = int_to_ptr.vmem [resolvable:$true] %s111
      %117 = dma.hbm_to_vmem [thread:$0]  %s7, 256, %s112, [#allocation6], 64, 64, 4
    $region17: #{forward.1} parent=1 // pred_fallthru
      _
    // Predicated region
    $region18: #{forward.1} parent=1 // pred_check
      _
    $region19: #{forward.1} parent=1 // pred_check_branch
      %119 = sbr.rel (0) target = $region21
    $region20: #{forward.1} parent=1 // pred_region
      %s121 = ssub.s32 768, 768
      %122 = vsyncadd [#allocation6], %s121
      %s123 = sshll.u32 [#allocation7], 4
      %s124 = int_to_ptr.vmem [resolvable:$true] %s123
      %129 = dma.hbm_to_vmem [thread:$0]  %s9, 768, %s124, [#allocation6], 128, 128, 8
    $region21: #{forward.1} parent=1 // pred_fallthru
      _
    // Predicated region
    $region22: #{forward.1} parent=1 // pred_check
      _
    $region23: #{forward.1} parent=1 // pred_check_branch
      %131 = sbr.rel (0) target = $region25
    $region24: #{forward.1} parent=1 // pred_region
      %s133 = ssub.s32 32, 32
      %134 = vsyncadd [#allocation9], %s133
      %s136 = sshll.u32 [#allocation8], 4
      %s137 = int_to_ptr.vmem [resolvable:$true] %s136
      %139 = dma.hbm_to_vmem [thread:$0]  %s11, 32, %s137, [#allocation9]
    $region25: #{forward.1} parent=1 // pred_fallthru
      _
    // Predicated region
    $region26: #{forward.1} parent=1 // pred_check
      _
    $region27: #{forward.1} parent=1 // pred_check_branch
      %141 = sbr.rel (0) target = $region29
    $region28: #{forward.1} parent=1 // pred_region
      %s143 = ssub.s32 128, 128
      %144 = vsyncadd [#allocation9], %s143
      %s145 = sshll.u32 [#allocation10], 4
      %s146 = int_to_ptr.vmem [resolvable:$true] %s145
      %151 = dma.hbm_to_vmem [thread:$0]  %s13, 128, %s146, [#allocation9], 64, 64, 4
    $region29: #{forward.1} parent=1 // pred_fallthru
      _
    // Predicated region
    $region30: #{forward.1} parent=1 // pred_check
      _
    $region31: #{forward.1} parent=1 // pred_check_branch
      %153 = sbr.rel (0) target = $region33
    $region32: #{forward.1} parent=1 // pred_region
      %s155 = ssub.s32 128, 128
      %156 = vsyncadd [#allocation12], %s155
      %s157 = sshll.u32 [#allocation11], 4
      %s158 = int_to_ptr.vmem [resolvable:$true] %s157
      %163 = dma.hbm_to_vmem [thread:$0]  %s15, 128, %s158, [#allocation12], 64, 64, 4
    $region33: #{forward.1} parent=1 // pred_fallthru
      _
    // Predicated region
    $region34: #{forward.1} parent=1 // pred_check
      _
    $region35: #{forward.1} parent=1 // pred_check_branch
      %165 = sbr.rel (0) target = $region37
    $region36: #{forward.1} parent=1 // pred_region
      %s167 = ssub.s32 2048, 2048
      %168 = vsyncadd [#allocation12], %s167
      %s169 = sshll.u32 [#allocation13], 4
      %s170 = int_to_ptr.vmem [resolvable:$true] %s169
      %175 = dma.hbm_to_vmem [thread:$0]  %s17, 2048, %s170, [#allocation12], 64, 64, 4
    $region37: #{forward.1} parent=1 // pred_fallthru
      _
    // Predicated region
    $region38: #{forward.1} parent=1 // pred_check
      _
    $region39: #{forward.1} parent=1 // pred_check_branch
      %177 = sbr.rel (0) target = $region41
    $region40: #{forward.1} parent=1 // pred_region
      %s179 = ssub.s32 2048, 2048
      %180 = vsyncadd [#allocation15], %s179
      %s181 = sshll.u32 [#allocation14], 4
      %s182 = int_to_ptr.vmem [resolvable:$true] %s181
      %187 = dma.hbm_to_vmem [thread:$0]  %s19, 2048, %s182, [#allocation15], 64, 64, 4
    $region41: #{forward.1} parent=1 // pred_fallthru
      _
    // Predicated region
    $region42: #{forward.1} parent=1 // pred_check
      _
    $region43: #{forward.1} parent=1 // pred_check_branch
      %189 = sbr.rel (0) target = $region45
    $region44: #{forward.1} parent=1 // pred_region
      %s191 = ssub.s32 128, 128
      %192 = vsyncadd [#allocation15], %s191
      %s193 = sshll.u32 [#allocation16], 4
      %s194 = int_to_ptr.vmem [resolvable:$true] %s193
      %199 = dma.hbm_to_vmem [thread:$0]  %s21, 128, %s194, [#allocation15], 64, 64, 4
    $region45: #{forward.1} parent=1 // pred_fallthru
      _
    // Predicated region
    $region46: #{forward.1} parent=1 // pred_check
      _
    $region47: #{forward.1} parent=1 // pred_check_branch
      %201 = sbr.rel (0) target = $region49
    $region48: #{forward.1} parent=1 // pred_region
      %s203 = ssub.s32 128, 128
      %204 = vsyncadd [#allocation18], %s203
      %s205 = sshll.u32 [#allocation17], 4
      %s206 = int_to_ptr.vmem [resolvable:$true] %s205
      %211 = dma.hbm_to_vmem [thread:$0]  %s23, 128, %s206, [#allocation18], 64, 64, 4
    $region49: #{forward.1} parent=1 // pred_fallthru
      _
    // Predicated region
    $region50: #{forward.1} parent=1 // pred_check
      _
    $region51: #{forward.1} parent=1 // pred_check_branch
      %213 = sbr.rel (0) target = $region53
    $region52: #{forward.1} parent=1 // pred_region
      _
    $region53: #{forward.1} parent=1 // pred_fallthru
      _
    // Predicated region
    $region54: #{forward.1} parent=1 // pred_check
      _
    $region55: #{forward.1} parent=1 // pred_check_branch
      %215 = sbr.rel (0) target = $region57
    $region56: #{forward.1} parent=1 // pred_region
      %s217 = ssub.s32 32, 32
      %218 = vsyncadd [#allocation18], %s217
      %s220 = sshll.u32 [#allocation19], 4
      %s221 = int_to_ptr.vmem [resolvable:$true] %s220
      %223 = dma.hbm_to_vmem [thread:$0]  %s27, 32, %s221, [#allocation18]
    $region57: #{forward.1} parent=1 // pred_fallthru
      _
    // Predicated region
    $region58: #{forward.1} parent=1 // pred_check
      _
    $region59: #{forward.1} parent=1 // pred_check_branch
      %225 = sbr.rel (0) target = $region61
    $region60: #{forward.1} parent=1 // pred_region
      _
    $region61: #{forward.1} parent=1 // pred_fallthru
      _
    // Predicated region
    $region62: #{forward.1} parent=1 // pred_check
      _
    $region63: #{forward.1} parent=1 // pred_check_branch
      %227 = sbr.rel (0) target = $region65
    $region64: #{forward.1} parent=1 // pred_region
      %s229 = ssub.s32 1024, 1024
      %230 = vsyncadd [#allocation21], %s229
      %s231 = sshll.u32 [#allocation20], 4
      %s232 = int_to_ptr.vmem [resolvable:$true] %s231
      %237 = dma.hbm_to_vmem [thread:$0]  %s31, 1024, %s232, [#allocation21], 256, 256, 16
    $region65: #{forward.1} parent=1 // pred_fallthru
      _
    // Predicated region
    $region66: #{forward.1} parent=1 // pred_check
      _
    $region67: #{forward.1} parent=1 // pred_check_branch
      %239 = sbr.rel (0) target = $region69
    $region68: #{forward.1} parent=1 // pred_region
      _
    $region69: #{forward.1} parent=1 // pred_fallthru
      _
    // Predicated region
    $region70: #{forward.1} parent=1 // pred_check
      _
    $region71: #{forward.1} parent=1 // pred_check_branch
      %241 = sbr.rel (0) target = $region73
    $region72: #{forward.1} parent=1 // pred_region
      %s243 = ssub.s32 16, 16
      %244 = vsyncadd [#allocation21], %s243
      %s246 = sshll.u32 [#allocation22], 4
      %s247 = int_to_ptr.vmem [resolvable:$true] %s246
      %249 = dma.hbm_to_vmem [thread:$0]  %s35, 16, %s247, [#allocation21]
    $region73: #{forward.1} parent=1 // pred_fallthru
      _
    // Predicated region
    $region74: #{forward.1} parent=1 // pred_check
      _
    $region75: #{forward.1} parent=1 // pred_check_branch
      %251 = sbr.rel (0) target = $region77
    $region76: #{forward.1} parent=1 // pred_region
      _
    $region77: #{forward.1} parent=1 // pred_fallthru
      _
    // Predicated region
    $region78: #{forward.1} parent=1 // pred_check
      _
    $region79: #{forward.1} parent=1 // pred_check_branch
      %253 = sbr.rel (0) target = $region81
    $region80: #{forward.1} parent=1 // pred_region
      %s255 = ssub.s32 64, 64
      %256 = vsyncadd [#allocation24], %s255
      %s258 = sshll.u32 [#allocation23], 4
      %s259 = int_to_ptr.vmem [resolvable:$true] %s258
      %261 = dma.hbm_to_vmem [thread:$0]  %s39, 64, %s259, [#allocation24]
    $region81: #{forward.1} parent=1 // pred_fallthru
      _
    // Predicated region
    $region82: #{forward.1} parent=1 // pred_check
      _
    $region83: #{forward.1} parent=1 // pred_check_branch
      %263 = sbr.rel (0) target = $region85
    $region84: #{forward.1} parent=1 // pred_region
      _
    $region85: #{forward.1} parent=1 // pred_fallthru
      _
    // Predicated region
    $region86: #{forward.1} parent=1 // pred_check
      _
    $region87: #{forward.1} parent=1 // pred_check_branch
      %265 = sbr.rel (0) target = $region89
    $region88: #{forward.1} parent=1 // pred_region
      %s267 = ssub.s32 256, 256
      %268 = vsyncadd [#allocation24], %s267
      %s269 = sshll.u32 [#allocation25], 4
      %s270 = int_to_ptr.vmem [resolvable:$true] %s269
      %275 = dma.hbm_to_vmem [thread:$0]  %s43, 256, %s270, [#allocation24], 64, 64, 4
    $region89: #{forward.1} parent=1 // pred_fallthru
      _
    // Predicated region
    $region90: #{forward.1} parent=1 // pred_check
      _
    $region91: #{forward.1} parent=1 // pred_check_branch
      %277 = sbr.rel (0) target = $region93
    $region92: #{forward.1} parent=1 // pred_region
      %s279 = ssub.s32 256, 256
      %280 = vsyncadd [#allocation27], %s279
      %s281 = sshll.u32 [#allocation26], 4
      %s282 = int_to_ptr.vmem [resolvable:$true] %s281
      %287 = dma.hbm_to_vmem [thread:$0]  %s45, 256, %s282, [#allocation27], 64, 64, 4
    $region93: #{forward.1} parent=1 // pred_fallthru
      _
    // Predicated region
    $region94: #{forward.1} parent=1 // pred_check
      _
    $region95: #{forward.1} parent=1 // pred_check_branch
      %289 = sbr.rel (0) target = $region97
    $region96: #{forward.1} parent=1 // pred_region
      %s291 = ssub.s32 16, 16
      %292 = vsyncadd [#allocation27], %s291
      %s294 = sshll.u32 [#allocation28], 4
      %s295 = int_to_ptr.vmem [resolvable:$true] %s294
      %297 = dma.hbm_to_vmem [thread:$0]  %s47, 16, %s295, [#allocation27]
    $region97: #{forward.1} parent=1 // pred_fallthru
      _
    // Predicated region
    $region98: #{forward.1} parent=1 // pred_check
      _
    $region99: #{forward.1} parent=1 // pred_check_branch
      %299 = sbr.rel (0) target = $region101
    $region100: #{forward.1} parent=1 // pred_region
      %s301 = ssub.s32 192, 192
      %302 = vsyncadd [#allocation30], %s301
      %s303 = sshll.u32 [#allocation29], 4
      %s304 = int_to_ptr.vmem [resolvable:$true] %s303
      %309 = dma.hbm_to_vmem [thread:$0]  %s49, 192, %s304, [#allocation30], 64, 64, 4
    $region101: #{forward.1} parent=1 // pred_fallthru
      _
    // Predicated region
    $region102: #{forward.1} parent=1 // pred_check
      _
    $region103: #{forward.1} parent=1 // pred_check_branch
      %311 = sbr.rel (0) target = $region105
    $region104: #{forward.1} parent=1 // pred_region
      %s313 = ssub.s32 16, 16
      %314 = vsyncadd [#allocation30], %s313
      %s316 = sshll.u32 [#allocation31], 4
      %s317 = int_to_ptr.vmem [resolvable:$true] %s316
      %319 = dma.hbm_to_vmem [thread:$0]  %s51, 16, %s317, [#allocation30]
    $region105: #{forward.1} parent=1 // pred_fallthru
      _
    // Predicated region
    $region106: #{forward.1} parent=1 // pred_check
      _
    $region107: #{forward.1} parent=1 // pred_check_branch
      %321 = sbr.rel (0) target = $region109
    $region108: #{forward.1} parent=1 // pred_region
      %s323 = ssub.s32 16, 16
      %324 = vsyncadd [#allocation33], %s323
      %s326 = sshll.u32 [#allocation32], 4
      %s327 = int_to_ptr.vmem [resolvable:$true] %s326
      %329 = dma.hbm_to_vmem [thread:$0]  %s53, 16, %s327, [#allocation33]
    $region109: #{forward.1} parent=1 // pred_fallthru
      _
    // Predicated region
    $region110: #{forward.1} parent=1 // pred_check
      _
    $region111: #{forward.1} parent=1 // pred_check_branch
      %331 = sbr.rel (0) target = $region113
    $region112: #{forward.1} parent=1 // pred_region
      %s333 = ssub.s32 16, 16
      %334 = vsyncadd [#allocation33], %s333
      %s336 = sshll.u32 [#allocation34], 4
      %s337 = int_to_ptr.vmem [resolvable:$true] %s336
      %339 = dma.hbm_to_vmem [thread:$0]  %s55, 16, %s337, [#allocation33]
    $region113: #{forward.1} parent=1 // pred_fallthru
      _
    // Predicated region
    $region114: #{forward.1} parent=1 // pred_check
      _
    $region115: #{forward.1} parent=1 // pred_check_branch
      %341 = sbr.rel (0) target = $region117
    $region116: #{forward.1} parent=1 // pred_region
      _
    $region117: #{forward.1} parent=1 // pred_fallthru
      _
    // Predicated region
    $region118: #{forward.1} parent=1 // pred_check
      _
    $region119: #{forward.1} parent=1 // pred_check_branch
      %343 = sbr.rel (0) target = $region121
    $region120: #{forward.1} parent=1 // pred_region
      %s345 = ssub.s32 512, 512
      %346 = vsyncadd [#allocation36], %s345
      %s347 = sshll.u32 [#allocation35], 4
      %s348 = int_to_ptr.vmem [resolvable:$true] %s347
      %353 = dma.hbm_to_vmem [thread:$0]  %s59, 512, %s348, [#allocation36], 128, 128, 8
    $region121: #{forward.1} parent=1 // pred_fallthru
      _
    // Predicated region
    $region122: #{forward.1} parent=1 // pred_check
      _
    $region123: #{forward.1} parent=1 // pred_check_branch
      %355 = sbr.rel (0) target = $region125
    $region124: #{forward.1} parent=1 // pred_region
      %s357 = ssub.s32 32, 32
      %358 = vsyncadd [#allocation36], %s357
      %s360 = sshll.u32 [#allocation37], 4
      %s361 = int_to_ptr.vmem [resolvable:$true] %s360
      %363 = dma.hbm_to_vmem [thread:$0]  %s61, 32, %s361, [#allocation36]
    $region125: #{forward.1} parent=1 // pred_fallthru
      _
    // Predicated region
    $region126: #{forward.1} parent=1 // pred_check
      _
    $region127: #{forward.1} parent=1 // pred_check_branch
      %365 = sbr.rel (0) target = $region129
    $region128: #{forward.1} parent=1 // pred_region
      %s367 = ssub.s32 32, 32
      %368 = vsyncadd [#allocation39], %s367
      %s370 = sshll.u32 [#allocation38], 4
      %s371 = int_to_ptr.vmem [resolvable:$true] %s370
      %373 = dma.hbm_to_vmem [thread:$0]  %s63, 32, %s371, [#allocation39]
    $region129: #{forward.1} parent=1 // pred_fallthru
      _
    // Predicated region
    $region130: #{forward.1} parent=1 // pred_check
      _
    $region131: #{forward.1} parent=1 // pred_check_branch
      %375 = sbr.rel (0) target = $region133
    $region132: #{forward.1} parent=1 // pred_region
      %s377 = ssub.s32 32, 32
      %378 = vsyncadd [#allocation39], %s377
      %s380 = sshll.u32 [#allocation40], 4
      %s381 = int_to_ptr.vmem [resolvable:$true] %s380
      %383 = dma.hbm_to_vmem [thread:$0]  %s65, 32, %s381, [#allocation39]
    $region133: #{forward.1} parent=1 // pred_fallthru
      _
    // Predicated region
    $region134: #{forward.1} parent=1 // pred_check
      _
    $region135: #{forward.1} parent=1 // pred_check_branch
      %385 = sbr.rel (0) target = $region137
    $region136: #{forward.1} parent=1 // pred_region
      _
    $region137: #{forward.1} parent=1 // pred_fallthru
      _
    // Predicated region
    $region138: #{forward.1} parent=1 // pred_check
      _
    $region139: #{forward.1} parent=1 // pred_check_branch
      %387 = sbr.rel (0) target = $region141
    $region140: #{forward.1} parent=1 // pred_region
      _
    $region141: #{forward.1} parent=1 // pred_fallthru
      _
    // Predicated region
    $region142: #{forward.1} parent=1 // pred_check
      _
    $region143: #{forward.1} parent=1 // pred_check_branch
      %389 = sbr.rel (0) target = $region145
    $region144: #{forward.1} parent=1 // pred_region
      %390 = dma.done [#allocation3], 256
    $region145: #{forward.1} parent=1 // pred_fallthru
      _
    // Predicated region
    $region146: #{forward.1} parent=1 // pred_check
      _
    $region147: #{forward.1} parent=1 // pred_check_branch
      %392 = sbr.rel (0) target = $region149
    $region148: #{forward.1} parent=1 // pred_region
      %393 = dma.done [#allocation6], 256
    $region149: #{forward.1} parent=1 // pred_fallthru
      _
    // Predicated region
    $region150: #{forward.1} parent=1 // pred_check
      _
    $region151: #{forward.1} parent=1 // pred_check_branch
      %395 = sbr.rel (0) target = $region153
    $region152: #{forward.1} parent=1 // pred_region
      %396 = dma.done [#allocation6], 768
    $region153: #{forward.1} parent=1 // pred_fallthru
      _
    // Predicated region
    $region154: #{forward.1} parent=1 // pred_check
      _
    $region155: #{forward.1} parent=1 // pred_check_branch
      %398 = sbr.rel (0) target = $region157
    $region156: #{forward.1} parent=1 // pred_region
      %399 = dma.done [#allocation9], 32
    $region157: #{forward.1} parent=1 // pred_fallthru
      _
    // Predicated region
    $region158: #{forward.1} parent=1 // pred_check
      _
    $region159: #{forward.1} parent=1 // pred_check_branch
      %401 = sbr.rel (0) target = $region161
    $region160: #{forward.1} parent=1 // pred_region
      %402 = dma.done [#allocation9], 128
    $region161: #{forward.1} parent=1 // pred_fallthru
      _
    // Predicated region
    $region162: #{forward.1} parent=1 // pred_check
      _
    $region163: #{forward.1} parent=1 // pred_check_branch
      %404 = sbr.rel (0) target = $region165
    $region164: #{forward.1} parent=1 // pred_region
      %405 = dma.done [#allocation12], 128
    $region165: #{forward.1} parent=1 // pred_fallthru
      _
    // Predicated region
    $region166: #{forward.1} parent=1 // pred_check
      _
    $region167: #{forward.1} parent=1 // pred_check_branch
      %407 = sbr.rel (0) target = $region169
    $region168: #{forward.1} parent=1 // pred_region
      %408 = dma.done [#allocation12], 2048
    $region169: #{forward.1} parent=1 // pred_fallthru
      _
    // Predicated region
    $region170: #{forward.1} parent=1 // pred_check
      _
    $region171: #{forward.1} parent=1 // pred_check_branch
      %410 = sbr.rel (0) target = $region173
    $region172: #{forward.1} parent=1 // pred_region
      %411 = dma.done [#allocation15], 2048
    $region173: #{forward.1} parent=1 // pred_fallthru
      _
    // Predicated region
    $region174: #{forward.1} parent=1 // pred_check
      _
    $region175: #{forward.1} parent=1 // pred_check_branch
      %413 = sbr.rel (0) target = $region177
    $region176: #{forward.1} parent=1 // pred_region
      %414 = dma.done [#allocation15], 128
    $region177: #{forward.1} parent=1 // pred_fallthru
      _
    // Predicated region
    $region178: #{forward.1} parent=1 // pred_check
      _
    $region179: #{forward.1} parent=1 // pred_check_branch
      %416 = sbr.rel (0) target = $region181
    $region180: #{forward.1} parent=1 // pred_region
      %417 = dma.done [#allocation18], 128
    $region181: #{forward.1} parent=1 // pred_fallthru
      _
    // Predicated region
    $region182: #{forward.1} parent=1 // pred_check
      _
    $region183: #{forward.1} parent=1 // pred_check_branch
      %419 = sbr.rel (0) target = $region185
    $region184: #{forward.1} parent=1 // pred_region
      %420 = dma.done [#allocation18], 32
    $region185: #{forward.1} parent=1 // pred_fallthru
      _
    // Predicated region
    $region186: #{forward.1} parent=1 // pred_check
      _
    $region187: #{forward.1} parent=1 // pred_check_branch
      %422 = sbr.rel (0) target = $region189
    $region188: #{forward.1} parent=1 // pred_region
      %423 = dma.done [#allocation21], 1024
    $region189: #{forward.1} parent=1 // pred_fallthru
      _
    // Predicated region
    $region190: #{forward.1} parent=1 // pred_check
      _
    $region191: #{forward.1} parent=1 // pred_check_branch
      %425 = sbr.rel (0) target = $region193
    $region192: #{forward.1} parent=1 // pred_region
      %426 = dma.done [#allocation21], 16
    $region193: #{forward.1} parent=1 // pred_fallthru
      _
    // Predicated region
    $region194: #{forward.1} parent=1 // pred_check
      _
    $region195: #{forward.1} parent=1 // pred_check_branch
      %428 = sbr.rel (0) target = $region197
    $region196: #{forward.1} parent=1 // pred_region
      %429 = dma.done [#allocation24], 64
    $region197: #{forward.1} parent=1 // pred_fallthru
      _
    // Predicated region
    $region198: #{forward.1} parent=1 // pred_check
      _
    $region199: #{forward.1} parent=1 // pred_check_branch
      %431 = sbr.rel (0) target = $region201
    $region200: #{forward.1} parent=1 // pred_region
      %432 = dma.done [#allocation24], 256
    $region201: #{forward.1} parent=1 // pred_fallthru
      _
    // Predicated region
    $region202: #{forward.1} parent=1 // pred_check
      _
    $region203: #{forward.1} parent=1 // pred_check_branch
      %434 = sbr.rel (0) target = $region205
    $region204: #{forward.1} parent=1 // pred_region
      %435 = dma.done [#allocation27], 256
    $region205: #{forward.1} parent=1 // pred_fallthru
      _
    // Predicated region
    $region206: #{forward.1} parent=1 // pred_check
      _
    $region207: #{forward.1} parent=1 // pred_check_branch
      %437 = sbr.rel (0) target = $region209
    $region208: #{forward.1} parent=1 // pred_region
      %438 = dma.done [#allocation27], 16
    $region209: #{forward.1} parent=1 // pred_fallthru
      _
    // Predicated region
    $region210: #{forward.1} parent=1 // pred_check
      _
    $region211: #{forward.1} parent=1 // pred_check_branch
      %440 = sbr.rel (0) target = $region213
    $region212: #{forward.1} parent=1 // pred_region
      %441 = dma.done [#allocation30], 192
    $region213: #{forward.1} parent=1 // pred_fallthru
      _
    // Predicated region
    $region214: #{forward.1} parent=1 // pred_check
      _
    $region215: #{forward.1} parent=1 // pred_check_branch
      %443 = sbr.rel (0) target = $region217
    $region216: #{forward.1} parent=1 // pred_region
      %444 = dma.done [#allocation30], 16
    $region217: #{forward.1} parent=1 // pred_fallthru
      _
    // Predicated region
    $region218: #{forward.1} parent=1 // pred_check
      _
    $region219: #{forward.1} parent=1 // pred_check_branch
      %446 = sbr.rel (0) target = $region221
    $region220: #{forward.1} parent=1 // pred_region
      %447 = dma.done [#allocation33], 16
    $region221: #{forward.1} parent=1 // pred_fallthru
      _
    // Predicated region
    $region222: #{forward.1} parent=1 // pred_check
      _
    $region223: #{forward.1} parent=1 // pred_check_branch
      %449 = sbr.rel (0) target = $region225
    $region224: #{forward.1} parent=1 // pred_region
      %450 = dma.done [#allocation33], 16
    $region225: #{forward.1} parent=1 // pred_fallthru
      _
    // Predicated region
    $region226: #{forward.1} parent=1 // pred_check
      _
    $region227: #{forward.1} parent=1 // pred_check_branch
      %452 = sbr.rel (0) target = $region229
    $region228: #{forward.1} parent=1 // pred_region
      %453 = dma.done [#allocation36], 512
    $region229: #{forward.1} parent=1 // pred_fallthru
      _
    // Predicated region
    $region230: #{forward.1} parent=1 // pred_check
      _
    $region231: #{forward.1} parent=1 // pred_check_branch
      %455 = sbr.rel (0) target = $region233
    $region232: #{forward.1} parent=1 // pred_region
      %456 = dma.done [#allocation36], 32
    $region233: #{forward.1} parent=1 // pred_fallthru
      _
    // Predicated region
    $region234: #{forward.1} parent=1 // pred_check
      _
    $region235: #{forward.1} parent=1 // pred_check_branch
      %458 = sbr.rel (0) target = $region237
    $region236: #{forward.1} parent=1 // pred_region
      %459 = dma.done [#allocation39], 32
    $region237: #{forward.1} parent=1 // pred_fallthru
      _
    // Predicated region
    $region238: #{forward.1} parent=1 // pred_check
      _
    $region239: #{forward.1} parent=1 // pred_check_branch
      %461 = sbr.rel (0) target = $region241
    $region240: #{forward.1} parent=1 // pred_region
      %462 = dma.done [#allocation39], 32
    $region241: #{forward.1} parent=1 // pred_fallthru
      _
    %v464 = vld [vmem:[%s1] sm:$0xff]
    %v465 = vld [vmem:[%s1 + $0x8] sm:$0xff]
    %v466 = vld [vmem:[%s1 + $0x10] sm:$0xff]
    %v467 = vld [vmem:[%s1 + $0x18] sm:$0xff]
    %v468 = vld [vmem:[#allocation2] sm:$0xf]
    %v469 = vld [vmem:[#allocation2 + $0x4] sm:$0xf]
    %v470 = vld [vmem:[#allocation2 + $0x8] sm:$0xf]
    %v471 = vld [vmem:[#allocation2 + $0xc] sm:$0xf]
    %v472 = vpack.c.bf16 %v465, %v464
    %v473 = vpack.c.bf16 %v467, %v466
    %v478 = vunpack.c.l.b16 %v468
    %v479 = vunpack.c.l.b16 %v469
    %v480 = vunpack.c.l.b16 %v470
    %v481 = vunpack.c.l.b16 %v471
    %v482 = vpack.c.b16 %v479, %v478
    %v483 = vpack.c.b16 %v481, %v480
    %vm484 = vcmask 261120
    %v486 = vsel %vm484, %v482, 0
    %v489 = vsel %vm484, %v483, 0
    %491 = vmatprep.subr.bf16.mxu0 0
    %492 = vmatpush1.bf16.msra.mxu0 %v472
    %493 = vmatprep.subr.bf16.mxu0 0
    %494 = vmatpush1.bf16.msra.mxu0 %v473
    %495 = vmatprep.subr.bf16.mxu0 0
    %496 = vmatpush1.bf16.msra.mxu0 0
    %497 = vmatprep.subr.bf16.mxu0 0
    %498 = vmatpush1.bf16.msra.mxu0 0
    %499 = vmatprep.subr.bf16.mxu0 0
    %500 = vmatpush1.bf16.msra.mxu0 0
    %501 = vmatprep.subr.bf16.mxu0 0
    %502 = vmatpush1.bf16.msra.mxu0 0
    %503 = vmatprep.subr.bf16.mxu0 0
    %504 = vmatpush1.bf16.msra.mxu0 0
    %505 = vmatprep.subr.bf16.mxu0 0
    %506 = vmatpush1.bf16.msra.mxu0 0
    %507 = vmatprep.subr.bf16.mxu0 0
    %508 = vmatpush1.bf16.msra.mxu0 0
    %509 = vmatprep.subr.bf16.mxu0 0
    %510 = vmatpush1.bf16.msra.mxu0 0
    %511 = vmatprep.subr.bf16.mxu0 0
    %512 = vmatpush1.bf16.msra.mxu0 0
    %513 = vmatprep.subr.bf16.mxu0 0
    %514 = vmatpush1.bf16.msra.mxu0 0
    %515 = vmatprep.subr.bf16.mxu0 0
    %516 = vmatpush1.bf16.msra.mxu0 0
    %517 = vmatprep.subr.bf16.mxu0 0
    %518 = vmatpush1.bf16.msra.mxu0 0
    %519 = vmatprep.subr.bf16.mxu0 0
    %520 = vmatpush1.bf16.msra.mxu0 0
    %521 = vmatprep.subr.bf16.mxu0 0
    %522 = vmatpush1.bf16.msra.mxu0 0
    %523 = vmatprep.mubr.bf16.mxu0 0
    %524 = vmatmul.mubr.bf16.gmra.mrb[0].mxu0 %v486
    %v525 = vpop.f32.mrb[0].mxu0
    %v526 = vadd.f32 0.0, %v525
    %v527 = vpop.f32.mrb[0].mxu0
    %v528 = vpop.f32.mrb[0].mxu0
    %v529 = vadd.f32 0.0, %v528
    %v530 = vpop.f32.mrb[0].mxu0
    %531 = vmatprep.mubr.bf16.mxu0 0
    %532 = vmatmul.mubr.bf16.gmra.mrb[0].mxu0 %v489
    %v533 = vpop.f32.mrb[0].mxu0
    %v534 = vadd.f32 0.0, %v533
    %v535 = vpop.f32.mrb[0].mxu0
    %v536 = vpop.f32.mrb[0].mxu0
    %v537 = vadd.f32 0.0, %v536
    %v538 = vpop.f32.mrb[0].mxu0
    %539 = vdwg.mxu0
    %v540 = vld [vmem:[#allocation5] sm:$0xf]
    %v541 = vld [vmem:[#allocation5 + $0x4] sm:$0xf]
    %v542 = vld [vmem:[#allocation5 + $0x8] sm:$0xf]
    %v543 = vld [vmem:[#allocation5 + $0xc] sm:$0xf]
    %v548 = vunpack.c.l.b16 %v540
    %v549 = vunpack.c.l.b16 %v541
    %v550 = vunpack.c.l.b16 %v542
    %v551 = vunpack.c.l.b16 %v543
    %v552 = vpack.c.b16 %v549, %v548
    %v553 = vpack.c.b16 %v551, %v550
    %v555 = vsel %vm484, %v552, 0
    %v558 = vsel %vm484, %v553, 0
    %560 = vmatprep.subr.bf16.mxu0 0
    %561 = vmatpush1.bf16.msra.mxu0 %v472
    %562 = vmatprep.subr.bf16.mxu0 0
    %563 = vmatpush1.bf16.msra.mxu0 %v473
    %564 = vmatprep.subr.bf16.mxu0 0
    %565 = vmatpush1.bf16.msra.mxu0 0
    %566 = vmatprep.subr.bf16.mxu0 0
    %567 = vmatpush1.bf16.msra.mxu0 0
    %568 = vmatprep.subr.bf16.mxu0 0
    %569 = vmatpush1.bf16.msra.mxu0 0
    %570 = vmatprep.subr.bf16.mxu0 0
    %571 = vmatpush1.bf16.msra.mxu0 0
    %572 = vmatprep.subr.bf16.mxu0 0
    %573 = vmatpush1.bf16.msra.mxu0 0
    %574 = vmatprep.subr.bf16.mxu0 0
    %575 = vmatpush1.bf16.msra.mxu0 0
    %576 = vmatprep.subr.bf16.mxu0 0
    %577 = vmatpush1.bf16.msra.mxu0 0
    %578 = vmatprep.subr.bf16.mxu0 0
    %579 = vmatpush1.bf16.msra.mxu0 0
    %580 = vmatprep.subr.bf16.mxu0 0
    %581 = vmatpush1.bf16.msra.mxu0 0
    %582 = vmatprep.subr.bf16.mxu0 0
    %583 = vmatpush1.bf16.msra.mxu0 0
    %584 = vmatprep.subr.bf16.mxu0 0
    %585 = vmatpush1.bf16.msra.mxu0 0
    %586 = vmatprep.subr.bf16.mxu0 0
    %587 = vmatpush1.bf16.msra.mxu0 0
    %588 = vmatprep.subr.bf16.mxu0 0
    %589 = vmatpush1.bf16.msra.mxu0 0
    %590 = vmatprep.subr.bf16.mxu0 0
    %591 = vmatpush1.bf16.msra.mxu0 0
    %592 = vmatprep.mubr.bf16.mxu0 0
    %593 = vmatmul.mubr.bf16.gmra.mrb[0].mxu0 %v555
    %v594 = vpop.f32.mrb[0].mxu0
    %v595 = vadd.f32 0.0, %v594
    %v596 = vpop.f32.mrb[0].mxu0
    %v597 = vpop.f32.mrb[0].mxu0
    %v598 = vadd.f32 0.0, %v597
    %v599 = vpop.f32.mrb[0].mxu0
    %600 = vmatprep.mubr.bf16.mxu0 0
    %601 = vmatmul.mubr.bf16.gmra.mrb[0].mxu0 %v558
    %v602 = vpop.f32.mrb[0].mxu0
    %v603 = vadd.f32 0.0, %v602
    %v604 = vpop.f32.mrb[0].mxu0
    %v605 = vpop.f32.mrb[0].mxu0
    %v606 = vadd.f32 0.0, %v605
    %v607 = vpop.f32.mrb[0].mxu0
    %608 = vdwg.mxu0
    %613 = vrot.lane.b32.xlu0 %v464, 16
    %v614 = vpop.permute.xlu0 %613
    %615 = vrot.lane.b32.xlu0 %v465, 16
    %v616 = vpop.permute.xlu0 %615
    %617 = vrot.lane.b32.xlu0 %v466, 16
    %v618 = vpop.permute.xlu0 %617
    %619 = vrot.lane.b32.xlu0 %v467, 16
    %v620 = vpop.permute.xlu0 %619
    %629 = vrot.lane.b32.xlu0 %v595, 32
    %v630 = vpop.permute.xlu0 %629
    %631 = vrot.lane.b32.xlu0 %v598, 32
    %v632 = vpop.permute.xlu0 %631
    %633 = vrot.lane.b32.xlu0 %v603, 32
    %v634 = vpop.permute.xlu0 %633
    %635 = vrot.lane.b32.xlu0 %v606, 32
    %v636 = vpop.permute.xlu0 %635
    %vm641 = vcmask 130048
    %v642 = vsel %vm641, %v526, %v614
    %v643 = vsel %vm641, %v529, %v616
    %v644 = vsel %vm641, %v534, %v618
    %v645 = vsel %vm641, %v537, %v620
    %v646 = vsel %vm484, %v642, %v630
    %v647 = vsel %vm484, %v643, %v632
    %v648 = vsel %vm484, %v644, %v634
    %v649 = vsel %vm484, %v645, %v636
    %v650 = vld [vmem:[#allocation7] sm:$0xff]
    %v651 = vld [vmem:[#allocation7 + $0x8] sm:$0xff]
    %v652 = vld [vmem:[#allocation7 + $0x10] sm:$0xff]
    %v653 = vld [vmem:[#allocation7 + $0x18] sm:$0xff]
    %v654 = vld [vmem:[#allocation7 + $0x20] sm:$0xff]
    %v655 = vld [vmem:[#allocation7 + $0x28] sm:$0xff]
    %v656 = vpack.c.bf16 %v647, %v646
    %v657 = vpack.c.bf16 %v649, %v648
    %v658 = vld [vmem:[#allocation8] sm:$0x3]
    %v660 = vlaneseq
    %v661 = vshrl.u32 %v660, 7
    %v662 = vsub.s32 0, %v661
    %v663 = vrot.slane %v658, %v662
    %v664 = vlaneseq
    %v665 = vshrl.u32 %v664, 7
    %v666 = vsub.s32 1, %v665
    %v667 = vrot.slane %v658, %v666
    %v676 = vunpack.c.l.b16 %v650
    %v677 = vunpack.c.h.b16 %v650
    %v678 = vunpack.c.l.b16 %v651
    %v679 = vunpack.c.h.b16 %v651
    %v680 = vunpack.c.l.b16 %v652
    %v681 = vunpack.c.h.b16 %v652
    %v682 = vunpack.c.l.b16 %v653
    %v683 = vunpack.c.h.b16 %v653
    %v684 = vunpack.c.l.b16 %v654
    %v685 = vunpack.c.h.b16 %v654
    %v686 = vunpack.c.l.b16 %v655
    %v687 = vunpack.c.h.b16 %v655
    %v688 = vpack.c.b16 %v678, %v676
    %v689 = vpack.c.b16 %v679, %v677
    %v690 = vpack.c.b16 %v682, %v680
    %v691 = vpack.c.b16 %v683, %v681
    %v692 = vpack.c.b16 %v686, %v684
    %v693 = vpack.c.b16 %v687, %v685
    %vm700 = vcmask 392192
    %v702 = vsel %vm700, %v656, 0
    %v705 = vsel %vm700, %v657, 0
    %707 = vmatprep.subr.bf16.mxu0 %v689
    %708 = vmatpush1.bf16.msra.mxu0 %v688
    %709 = vmatprep.subr.bf16.mxu0 %v691
    %710 = vmatpush1.bf16.msra.mxu0 %v690
    %711 = vmatprep.subr.bf16.mxu0 %v693
    %712 = vmatpush1.bf16.msra.mxu0 %v692
    %713 = vmatprep.subr.bf16.mxu0 0
    %714 = vmatpush1.bf16.msra.mxu0 0
    %715 = vmatprep.subr.bf16.mxu0 0
    %716 = vmatpush1.bf16.msra.mxu0 0
    %717 = vmatprep.subr.bf16.mxu0 0
    %718 = vmatpush1.bf16.msra.mxu0 0
    %719 = vmatprep.subr.bf16.mxu0 0
    %720 = vmatpush1.bf16.msra.mxu0 0
    %721 = vmatprep.subr.bf16.mxu0 0
    %722 = vmatpush1.bf16.msra.mxu0 0
    %723 = vmatprep.subr.bf16.mxu0 0
    %724 = vmatpush1.bf16.msra.mxu0 0
    %725 = vmatprep.subr.bf16.mxu0 0
    %726 = vmatpush1.bf16.msra.mxu0 0
    %727 = vmatprep.subr.bf16.mxu0 0
    %728 = vmatpush1.bf16.msra.mxu0 0
    %729 = vmatprep.subr.bf16.mxu0 0
    %730 = vmatpush1.bf16.msra.mxu0 0
    %731 = vmatprep.subr.bf16.mxu0 0
    %732 = vmatpush1.bf16.msra.mxu0 0
    %733 = vmatprep.subr.bf16.mxu0 0
    %734 = vmatpush1.bf16.msra.mxu0 0
    %735 = vmatprep.subr.bf16.mxu0 0
    %736 = vmatpush1.bf16.msra.mxu0 0
    %737 = vmatprep.subr.bf16.mxu0 0
    %738 = vmatpush1.bf16.msra.mxu0 0
    %739 = vmatprep.mubr.bf16.mxu0 0
    %740 = vmatmul.mubr.bf16.gmra.mrb[0].mxu0 %v702
    %v741 = vpop.f32.mrb[0].mxu0
    %v742 = vadd.f32 %v663, %v741
    %v743 = vpop.f32.mrb[0].mxu0
    %v744 = vadd.f32 %v667, %v743
    %v745 = vpop.f32.mrb[0].mxu0
    %v746 = vadd.f32 %v663, %v745
    %v747 = vpop.f32.mrb[0].mxu0
    %v748 = vadd.f32 %v667, %v747
    %749 = vmatprep.mubr.bf16.mxu0 0
    %750 = vmatmul.mubr.bf16.gmra.mrb[0].mxu0 %v705
    %v751 = vpop.f32.mrb[0].mxu0
    %v752 = vadd.f32 %v663, %v751
    %v753 = vpop.f32.mrb[0].mxu0
    %v754 = vadd.f32 %v667, %v753
    %v755 = vpop.f32.mrb[0].mxu0
    %v756 = vadd.f32 %v663, %v755
    %v757 = vpop.f32.mrb[0].mxu0
    %v758 = vadd.f32 %v667, %v757
    %759 = vdwg.mxu0
    %v760 = vmax.f32 %v742, 0.0
    %v761 = vmax.f32 %v744, 0.0
    %v762 = vmax.f32 %v746, 0.0
    %v763 = vmax.f32 %v748, 0.0
    %v764 = vmax.f32 %v752, 0.0
    %v765 = vmax.f32 %v754, 0.0
    %v766 = vmax.f32 %v756, 0.0
    %v767 = vmax.f32 %v758, 0.0
    %v768 = vld [vmem:[#allocation10] sm:$0xf]
    %v769 = vld [vmem:[#allocation10 + $0x4] sm:$0xf]
    %v770 = vpack.c.bf16 %v762, %v760
    %v771 = vpack.c.bf16 %v763, %v761
    %v772 = vpack.c.bf16 %v766, %v764
    %v773 = vpack.c.bf16 %v767, %v765
    %v776 = vunpack.c.l.b16 %v768
    %v777 = vunpack.c.l.b16 %v769
    %v778 = vpack.c.b16 %v777, %v776
    %v780 = vsel %vm484, %v778, 0
    %782 = vmatprep.subr.bf16.mxu0 %v771
    %783 = vmatpush1.bf16.msra.mxu0 %v770
    %784 = vmatprep.subr.bf16.mxu0 %v773
    %785 = vmatpush1.bf16.msra.mxu0 %v772
    %786 = vmatprep.subr.bf16.mxu0 0
    %787 = vmatpush1.bf16.msra.mxu0 0
    %788 = vmatprep.subr.bf16.mxu0 0
    %789 = vmatpush1.bf16.msra.mxu0 0
    %790 = vmatprep.subr.bf16.mxu0 0
    %791 = vmatpush1.bf16.msra.mxu0 0
    %792 = vmatprep.subr.bf16.mxu0 0
    %793 = vmatpush1.bf16.msra.mxu0 0
    %794 = vmatprep.subr.bf16.mxu0 0
    %795 = vmatpush1.bf16.msra.mxu0 0
    %796 = vmatprep.subr.bf16.mxu0 0
    %797 = vmatpush1.bf16.msra.mxu0 0
    %798 = vmatprep.subr.bf16.mxu0 0
    %799 = vmatpush1.bf16.msra.mxu0 0
    %800 = vmatprep.subr.bf16.mxu0 0
    %801 = vmatpush1.bf16.msra.mxu0 0
    %802 = vmatprep.subr.bf16.mxu0 0
    %803 = vmatpush1.bf16.msra.mxu0 0
    %804 = vmatprep.subr.bf16.mxu0 0
    %805 = vmatpush1.bf16.msra.mxu0 0
    %806 = vmatprep.subr.bf16.mxu0 0
    %807 = vmatpush1.bf16.msra.mxu0 0
    %808 = vmatprep.subr.bf16.mxu0 0
    %809 = vmatpush1.bf16.msra.mxu0 0
    %810 = vmatprep.subr.bf16.mxu0 0
    %811 = vmatpush1.bf16.msra.mxu0 0
    %812 = vmatprep.subr.bf16.mxu0 0
    %813 = vmatpush1.bf16.msra.mxu0 0
    %814 = vmatprep.mubr.bf16.mxu0 0
    %815 = vmatmul.mubr.bf16.gmra.mrb[0].mxu0 %v780
    %v816 = vpop.f32.mrb[0].mxu0
    %v817 = vadd.f32 0.0, %v816
    %v818 = vpop.f32.mrb[0].mxu0
    %v819 = vadd.f32 0.0, %v818
    %v820 = vpop.f32.mrb[0].mxu0
    %v821 = vadd.f32 0.0, %v820
    %v822 = vpop.f32.mrb[0].mxu0
    %v823 = vadd.f32 0.0, %v822
    %824 = vdwg.mxu0
    %v825 = vld [vmem:[#allocation11] sm:$0xf]
    %v826 = vld [vmem:[#allocation11 + $0x4] sm:$0xf]
    %v829 = vunpack.c.l.b16 %v825
    %v830 = vunpack.c.l.b16 %v826
    %v831 = vpack.c.b16 %v830, %v829
    %v833 = vsel %vm484, %v831, 0
    %835 = vmatprep.subr.bf16.mxu0 %v771
    %836 = vmatpush1.bf16.msra.mxu0 %v770
    %837 = vmatprep.subr.bf16.mxu0 %v773
    %838 = vmatpush1.bf16.msra.mxu0 %v772
    %839 = vmatprep.subr.bf16.mxu0 0
    %840 = vmatpush1.bf16.msra.mxu0 0
    %841 = vmatprep.subr.bf16.mxu0 0
    %842 = vmatpush1.bf16.msra.mxu0 0
    %843 = vmatprep.subr.bf16.mxu0 0
    %844 = vmatpush1.bf16.msra.mxu0 0
    %845 = vmatprep.subr.bf16.mxu0 0
    %846 = vmatpush1.bf16.msra.mxu0 0
    %847 = vmatprep.subr.bf16.mxu0 0
    %848 = vmatpush1.bf16.msra.mxu0 0
    %849 = vmatprep.subr.bf16.mxu0 0
    %850 = vmatpush1.bf16.msra.mxu0 0
    %851 = vmatprep.subr.bf16.mxu0 0
    %852 = vmatpush1.bf16.msra.mxu0 0
    %853 = vmatprep.subr.bf16.mxu0 0
    %854 = vmatpush1.bf16.msra.mxu0 0
    %855 = vmatprep.subr.bf16.mxu0 0
    %856 = vmatpush1.bf16.msra.mxu0 0
    %857 = vmatprep.subr.bf16.mxu0 0
    %858 = vmatpush1.bf16.msra.mxu0 0
    %859 = vmatprep.subr.bf16.mxu0 0
    %860 = vmatpush1.bf16.msra.mxu0 0
    %861 = vmatprep.subr.bf16.mxu0 0
    %862 = vmatpush1.bf16.msra.mxu0 0
    %863 = vmatprep.subr.bf16.mxu0 0
    %864 = vmatpush1.bf16.msra.mxu0 0
    %865 = vmatprep.subr.bf16.mxu0 0
    %866 = vmatpush1.bf16.msra.mxu0 0
    %867 = vmatprep.mubr.bf16.mxu0 0
    %868 = vmatmul.mubr.bf16.gmra.mrb[0].mxu0 %v833
    %v869 = vpop.f32.mrb[0].mxu0
    %v870 = vadd.f32 0.0, %v869
    %v871 = vpop.f32.mrb[0].mxu0
    %v872 = vadd.f32 0.0, %v871
    %v873 = vpop.f32.mrb[0].mxu0
    %v874 = vadd.f32 0.0, %v873
    %v875 = vpop.f32.mrb[0].mxu0
    %v876 = vadd.f32 0.0, %v875
    %877 = vdwg.mxu0
    %v878 = vmax.f32 %v817, %v870
    %v879 = vmax.f32 %v819, %v872
    %v880 = vmax.f32 %v821, %v874
    %v881 = vmax.f32 %v823, %v876
    %v882 = vld [vmem:[#allocation13] sm:$0xf]
    %v883 = vld [vmem:[#allocation13 + $0x4] sm:$0xf]
    %v884 = vld [vmem:[#allocation13 + $0x8] sm:$0xf]
    %v885 = vld [vmem:[#allocation13 + $0xc] sm:$0xf]
    %v886 = vld [vmem:[#allocation13 + $0x10] sm:$0xf]
    %v887 = vld [vmem:[#allocation13 + $0x14] sm:$0xf]
    %v888 = vld [vmem:[#allocation13 + $0x18] sm:$0xf]
    %v889 = vld [vmem:[#allocation13 + $0x1c] sm:$0xf]
    %v890 = vld [vmem:[#allocation13 + $0x20] sm:$0xf]
    %v891 = vld [vmem:[#allocation13 + $0x24] sm:$0xf]
    %v892 = vld [vmem:[#allocation13 + $0x28] sm:$0xf]
    %v893 = vld [vmem:[#allocation13 + $0x2c] sm:$0xf]
    %v894 = vld [vmem:[#allocation13 + $0x30] sm:$0xf]
    %v895 = vld [vmem:[#allocation13 + $0x34] sm:$0xf]
    %v896 = vld [vmem:[#allocation13 + $0x38] sm:$0xf]
    %v897 = vld [vmem:[#allocation13 + $0x3c] sm:$0xf]
    %v898 = vld [vmem:[#allocation13 + $0x40] sm:$0xf]
    %v899 = vld [vmem:[#allocation13 + $0x44] sm:$0xf]
    %v900 = vld [vmem:[#allocation13 + $0x48] sm:$0xf]
    %v901 = vld [vmem:[#allocation13 + $0x4c] sm:$0xf]
    %v902 = vld [vmem:[#allocation13 + $0x50] sm:$0xf]
    %v903 = vld [vmem:[#allocation13 + $0x54] sm:$0xf]
    %v904 = vld [vmem:[#allocation13 + $0x58] sm:$0xf]
    %v905 = vld [vmem:[#allocation13 + $0x5c] sm:$0xf]
    %v906 = vld [vmem:[#allocation13 + $0x60] sm:$0xf]
    %v907 = vld [vmem:[#allocation13 + $0x64] sm:$0xf]
    %v908 = vld [vmem:[#allocation13 + $0x68] sm:$0xf]
    %v909 = vld [vmem:[#allocation13 + $0x6c] sm:$0xf]
    %v910 = vld [vmem:[#allocation13 + $0x70] sm:$0xf]
    %v911 = vld [vmem:[#allocation13 + $0x74] sm:$0xf]
    %v912 = vld [vmem:[#allocation13 + $0x78] sm:$0xf]
    %v913 = vld [vmem:[#allocation13 + $0x7c] sm:$0xf]
    %v914 = vpack.c.bf16 %v880, %v878
    %v915 = vpack.c.bf16 %v881, %v879
    %v948 = vunpack.c.l.b16 %v882
    %v949 = vunpack.c.l.b16 %v883
    %v950 = vunpack.c.l.b16 %v884
    %v951 = vunpack.c.l.b16 %v885
    %v952 = vunpack.c.l.b16 %v886
    %v953 = vunpack.c.l.b16 %v887
    %v954 = vunpack.c.l.b16 %v888
    %v955 = vunpack.c.l.b16 %v889
    %v956 = vunpack.c.l.b16 %v890
    %v957 = vunpack.c.l.b16 %v891
    %v958 = vunpack.c.l.b16 %v892
    %v959 = vunpack.c.l.b16 %v893
    %v960 = vunpack.c.l.b16 %v894
    %v961 = vunpack.c.l.b16 %v895
    %v962 = vunpack.c.l.b16 %v896
    %v963 = vunpack.c.l.b16 %v897
    %v964 = vunpack.c.l.b16 %v898
    %v965 = vunpack.c.l.b16 %v899
    %v966 = vunpack.c.l.b16 %v900
    %v967 = vunpack.c.l.b16 %v901
    %v968 = vunpack.c.l.b16 %v902
    %v969 = vunpack.c.l.b16 %v903
    %v970 = vunpack.c.l.b16 %v904
    %v971 = vunpack.c.l.b16 %v905
    %v972 = vunpack.c.l.b16 %v906
    %v973 = vunpack.c.l.b16 %v907
    %v974 = vunpack.c.l.b16 %v908
    %v975 = vunpack.c.l.b16 %v909
    %v976 = vunpack.c.l.b16 %v910
    %v977 = vunpack.c.l.b16 %v911
    %v978 = vunpack.c.l.b16 %v912
    %v979 = vunpack.c.l.b16 %v913
    %v980 = vpack.c.b16 %v949, %v948
    %v981 = vpack.c.b16 %v951, %v950
    %v982 = vpack.c.b16 %v953, %v952
    %v983 = vpack.c.b16 %v955, %v954
    %v984 = vpack.c.b16 %v957, %v956
    %v985 = vpack.c.b16 %v959, %v958
    %v986 = vpack.c.b16 %v961, %v960
    %v987 = vpack.c.b16 %v963, %v962
    %v988 = vpack.c.b16 %v965, %v964
    %v989 = vpack.c.b16 %v967, %v966
    %v990 = vpack.c.b16 %v969, %v968
    %v991 = vpack.c.b16 %v971, %v970
    %v992 = vpack.c.b16 %v973, %v972
    %v993 = vpack.c.b16 %v975, %v974
    %v994 = vpack.c.b16 %v977, %v976
    %v995 = vpack.c.b16 %v979, %v978
    %1012 = vmatprep.subr.bf16.mxu0 0
    %1013 = vmatpush1.bf16.msra.mxu0 %v980
    %1014 = vmatprep.subr.bf16.mxu0 0
    %1015 = vmatpush1.bf16.msra.mxu0 %v981
    %1016 = vmatprep.subr.bf16.mxu0 0
    %1017 = vmatpush1.bf16.msra.mxu0 %v982
    %1018 = vmatprep.subr.bf16.mxu0 0
    %1019 = vmatpush1.bf16.msra.mxu0 %v983
    %1020 = vmatprep.subr.bf16.mxu0 0
    %1021 = vmatpush1.bf16.msra.mxu0 %v984
    %1022 = vmatprep.subr.bf16.mxu0 0
    %1023 = vmatpush1.bf16.msra.mxu0 %v985
    %1024 = vmatprep.subr.bf16.mxu0 0
    %1025 = vmatpush1.bf16.msra.mxu0 %v986
    %1026 = vmatprep.subr.bf16.mxu0 0
    %1027 = vmatpush1.bf16.msra.mxu0 %v987
    %1028 = vmatprep.subr.bf16.mxu0 0
    %1029 = vmatpush1.bf16.msra.mxu0 %v988
    %1030 = vmatprep.subr.bf16.mxu0 0
    %1031 = vmatpush1.bf16.msra.mxu0 %v989
    %1032 = vmatprep.subr.bf16.mxu0 0
    %1033 = vmatpush1.bf16.msra.mxu0 %v990
    %1034 = vmatprep.subr.bf16.mxu0 0
    %1035 = vmatpush1.bf16.msra.mxu0 %v991
    %1036 = vmatprep.subr.bf16.mxu0 0
    %1037 = vmatpush1.bf16.msra.mxu0 %v992
    %1038 = vmatprep.subr.bf16.mxu0 0
    %1039 = vmatpush1.bf16.msra.mxu0 %v993
    %1040 = vmatprep.subr.bf16.mxu0 0
    %1041 = vmatpush1.bf16.msra.mxu0 %v994
    %1042 = vmatprep.subr.bf16.mxu0 0
    %1043 = vmatpush1.bf16.msra.mxu0 %v995
    %1044 = vmatprep.mubr.bf16.mxu0 %v915
    %1045 = vmatmul.mubr.bf16.gmra.mrb[0].mxu0 %v914
    %v1046 = vpop.f32.mrb[0].mxu0
    %v1047 = vadd.f32 0.0, %v1046
    %v1048 = vpop.f32.mrb[0].mxu0
    %v1049 = vpop.f32.mrb[0].mxu0
    %v1050 = vadd.f32 0.0, %v1049
    %v1051 = vpop.f32.mrb[0].mxu0
    %1052 = vdwg.mxu0
    %v1053 = vld [vmem:[#allocation14] sm:$0xf]
    %v1054 = vld [vmem:[#allocation14 + $0x4] sm:$0xf]
    %v1055 = vld [vmem:[#allocation14 + $0x8] sm:$0xf]
    %v1056 = vld [vmem:[#allocation14 + $0xc] sm:$0xf]
    %v1057 = vld [vmem:[#allocation14 + $0x10] sm:$0xf]
    %v1058 = vld [vmem:[#allocation14 + $0x14] sm:$0xf]
    %v1059 = vld [vmem:[#allocation14 + $0x18] sm:$0xf]
    %v1060 = vld [vmem:[#allocation14 + $0x1c] sm:$0xf]
    %v1061 = vld [vmem:[#allocation14 + $0x20] sm:$0xf]
    %v1062 = vld [vmem:[#allocation14 + $0x24] sm:$0xf]
    %v1063 = vld [vmem:[#allocation14 + $0x28] sm:$0xf]
    %v1064 = vld [vmem:[#allocation14 + $0x2c] sm:$0xf]
    %v1065 = vld [vmem:[#allocation14 + $0x30] sm:$0xf]
    %v1066 = vld [vmem:[#allocation14 + $0x34] sm:$0xf]
    %v1067 = vld [vmem:[#allocation14 + $0x38] sm:$0xf]
    %v1068 = vld [vmem:[#allocation14 + $0x3c] sm:$0xf]
    %v1069 = vld [vmem:[#allocation14 + $0x40] sm:$0xf]
    %v1070 = vld [vmem:[#allocation14 + $0x44] sm:$0xf]
    %v1071 = vld [vmem:[#allocation14 + $0x48] sm:$0xf]
    %v1072 = vld [vmem:[#allocation14 + $0x4c] sm:$0xf]
    %v1073 = vld [vmem:[#allocation14 + $0x50] sm:$0xf]
    %v1074 = vld [vmem:[#allocation14 + $0x54] sm:$0xf]
    %v1075 = vld [vmem:[#allocation14 + $0x58] sm:$0xf]
    %v1076 = vld [vmem:[#allocation14 + $0x5c] sm:$0xf]
    %v1077 = vld [vmem:[#allocation14 + $0x60] sm:$0xf]
    %v1078 = vld [vmem:[#allocation14 + $0x64] sm:$0xf]
    %v1079 = vld [vmem:[#allocation14 + $0x68] sm:$0xf]
    %v1080 = vld [vmem:[#allocation14 + $0x6c] sm:$0xf]
    %v1081 = vld [vmem:[#allocation14 + $0x70] sm:$0xf]
    %v1082 = vld [vmem:[#allocation14 + $0x74] sm:$0xf]
    %v1083 = vld [vmem:[#allocation14 + $0x78] sm:$0xf]
    %v1084 = vld [vmem:[#allocation14 + $0x7c] sm:$0xf]
    %v1117 = vunpack.c.l.b16 %v1053
    %v1118 = vunpack.c.l.b16 %v1054
    %v1119 = vunpack.c.l.b16 %v1055
    %v1120 = vunpack.c.l.b16 %v1056
    %v1121 = vunpack.c.l.b16 %v1057
    %v1122 = vunpack.c.l.b16 %v1058
    %v1123 = vunpack.c.l.b16 %v1059
    %v1124 = vunpack.c.l.b16 %v1060
    %v1125 = vunpack.c.l.b16 %v1061
    %v1126 = vunpack.c.l.b16 %v1062
    %v1127 = vunpack.c.l.b16 %v1063
    %v1128 = vunpack.c.l.b16 %v1064
    %v1129 = vunpack.c.l.b16 %v1065
    %v1130 = vunpack.c.l.b16 %v1066
    %v1131 = vunpack.c.l.b16 %v1067
    %v1132 = vunpack.c.l.b16 %v1068
    %v1133 = vunpack.c.l.b16 %v1069
    %v1134 = vunpack.c.l.b16 %v1070
    %v1135 = vunpack.c.l.b16 %v1071
    %v1136 = vunpack.c.l.b16 %v1072
    %v1137 = vunpack.c.l.b16 %v1073
    %v1138 = vunpack.c.l.b16 %v1074
    %v1139 = vunpack.c.l.b16 %v1075
    %v1140 = vunpack.c.l.b16 %v1076
    %v1141 = vunpack.c.l.b16 %v1077
    %v1142 = vunpack.c.l.b16 %v1078
    %v1143 = vunpack.c.l.b16 %v1079
    %v1144 = vunpack.c.l.b16 %v1080
    %v1145 = vunpack.c.l.b16 %v1081
    %v1146 = vunpack.c.l.b16 %v1082
    %v1147 = vunpack.c.l.b16 %v1083
    %v1148 = vunpack.c.l.b16 %v1084
    %v1149 = vpack.c.b16 %v1118, %v1117
    %v1150 = vpack.c.b16 %v1120, %v1119
    %v1151 = vpack.c.b16 %v1122, %v1121
    %v1152 = vpack.c.b16 %v1124, %v1123
    %v1153 = vpack.c.b16 %v1126, %v1125
    %v1154 = vpack.c.b16 %v1128, %v1127
    %v1155 = vpack.c.b16 %v1130, %v1129
    %v1156 = vpack.c.b16 %v1132, %v1131
    %v1157 = vpack.c.b16 %v1134, %v1133
    %v1158 = vpack.c.b16 %v1136, %v1135
    %v1159 = vpack.c.b16 %v1138, %v1137
    %v1160 = vpack.c.b16 %v1140, %v1139
    %v1161 = vpack.c.b16 %v1142, %v1141
    %v1162 = vpack.c.b16 %v1144, %v1143
    %v1163 = vpack.c.b16 %v1146, %v1145
    %v1164 = vpack.c.b16 %v1148, %v1147
    %1181 = vmatprep.subr.bf16.mxu0 0
    %1182 = vmatpush1.bf16.msra.mxu0 %v1149
    %1183 = vmatprep.subr.bf16.mxu0 0
    %1184 = vmatpush1.bf16.msra.mxu0 %v1150
    %1185 = vmatprep.subr.bf16.mxu0 0
    %1186 = vmatpush1.bf16.msra.mxu0 %v1151
    %1187 = vmatprep.subr.bf16.mxu0 0
    %1188 = vmatpush1.bf16.msra.mxu0 %v1152
    %1189 = vmatprep.subr.bf16.mxu0 0
    %1190 = vmatpush1.bf16.msra.mxu0 %v1153
    %1191 = vmatprep.subr.bf16.mxu0 0
    %1192 = vmatpush1.bf16.msra.mxu0 %v1154
    %1193 = vmatprep.subr.bf16.mxu0 0
    %1194 = vmatpush1.bf16.msra.mxu0 %v1155
    %1195 = vmatprep.subr.bf16.mxu0 0
    %1196 = vmatpush1.bf16.msra.mxu0 %v1156
    %1197 = vmatprep.subr.bf16.mxu0 0
    %1198 = vmatpush1.bf16.msra.mxu0 %v1157
    %1199 = vmatprep.subr.bf16.mxu0 0
    %1200 = vmatpush1.bf16.msra.mxu0 %v1158
    %1201 = vmatprep.subr.bf16.mxu0 0
    %1202 = vmatpush1.bf16.msra.mxu0 %v1159
    %1203 = vmatprep.subr.bf16.mxu0 0
    %1204 = vmatpush1.bf16.msra.mxu0 %v1160
    %1205 = vmatprep.subr.bf16.mxu0 0
    %1206 = vmatpush1.bf16.msra.mxu0 %v1161
    %1207 = vmatprep.subr.bf16.mxu0 0
    %1208 = vmatpush1.bf16.msra.mxu0 %v1162
    %1209 = vmatprep.subr.bf16.mxu0 0
    %1210 = vmatpush1.bf16.msra.mxu0 %v1163
    %1211 = vmatprep.subr.bf16.mxu0 0
    %1212 = vmatpush1.bf16.msra.mxu0 %v1164
    %1213 = vmatprep.mubr.bf16.mxu0 %v915
    %1214 = vmatmul.mubr.bf16.gmra.mrb[0].mxu0 %v914
    %v1215 = vpop.f32.mrb[0].mxu0
    %v1216 = vadd.f32 0.0, %v1215
    %v1217 = vpop.f32.mrb[0].mxu0
    %v1218 = vpop.f32.mrb[0].mxu0
    %v1219 = vadd.f32 0.0, %v1218
    %v1220 = vpop.f32.mrb[0].mxu0
    %1221 = vdwg.mxu0
    %v1222 = vmax.f32 %v1047, %v1216
    %v1223 = vmax.f32 %v1050, %v1219
    %v1224 = vld [vmem:[#allocation16] sm:$0xf]
    %v1225 = vld [vmem:[#allocation16 + $0x4] sm:$0xf]
    %v1226 = vpack.c.bf16 %v1223, %v1222
    %v1229 = vunpack.c.l.b16 %v1224
    %v1230 = vunpack.c.l.b16 %v1225
    %v1231 = vpack.c.b16 %v1230, %v1229
    %v1233 = vsel %vm641, %v1231, 0
    %1235 = vmatprep.subr.bf16.mxu0 0
    %1236 = vmatpush1.bf16.msra.mxu0 %v1226
    %1237 = vmatprep.subr.bf16.mxu0 0
    %1238 = vmatpush1.bf16.msra.mxu0 0
    %1239 = vmatprep.subr.bf16.mxu0 0
    %1240 = vmatpush1.bf16.msra.mxu0 0
    %1241 = vmatprep.subr.bf16.mxu0 0
    %1242 = vmatpush1.bf16.msra.mxu0 0
    %1243 = vmatprep.subr.bf16.mxu0 0
    %1244 = vmatpush1.bf16.msra.mxu0 0
    %1245 = vmatprep.subr.bf16.mxu0 0
    %1246 = vmatpush1.bf16.msra.mxu0 0
    %1247 = vmatprep.subr.bf16.mxu0 0
    %1248 = vmatpush1.bf16.msra.mxu0 0
    %1249 = vmatprep.subr.bf16.mxu0 0
    %1250 = vmatpush1.bf16.msra.mxu0 0
    %1251 = vmatprep.subr.bf16.mxu0 0
    %1252 = vmatpush1.bf16.msra.mxu0 0
    %1253 = vmatprep.subr.bf16.mxu0 0
    %1254 = vmatpush1.bf16.msra.mxu0 0
    %1255 = vmatprep.subr.bf16.mxu0 0
    %1256 = vmatpush1.bf16.msra.mxu0 0
    %1257 = vmatprep.subr.bf16.mxu0 0
    %1258 = vmatpush1.bf16.msra.mxu0 0
    %1259 = vmatprep.subr.bf16.mxu0 0
    %1260 = vmatpush1.bf16.msra.mxu0 0
    %1261 = vmatprep.subr.bf16.mxu0 0
    %1262 = vmatpush1.bf16.msra.mxu0 0
    %1263 = vmatprep.subr.bf16.mxu0 0
    %1264 = vmatpush1.bf16.msra.mxu0 0
    %1265 = vmatprep.subr.bf16.mxu0 0
    %1266 = vmatpush1.bf16.msra.mxu0 0
    %1267 = vmatprep.mubr.bf16.mxu0 0
    %1268 = vmatmul.mubr.bf16.gmra.mrb[0].mxu0 %v1233
    %v1269 = vpop.f32.mrb[0].mxu0
    %v1270 = vadd.f32 0.0, %v1269
    %v1271 = vpop.f32.mrb[0].mxu0
    %v1272 = vpop.f32.mrb[0].mxu0
    %v1273 = vadd.f32 0.0, %v1272
    %v1274 = vpop.f32.mrb[0].mxu0
    %1275 = vdwg.mxu0
    %v1276 = vld [vmem:[#allocation17] sm:$0xf]
    %v1277 = vld [vmem:[#allocation17 + $0x4] sm:$0xf]
    %v1280 = vunpack.c.l.b16 %v1276
    %v1281 = vunpack.c.l.b16 %v1277
    %v1282 = vpack.c.b16 %v1281, %v1280
    %v1284 = vsel %vm641, %v1282, 0
    %1286 = vmatprep.subr.bf16.mxu0 0
    %1287 = vmatpush1.bf16.msra.mxu0 %v1226
    %1288 = vmatprep.subr.bf16.mxu0 0
    %1289 = vmatpush1.bf16.msra.mxu0 0
    %1290 = vmatprep.subr.bf16.mxu0 0
    %1291 = vmatpush1.bf16.msra.mxu0 0
    %1292 = vmatprep.subr.bf16.mxu0 0
    %1293 = vmatpush1.bf16.msra.mxu0 0
    %1294 = vmatprep.subr.bf16.mxu0 0
    %1295 = vmatpush1.bf16.msra.mxu0 0
    %1296 = vmatprep.subr.bf16.mxu0 0
    %1297 = vmatpush1.bf16.msra.mxu0 0
    %1298 = vmatprep.subr.bf16.mxu0 0
    %1299 = vmatpush1.bf16.msra.mxu0 0
    %1300 = vmatprep.subr.bf16.mxu0 0
    %1301 = vmatpush1.bf16.msra.mxu0 0
    %1302 = vmatprep.subr.bf16.mxu0 0
    %1303 = vmatpush1.bf16.msra.mxu0 0
    %1304 = vmatprep.subr.bf16.mxu0 0
    %1305 = vmatpush1.bf16.msra.mxu0 0
    %1306 = vmatprep.subr.bf16.mxu0 0
    %1307 = vmatpush1.bf16.msra.mxu0 0
    %1308 = vmatprep.subr.bf16.mxu0 0
    %1309 = vmatpush1.bf16.msra.mxu0 0
    %1310 = vmatprep.subr.bf16.mxu0 0
    %1311 = vmatpush1.bf16.msra.mxu0 0
    %1312 = vmatprep.subr.bf16.mxu0 0
    %1313 = vmatpush1.bf16.msra.mxu0 0
    %1314 = vmatprep.subr.bf16.mxu0 0
    %1315 = vmatpush1.bf16.msra.mxu0 0
    %1316 = vmatprep.subr.bf16.mxu0 0
    %1317 = vmatpush1.bf16.msra.mxu0 0
    %1318 = vmatprep.mubr.bf16.mxu0 0
    %1319 = vmatmul.mubr.bf16.gmra.mrb[0].mxu0 %v1284
    %v1320 = vpop.f32.mrb[0].mxu0
    %v1321 = vadd.f32 0.0, %v1320
    %v1322 = vpop.f32.mrb[0].mxu0
    %v1323 = vpop.f32.mrb[0].mxu0
    %v1324 = vadd.f32 0.0, %v1323
    %v1325 = vpop.f32.mrb[0].mxu0
    %1326 = vdwg.mxu0
    %v1327 = vld [vmem:[%s25] sm:$0xff]
    %v1328 = vld [vmem:[%s25 + $0x8] sm:$0xff]
    %v1329 = vld [vmem:[%s25 + $0x10] sm:$0xff]
    %v1330 = vld [vmem:[%s25 + $0x18] sm:$0xff]
    %v1331 = vld [vmem:[%s25 + $0x20] sm:$0xff]
    %v1332 = vld [vmem:[%s25 + $0x28] sm:$0xff]
    %v1333 = vld [vmem:[%s25 + $0x30] sm:$0xff]
    %v1334 = vld [vmem:[%s25 + $0x38] sm:$0xff]
    %v1335 = vld [vmem:[%s25 + $0x40] sm:$0xff]
    %v1336 = vld [vmem:[%s25 + $0x48] sm:$0xff]
    %v1337 = vld [vmem:[%s25 + $0x50] sm:$0xff]
    %v1338 = vld [vmem:[%s25 + $0x58] sm:$0xff]
    %v1339 = vld [vmem:[%s25 + $0x60] sm:$0xff]
    %v1340 = vld [vmem:[%s25 + $0x68] sm:$0xff]
    %v1341 = vld [vmem:[%s25 + $0x70] sm:$0xff]
    %v1342 = vld [vmem:[%s25 + $0x78] sm:$0xff]
    %v1343 = vld [vmem:[%s25 + $0x80] sm:$0xff]
    %v1344 = vld [vmem:[%s25 + $0x88] sm:$0xff]
    %v1345 = vld [vmem:[%s25 + $0x90] sm:$0xff]
    %v1346 = vld [vmem:[%s25 + $0x98] sm:$0xff]
    %v1347 = vld [vmem:[%s25 + $0xa0] sm:$0xff]
    %v1348 = vld [vmem:[%s25 + $0xa8] sm:$0xff]
    %v1349 = vld [vmem:[%s25 + $0xb0] sm:$0xff]
    %v1350 = vld [vmem:[%s25 + $0xb8] sm:$0xff]
    %v1351 = vld [vmem:[%s25 + $0xc0] sm:$0xff]
    %v1352 = vld [vmem:[%s25 + $0xc8] sm:$0xff]
    %v1353 = vld [vmem:[%s25 + $0xd0] sm:$0xff]
    %v1354 = vld [vmem:[%s25 + $0xd8] sm:$0xff]
    %v1355 = vld [vmem:[%s25 + $0xe0] sm:$0xff]
    %v1356 = vld [vmem:[%s25 + $0xe8] sm:$0xff]
    %v1357 = vld [vmem:[%s25 + $0xf0] sm:$0xff]
    %v1358 = vld [vmem:[%s25 + $0xf8] sm:$0xff]
    %v1359 = vld [vmem:[%s25 + $0x100] sm:$0xff]
    %v1360 = vld [vmem:[%s25 + $0x108] sm:$0xff]
    %v1361 = vld [vmem:[%s25 + $0x110] sm:$0xff]
    %v1362 = vld [vmem:[%s25 + $0x118] sm:$0xff]
    %v1363 = vld [vmem:[%s25 + $0x120] sm:$0xff]
    %v1364 = vld [vmem:[%s25 + $0x128] sm:$0xff]
    %v1365 = vld [vmem:[%s25 + $0x130] sm:$0xff]
    %v1366 = vld [vmem:[%s25 + $0x138] sm:$0xff]
    %v1367 = vld [vmem:[%s25 + $0x140] sm:$0xff]
    %v1368 = vld [vmem:[%s25 + $0x148] sm:$0xff]
    %v1369 = vld [vmem:[%s25 + $0x150] sm:$0xff]
    %v1370 = vld [vmem:[%s25 + $0x158] sm:$0xff]
    %v1371 = vld [vmem:[%s25 + $0x160] sm:$0xff]
    %v1372 = vld [vmem:[%s25 + $0x168] sm:$0xff]
    %v1373 = vld [vmem:[%s25 + $0x170] sm:$0xff]
    %v1374 = vld [vmem:[%s25 + $0x178] sm:$0xff]
    %v1375 = vpack.c.bf16 %v1273, %v1270
    %v1376 = vpack.c.bf16 %v1324, %v1321
    %v1377 = vld [vmem:[#allocation19] sm:$0x3]
    %v1379 = vlaneseq
    %v1380 = vshrl.u32 %v1379, 7
    %v1381 = vsub.s32 0, %v1380
    %v1382 = vrot.slane %v1377, %v1381
    %v1383 = vlaneseq
    %v1384 = vshrl.u32 %v1383, 7
    %v1385 = vsub.s32 1, %v1384
    %v1386 = vrot.slane %v1377, %v1385
    %v1437 = vunpack.c.l.b16 %v1327
    %v1438 = vunpack.c.h.b16 %v1327
    %v1439 = vunpack.c.l.b16 %v1328
    %v1440 = vunpack.c.h.b16 %v1328
    %v1441 = vunpack.c.l.b16 %v1329
    %v1442 = vunpack.c.h.b16 %v1329
    %v1443 = vunpack.c.l.b16 %v1330
    %v1444 = vunpack.c.h.b16 %v1330
    %v1445 = vunpack.c.l.b16 %v1331
    %v1446 = vunpack.c.h.b16 %v1331
    %v1447 = vunpack.c.l.b16 %v1332
    %v1448 = vunpack.c.h.b16 %v1332
    %v1449 = vunpack.c.l.b16 %v1333
    %v1450 = vunpack.c.h.b16 %v1333
    %v1451 = vunpack.c.l.b16 %v1334
    %v1452 = vunpack.c.h.b16 %v1334
    %v1453 = vunpack.c.l.b16 %v1335
    %v1454 = vunpack.c.h.b16 %v1335
    %v1455 = vunpack.c.l.b16 %v1336
    %v1456 = vunpack.c.h.b16 %v1336
    %v1457 = vunpack.c.l.b16 %v1337
    %v1458 = vunpack.c.h.b16 %v1337
    %v1459 = vunpack.c.l.b16 %v1338
    %v1460 = vunpack.c.h.b16 %v1338
    %v1461 = vunpack.c.l.b16 %v1339
    %v1462 = vunpack.c.h.b16 %v1339
    %v1463 = vunpack.c.l.b16 %v1340
    %v1464 = vunpack.c.h.b16 %v1340
    %v1465 = vunpack.c.l.b16 %v1341
    %v1466 = vunpack.c.h.b16 %v1341
    %v1467 = vunpack.c.l.b16 %v1342
    %v1468 = vunpack.c.h.b16 %v1342
    %v1469 = vunpack.c.l.b16 %v1343
    %v1470 = vunpack.c.h.b16 %v1343
    %v1471 = vunpack.c.l.b16 %v1344
    %v1472 = vunpack.c.h.b16 %v1344
    %v1473 = vunpack.c.l.b16 %v1345
    %v1474 = vunpack.c.h.b16 %v1345
    %v1475 = vunpack.c.l.b16 %v1346
    %v1476 = vunpack.c.h.b16 %v1346
    %v1477 = vunpack.c.l.b16 %v1347
    %v1478 = vunpack.c.h.b16 %v1347
    %v1479 = vunpack.c.l.b16 %v1348
    %v1480 = vunpack.c.h.b16 %v1348
    %v1481 = vunpack.c.l.b16 %v1349
    %v1482 = vunpack.c.h.b16 %v1349
    %v1483 = vunpack.c.l.b16 %v1350
    %v1484 = vunpack.c.h.b16 %v1350
    %v1485 = vunpack.c.l.b16 %v1351
    %v1486 = vunpack.c.h.b16 %v1351
    %v1487 = vunpack.c.l.b16 %v1352
    %v1488 = vunpack.c.h.b16 %v1352
    %v1489 = vunpack.c.l.b16 %v1353
    %v1490 = vunpack.c.h.b16 %v1353
    %v1491 = vunpack.c.l.b16 %v1354
    %v1492 = vunpack.c.h.b16 %v1354
    %v1493 = vunpack.c.l.b16 %v1355
    %v1494 = vunpack.c.h.b16 %v1355
    %v1495 = vunpack.c.l.b16 %v1356
    %v1496 = vunpack.c.h.b16 %v1356
    %v1497 = vunpack.c.l.b16 %v1357
    %v1498 = vunpack.c.h.b16 %v1357
    %v1499 = vunpack.c.l.b16 %v1358
    %v1500 = vunpack.c.h.b16 %v1358
    %v1501 = vunpack.c.l.b16 %v1359
    %v1502 = vunpack.c.h.b16 %v1359
    %v1503 = vunpack.c.l.b16 %v1360
    %v1504 = vunpack.c.h.b16 %v1360
    %v1505 = vunpack.c.l.b16 %v1361
    %v1506 = vunpack.c.h.b16 %v1361
    %v1507 = vunpack.c.l.b16 %v1362
    %v1508 = vunpack.c.h.b16 %v1362
    %v1509 = vunpack.c.l.b16 %v1363
    %v1510 = vunpack.c.h.b16 %v1363
    %v1511 = vunpack.c.l.b16 %v1364
    %v1512 = vunpack.c.h.b16 %v1364
    %v1513 = vunpack.c.l.b16 %v1365
    %v1514 = vunpack.c.h.b16 %v1365
    %v1515 = vunpack.c.l.b16 %v1366
    %v1516 = vunpack.c.h.b16 %v1366
    %v1517 = vunpack.c.l.b16 %v1367
    %v1518 = vunpack.c.h.b16 %v1367
    %v1519 = vunpack.c.l.b16 %v1368
    %v1520 = vunpack.c.h.b16 %v1368
    %v1521 = vunpack.c.l.b16 %v1369
    %v1522 = vunpack.c.h.b16 %v1369
    %v1523 = vunpack.c.l.b16 %v1370
    %v1524 = vunpack.c.h.b16 %v1370
    %v1525 = vunpack.c.l.b16 %v1371
    %v1526 = vunpack.c.h.b16 %v1371
    %v1527 = vunpack.c.l.b16 %v1372
    %v1528 = vunpack.c.h.b16 %v1372
    %v1529 = vunpack.c.l.b16 %v1373
    %v1530 = vunpack.c.h.b16 %v1373
    %v1531 = vunpack.c.l.b16 %v1374
    %v1532 = vunpack.c.h.b16 %v1374
    %v1533 = vpack.c.b16 %v1439, %v1437
    %v1534 = vpack.c.b16 %v1440, %v1438
    %v1535 = vpack.c.b16 %v1443, %v1441
    %v1536 = vpack.c.b16 %v1444, %v1442
    %v1537 = vpack.c.b16 %v1447, %v1445
    %v1538 = vpack.c.b16 %v1448, %v1446
    %v1539 = vpack.c.b16 %v1451, %v1449
    %v1540 = vpack.c.b16 %v1452, %v1450
    %v1541 = vpack.c.b16 %v1455, %v1453
    %v1542 = vpack.c.b16 %v1456, %v1454
    %v1543 = vpack.c.b16 %v1459, %v1457
    %v1544 = vpack.c.b16 %v1460, %v1458
    %v1545 = vpack.c.b16 %v1463, %v1461
    %v1546 = vpack.c.b16 %v1464, %v1462
    %v1547 = vpack.c.b16 %v1467, %v1465
    %v1548 = vpack.c.b16 %v1468, %v1466
    %v1549 = vpack.c.b16 %v1471, %v1469
    %v1550 = vpack.c.b16 %v1472, %v1470
    %v1551 = vpack.c.b16 %v1475, %v1473
    %v1552 = vpack.c.b16 %v1476, %v1474
    %v1553 = vpack.c.b16 %v1479, %v1477
    %v1554 = vpack.c.b16 %v1480, %v1478
    %v1555 = vpack.c.b16 %v1483, %v1481
    %v1556 = vpack.c.b16 %v1484, %v1482
    %v1557 = vpack.c.b16 %v1487, %v1485
    %v1558 = vpack.c.b16 %v1488, %v1486
    %v1559 = vpack.c.b16 %v1491, %v1489
    %v1560 = vpack.c.b16 %v1492, %v1490
    %v1561 = vpack.c.b16 %v1495, %v1493
    %v1562 = vpack.c.b16 %v1496, %v1494
    %v1563 = vpack.c.b16 %v1499, %v1497
    %v1564 = vpack.c.b16 %v1500, %v1498
    %v1565 = vpack.c.b16 %v1503, %v1501
    %v1566 = vpack.c.b16 %v1504, %v1502
    %v1567 = vpack.c.b16 %v1507, %v1505
    %v1568 = vpack.c.b16 %v1508, %v1506
    %v1569 = vpack.c.b16 %v1511, %v1509
    %v1570 = vpack.c.b16 %v1512, %v1510
    %v1571 = vpack.c.b16 %v1515, %v1513
    %v1572 = vpack.c.b16 %v1516, %v1514
    %v1573 = vpack.c.b16 %v1519, %v1517
    %v1574 = vpack.c.b16 %v1520, %v1518
    %v1575 = vpack.c.b16 %v1523, %v1521
    %v1576 = vpack.c.b16 %v1524, %v1522
    %v1577 = vpack.c.b16 %v1527, %v1525
    %v1578 = vpack.c.b16 %v1528, %v1526
    %v1579 = vpack.c.b16 %v1531, %v1529
    %v1580 = vpack.c.b16 %v1532, %v1530
    %1629 = vmatprep.subr.bf16.mxu0 %v1534
    %1630 = vmatpush1.bf16.msra.mxu0 %v1533
    %1631 = vmatprep.subr.bf16.mxu0 %v1536
    %1632 = vmatpush1.bf16.msra.mxu0 %v1535
    %1633 = vmatprep.subr.bf16.mxu0 %v1538
    %1634 = vmatpush1.bf16.msra.mxu0 %v1537
    %1635 = vmatprep.subr.bf16.mxu0 %v1540
    %1636 = vmatpush1.bf16.msra.mxu0 %v1539
    %1637 = vmatprep.subr.bf16.mxu0 %v1542
    %1638 = vmatpush1.bf16.msra.mxu0 %v1541
    %1639 = vmatprep.subr.bf16.mxu0 %v1544
    %1640 = vmatpush1.bf16.msra.mxu0 %v1543
    %1641 = vmatprep.subr.bf16.mxu0 %v1546
    %1642 = vmatpush1.bf16.msra.mxu0 %v1545
    %1643 = vmatprep.subr.bf16.mxu0 %v1548
    %1644 = vmatpush1.bf16.msra.mxu0 %v1547
    %1645 = vmatprep.subr.bf16.mxu0 %v1550
    %1646 = vmatpush1.bf16.msra.mxu0 %v1549
    %1647 = vmatprep.subr.bf16.mxu0 %v1552
    %1648 = vmatpush1.bf16.msra.mxu0 %v1551
    %1649 = vmatprep.subr.bf16.mxu0 %v1554
    %1650 = vmatpush1.bf16.msra.mxu0 %v1553
    %1651 = vmatprep.subr.bf16.mxu0 %v1556
    %1652 = vmatpush1.bf16.msra.mxu0 %v1555
    %1653 = vmatprep.subr.bf16.mxu0 %v1558
    %1654 = vmatpush1.bf16.msra.mxu0 %v1557
    %1655 = vmatprep.subr.bf16.mxu0 %v1560
    %1656 = vmatpush1.bf16.msra.mxu0 %v1559
    %1657 = vmatprep.subr.bf16.mxu0 %v1562
    %1658 = vmatpush1.bf16.msra.mxu0 %v1561
    %1659 = vmatprep.subr.bf16.mxu0 %v1564
    %1660 = vmatpush1.bf16.msra.mxu0 %v1563
    %1661 = vmatprep.mubr.bf16.mxu0 %v1226
    %1662 = vmatmul.mubr.bf16.gmra.mrb[0].mxu0 %v1375
    %v1663 = vpop.f32.mrb[0].mxu0
    %v1664 = vadd.f32 %v1382, %v1663
    %v1665 = vpop.f32.mrb[0].mxu0
    %v1666 = vadd.f32 %v1386, %v1665
    %v1667 = vpop.f32.mrb[0].mxu0
    %v1668 = vadd.f32 %v1382, %v1667
    %v1669 = vpop.f32.mrb[0].mxu0
    %v1670 = vadd.f32 %v1386, %v1669
    %1671 = vdwg.mxu0
    %1672 = vmatprep.subr.bf16.mxu0 %v1566
    %1673 = vmatpush1.bf16.msra.mxu0 %v1565
    %1674 = vmatprep.subr.bf16.mxu0 %v1568
    %1675 = vmatpush1.bf16.msra.mxu0 %v1567
    %1676 = vmatprep.subr.bf16.mxu0 %v1570
    %1677 = vmatpush1.bf16.msra.mxu0 %v1569
    %1678 = vmatprep.subr.bf16.mxu0 %v1572
    %1679 = vmatpush1.bf16.msra.mxu0 %v1571
    %1680 = vmatprep.subr.bf16.mxu0 %v1574
    %1681 = vmatpush1.bf16.msra.mxu0 %v1573
    %1682 = vmatprep.subr.bf16.mxu0 %v1576
    %1683 = vmatpush1.bf16.msra.mxu0 %v1575
    %1684 = vmatprep.subr.bf16.mxu0 %v1578
    %1685 = vmatpush1.bf16.msra.mxu0 %v1577
    %1686 = vmatprep.subr.bf16.mxu0 %v1580
    %1687 = vmatpush1.bf16.msra.mxu0 %v1579
    %1688 = vmatprep.subr.bf16.mxu0 0
    %1689 = vmatpush1.bf16.msra.mxu0 0
    %1690 = vmatprep.subr.bf16.mxu0 0
    %1691 = vmatpush1.bf16.msra.mxu0 0
    %1692 = vmatprep.subr.bf16.mxu0 0
    %1693 = vmatpush1.bf16.msra.mxu0 0
    %1694 = vmatprep.subr.bf16.mxu0 0
    %1695 = vmatpush1.bf16.msra.mxu0 0
    %1696 = vmatprep.subr.bf16.mxu0 0
    %1697 = vmatpush1.bf16.msra.mxu0 0
    %1698 = vmatprep.subr.bf16.mxu0 0
    %1699 = vmatpush1.bf16.msra.mxu0 0
    %1700 = vmatprep.subr.bf16.mxu0 0
    %1701 = vmatpush1.bf16.msra.mxu0 0
    %1702 = vmatprep.subr.bf16.mxu0 0
    %1703 = vmatpush1.bf16.msra.mxu0 0
    %1704 = vmatprep.mubr.bf16.mxu0 0
    %1705 = vmatmul.mubr.bf16.gmra.mrb[0].mxu0 %v1376
    %v1706 = vpop.f32.mrb[0].mxu0
    %v1707 = vadd.f32 %v1664, %v1706
    %v1708 = vpop.f32.mrb[0].mxu0
    %v1709 = vadd.f32 %v1666, %v1708
    %v1710 = vpop.f32.mrb[0].mxu0
    %v1711 = vadd.f32 %v1668, %v1710
    %v1712 = vpop.f32.mrb[0].mxu0
    %v1713 = vadd.f32 %v1670, %v1712
    %1714 = vdwg.mxu0
    %v1715 = vmax.f32 %v1707, 0.0
    %v1716 = vmax.f32 %v1709, 0.0
    %v1717 = vmax.f32 %v1711, 0.0
    %v1718 = vmax.f32 %v1713, 0.0
    %v1719 = vld [vmem:[%s29] sm:$0xf]
    %v1720 = vld [vmem:[%s29 + $0x4] sm:$0xf]
    %v1721 = vld [vmem:[%s29 + $0x8] sm:$0xf]
    %v1722 = vld [vmem:[%s29 + $0xc] sm:$0xf]
    %v1723 = vpack.c.bf16 %v1717, %v1715
    %v1724 = vpack.c.bf16 %v1718, %v1716
    %v1729 = vunpack.c.l.b16 %v1719
    %v1730 = vunpack.c.l.b16 %v1720
    %v1731 = vunpack.c.l.b16 %v1721
    %v1732 = vunpack.c.l.b16 %v1722
    %v1733 = vpack.c.b16 %v1730, %v1729
    %v1734 = vpack.c.b16 %v1732, %v1731
    %v1736 = vsel %vm641, %v1733, 0
    %v1739 = vsel %vm641, %v1734, 0
    %1741 = vmatprep.subr.bf16.mxu0 %v1724
    %1742 = vmatpush1.bf16.msra.mxu0 %v1723
    %1743 = vmatprep.subr.bf16.mxu0 0
    %1744 = vmatpush1.bf16.msra.mxu0 0
    %1745 = vmatprep.subr.bf16.mxu0 0
    %1746 = vmatpush1.bf16.msra.mxu0 0
    %1747 = vmatprep.subr.bf16.mxu0 0
    %1748 = vmatpush1.bf16.msra.mxu0 0
    %1749 = vmatprep.subr.bf16.mxu0 0
    %1750 = vmatpush1.bf16.msra.mxu0 0
    %1751 = vmatprep.subr.bf16.mxu0 0
    %1752 = vmatpush1.bf16.msra.mxu0 0
    %1753 = vmatprep.subr.bf16.mxu0 0
    %1754 = vmatpush1.bf16.msra.mxu0 0
    %1755 = vmatprep.subr.bf16.mxu0 0
    %1756 = vmatpush1.bf16.msra.mxu0 0
    %1757 = vmatprep.subr.bf16.mxu0 0
    %1758 = vmatpush1.bf16.msra.mxu0 0
    %1759 = vmatprep.subr.bf16.mxu0 0
    %1760 = vmatpush1.bf16.msra.mxu0 0
    %1761 = vmatprep.subr.bf16.mxu0 0
    %1762 = vmatpush1.bf16.msra.mxu0 0
    %1763 = vmatprep.subr.bf16.mxu0 0
    %1764 = vmatpush1.bf16.msra.mxu0 0
    %1765 = vmatprep.subr.bf16.mxu0 0
    %1766 = vmatpush1.bf16.msra.mxu0 0
    %1767 = vmatprep.subr.bf16.mxu0 0
    %1768 = vmatpush1.bf16.msra.mxu0 0
    %1769 = vmatprep.subr.bf16.mxu0 0
    %1770 = vmatpush1.bf16.msra.mxu0 0
    %1771 = vmatprep.subr.bf16.mxu0 0
    %1772 = vmatpush1.bf16.msra.mxu0 0
    %1773 = vmatprep.mubr.bf16.mxu0 0
    %1774 = vmatmul.mubr.bf16.gmra.mrb[0].mxu0 %v1736
    %v1775 = vpop.f32.mrb[0].mxu0
    %v1776 = vadd.f32 0.0, %v1775
    %v1777 = vpop.f32.mrb[0].mxu0
    %v1778 = vadd.f32 0.0, %v1777
    %v1779 = vpop.f32.mrb[0].mxu0
    %v1780 = vadd.f32 0.0, %v1779
    %v1781 = vpop.f32.mrb[0].mxu0
    %v1782 = vadd.f32 0.0, %v1781
    %1783 = vmatprep.mubr.bf16.mxu0 0
    %1784 = vmatmul.mubr.bf16.gmra.mrb[0].mxu0 %v1739
    %v1785 = vpop.f32.mrb[0].mxu0
    %v1786 = vadd.f32 0.0, %v1785
    %v1787 = vpop.f32.mrb[0].mxu0
    %v1788 = vadd.f32 0.0, %v1787
    %v1789 = vpop.f32.mrb[0].mxu0
    %v1790 = vadd.f32 0.0, %v1789
    %v1791 = vpop.f32.mrb[0].mxu0
    %v1792 = vadd.f32 0.0, %v1791
    %1793 = vdwg.mxu0
    %v1794 = vld [vmem:[#allocation20] sm:$0xff]
    %v1795 = vld [vmem:[#allocation20 + $0x8] sm:$0xff]
    %v1796 = vld [vmem:[#allocation20 + $0x10] sm:$0xff]
    %v1797 = vld [vmem:[#allocation20 + $0x18] sm:$0xff]
    %v1798 = vld [vmem:[#allocation20 + $0x20] sm:$0xff]
    %v1799 = vld [vmem:[#allocation20 + $0x28] sm:$0xff]
    %v1800 = vld [vmem:[#allocation20 + $0x30] sm:$0xff]
    %v1801 = vld [vmem:[#allocation20 + $0x38] sm:$0xff]
    %v1802 = vmul.f32 %v1776, %v1794
    %v1803 = vmul.f32 %v1778, %v1795
    %v1804 = vmul.f32 %v1780, %v1796
    %v1805 = vmul.f32 %v1782, %v1797
    %v1806 = vmul.f32 %v1786, %v1798
    %v1807 = vmul.f32 %v1788, %v1799
    %v1808 = vmul.f32 %v1790, %v1800
    %v1809 = vmul.f32 %v1792, %v1801
    %v1810 = vld [vmem:[%s33] sm:$0xf]
    %v1811 = vld [vmem:[%s33 + $0x4] sm:$0xf]
    %v1812 = vld [vmem:[%s33 + $0x8] sm:$0xf]
    %v1813 = vld [vmem:[%s33 + $0xc] sm:$0xf]
    %v1814 = vld [vmem:[%s33 + $0x10] sm:$0xf]
    %v1815 = vld [vmem:[%s33 + $0x14] sm:$0xf]
    %v1816 = vld [vmem:[%s33 + $0x18] sm:$0xf]
    %v1817 = vld [vmem:[%s33 + $0x1c] sm:$0xf]
    %v1818 = vld [vmem:[%s33 + $0x20] sm:$0xf]
    %v1819 = vld [vmem:[%s33 + $0x24] sm:$0xf]
    %v1820 = vld [vmem:[%s33 + $0x28] sm:$0xf]
    %v1821 = vld [vmem:[%s33 + $0x2c] sm:$0xf]
    %v1822 = vld [vmem:[%s33 + $0x30] sm:$0xf]
    %v1823 = vld [vmem:[%s33 + $0x34] sm:$0xf]
    %v1824 = vld [vmem:[%s33 + $0x38] sm:$0xf]
    %v1825 = vld [vmem:[%s33 + $0x3c] sm:$0xf]
    %v1826 = vld [vmem:[%s33 + $0x40] sm:$0xf]
    %v1827 = vld [vmem:[%s33 + $0x44] sm:$0xf]
    %v1828 = vld [vmem:[%s33 + $0x48] sm:$0xf]
    %v1829 = vld [vmem:[%s33 + $0x4c] sm:$0xf]
    %v1830 = vld [vmem:[%s33 + $0x50] sm:$0xf]
    %v1831 = vld [vmem:[%s33 + $0x54] sm:$0xf]
    %v1832 = vld [vmem:[%s33 + $0x58] sm:$0xf]
    %v1833 = vld [vmem:[%s33 + $0x5c] sm:$0xf]
    %v1834 = vld [vmem:[%s33 + $0x60] sm:$0xf]
    %v1835 = vld [vmem:[%s33 + $0x64] sm:$0xf]
    %v1836 = vld [vmem:[%s33 + $0x68] sm:$0xf]
    %v1837 = vld [vmem:[%s33 + $0x6c] sm:$0xf]
    %v1838 = vld [vmem:[%s33 + $0x70] sm:$0xf]
    %v1839 = vld [vmem:[%s33 + $0x74] sm:$0xf]
    %v1840 = vld [vmem:[%s33 + $0x78] sm:$0xf]
    %v1841 = vld [vmem:[%s33 + $0x7c] sm:$0xf]
    %v1842 = vpack.c.bf16 %v1804, %v1802
    %v1843 = vpack.c.bf16 %v1805, %v1803
    %v1844 = vpack.c.bf16 %v1808, %v1806
    %v1845 = vpack.c.bf16 %v1809, %v1807
    %v1878 = vunpack.c.l.b16 %v1810
    %v1879 = vunpack.c.l.b16 %v1811
    %v1880 = vunpack.c.l.b16 %v1812
    %v1881 = vunpack.c.l.b16 %v1813
    %v1882 = vunpack.c.l.b16 %v1814
    %v1883 = vunpack.c.l.b16 %v1815
    %v1884 = vunpack.c.l.b16 %v1816
    %v1885 = vunpack.c.l.b16 %v1817
    %v1886 = vunpack.c.l.b16 %v1818
    %v1887 = vunpack.c.l.b16 %v1819
    %v1888 = vunpack.c.l.b16 %v1820
    %v1889 = vunpack.c.l.b16 %v1821
    %v1890 = vunpack.c.l.b16 %v1822
    %v1891 = vunpack.c.l.b16 %v1823
    %v1892 = vunpack.c.l.b16 %v1824
    %v1893 = vunpack.c.l.b16 %v1825
    %v1894 = vunpack.c.l.b16 %v1826
    %v1895 = vunpack.c.l.b16 %v1827
    %v1896 = vunpack.c.l.b16 %v1828
    %v1897 = vunpack.c.l.b16 %v1829
    %v1898 = vunpack.c.l.b16 %v1830
    %v1899 = vunpack.c.l.b16 %v1831
    %v1900 = vunpack.c.l.b16 %v1832
    %v1901 = vunpack.c.l.b16 %v1833
    %v1902 = vunpack.c.l.b16 %v1834
    %v1903 = vunpack.c.l.b16 %v1835
    %v1904 = vunpack.c.l.b16 %v1836
    %v1905 = vunpack.c.l.b16 %v1837
    %v1906 = vunpack.c.l.b16 %v1838
    %v1907 = vunpack.c.l.b16 %v1839
    %v1908 = vunpack.c.l.b16 %v1840
    %v1909 = vunpack.c.l.b16 %v1841
    %v1910 = vpack.c.b16 %v1879, %v1878
    %v1911 = vpack.c.b16 %v1881, %v1880
    %v1912 = vpack.c.b16 %v1883, %v1882
    %v1913 = vpack.c.b16 %v1885, %v1884
    %v1914 = vpack.c.b16 %v1887, %v1886
    %v1915 = vpack.c.b16 %v1889, %v1888
    %v1916 = vpack.c.b16 %v1891, %v1890
    %v1917 = vpack.c.b16 %v1893, %v1892
    %v1918 = vpack.c.b16 %v1895, %v1894
    %v1919 = vpack.c.b16 %v1897, %v1896
    %v1920 = vpack.c.b16 %v1899, %v1898
    %v1921 = vpack.c.b16 %v1901, %v1900
    %v1922 = vpack.c.b16 %v1903, %v1902
    %v1923 = vpack.c.b16 %v1905, %v1904
    %v1924 = vpack.c.b16 %v1907, %v1906
    %v1925 = vpack.c.b16 %v1909, %v1908
    %1942 = vmatprep.subr.bf16.mxu0 0
    %1943 = vmatpush1.bf16.msra.mxu0 %v1910
    %1944 = vmatprep.subr.bf16.mxu0 0
    %1945 = vmatpush1.bf16.msra.mxu0 %v1911
    %1946 = vmatprep.subr.bf16.mxu0 0
    %1947 = vmatpush1.bf16.msra.mxu0 %v1912
    %1948 = vmatprep.subr.bf16.mxu0 0
    %1949 = vmatpush1.bf16.msra.mxu0 %v1913
    %1950 = vmatprep.subr.bf16.mxu0 0
    %1951 = vmatpush1.bf16.msra.mxu0 %v1914
    %1952 = vmatprep.subr.bf16.mxu0 0
    %1953 = vmatpush1.bf16.msra.mxu0 %v1915
    %1954 = vmatprep.subr.bf16.mxu0 0
    %1955 = vmatpush1.bf16.msra.mxu0 %v1916
    %1956 = vmatprep.subr.bf16.mxu0 0
    %1957 = vmatpush1.bf16.msra.mxu0 %v1917
    %1958 = vmatprep.subr.bf16.mxu0 0
    %1959 = vmatpush1.bf16.msra.mxu0 %v1918
    %1960 = vmatprep.subr.bf16.mxu0 0
    %1961 = vmatpush1.bf16.msra.mxu0 %v1919
    %1962 = vmatprep.subr.bf16.mxu0 0
    %1963 = vmatpush1.bf16.msra.mxu0 %v1920
    %1964 = vmatprep.subr.bf16.mxu0 0
    %1965 = vmatpush1.bf16.msra.mxu0 %v1921
    %1966 = vmatprep.subr.bf16.mxu0 0
    %1967 = vmatpush1.bf16.msra.mxu0 %v1922
    %1968 = vmatprep.subr.bf16.mxu0 0
    %1969 = vmatpush1.bf16.msra.mxu0 %v1923
    %1970 = vmatprep.subr.bf16.mxu0 0
    %1971 = vmatpush1.bf16.msra.mxu0 %v1924
    %1972 = vmatprep.subr.bf16.mxu0 0
    %1973 = vmatpush1.bf16.msra.mxu0 %v1925
    %1974 = vmatprep.mubr.bf16.mxu0 %v1843
    %1975 = vmatmul.mubr.bf16.gmra.mrb[0].mxu0 %v1842
    %v1976 = vpop.f32.mrb[0].mxu0
    %v1977 = vadd.f32 0.0, %v1976
    %v1978 = vpop.f32.mrb[0].mxu0
    %v1979 = vpop.f32.mrb[0].mxu0
    %v1980 = vadd.f32 0.0, %v1979
    %v1981 = vpop.f32.mrb[0].mxu0
    %1982 = vmatprep.mubr.bf16.mxu0 %v1845
    %1983 = vmatmul.mubr.bf16.gmra.mrb[0].mxu0 %v1844
    %v1984 = vpop.f32.mrb[0].mxu0
    %v1985 = vadd.f32 0.0, %v1984
    %v1986 = vpop.f32.mrb[0].mxu0
    %v1987 = vpop.f32.mrb[0].mxu0
    %v1988 = vadd.f32 0.0, %v1987
    %v1989 = vpop.f32.mrb[0].mxu0
    %1990 = vdwg.mxu0
    %v1991 = vld [vmem:[#allocation22] sm:$0x1]
    %v1992 = vpack.c.bf16 %v1980, %v1977
    %v1993 = vpack.c.bf16 %v1988, %v1985
    %v1995 = vsel %vm484, %v1991, 0
    %1997 = vmatprep.subr.bf16.mxu0 0
    %1998 = vmatpush1.bf16.msra.mxu0 %v1992
    %1999 = vmatprep.subr.bf16.mxu0 0
    %2000 = vmatpush1.bf16.msra.mxu0 %v1993
    %2001 = vmatprep.subr.bf16.mxu0 0
    %2002 = vmatpush1.bf16.msra.mxu0 0
    %2003 = vmatprep.subr.bf16.mxu0 0
    %2004 = vmatpush1.bf16.msra.mxu0 0
    %2005 = vmatprep.subr.bf16.mxu0 0
    %2006 = vmatpush1.bf16.msra.mxu0 0
    %2007 = vmatprep.subr.bf16.mxu0 0
    %2008 = vmatpush1.bf16.msra.mxu0 0
    %2009 = vmatprep.subr.bf16.mxu0 0
    %2010 = vmatpush1.bf16.msra.mxu0 0
    %2011 = vmatprep.subr.bf16.mxu0 0
    %2012 = vmatpush1.bf16.msra.mxu0 0
    %2013 = vmatprep.subr.bf16.mxu0 0
    %2014 = vmatpush1.bf16.msra.mxu0 0
    %2015 = vmatprep.subr.bf16.mxu0 0
    %2016 = vmatpush1.bf16.msra.mxu0 0
    %2017 = vmatprep.subr.bf16.mxu0 0
    %2018 = vmatpush1.bf16.msra.mxu0 0
    %2019 = vmatprep.subr.bf16.mxu0 0
    %2020 = vmatpush1.bf16.msra.mxu0 0
    %2021 = vmatprep.subr.bf16.mxu0 0
    %2022 = vmatpush1.bf16.msra.mxu0 0
    %2023 = vmatprep.subr.bf16.mxu0 0
    %2024 = vmatpush1.bf16.msra.mxu0 0
    %2025 = vmatprep.subr.bf16.mxu0 0
    %2026 = vmatpush1.bf16.msra.mxu0 0
    %2027 = vmatprep.subr.bf16.mxu0 0
    %2028 = vmatpush1.bf16.msra.mxu0 0
    %2029 = vmatprep.mubr.bf16.mxu0 0
    %2030 = vmatmul.mubr.bf16.gmra.mrb[0].mxu0 %v1995
    %v2031 = vpop.f32.mrb[0].mxu0
    %v2032 = vadd.f32 0.0, %v2031
    %v2033 = vpop.f32.mrb[0].mxu0
    %v2034 = vpop.f32.mrb[0].mxu0
    %v2035 = vpop.f32.mrb[0].mxu0
    %2036 = vdwg.mxu0
    %v2037 = vsel %vm484, %v1977, -inf
    %v2038 = vsel %vm484, %v1980, -inf
    %v2039 = vmax.f32 %v2037, %v2038
    %v2040 = vrot.slane %v2039, 4
    %v2041 = vmax.f32 %v2039, %v2040
    %v2042 = vrot.slane %v2041, 2
    %v2043 = vmax.f32 %v2041, %v2042
    %v2044 = vrot.slane %v2043, 1
    %v2045 = vmax.f32 %v2043, %v2044
    %v2046 = vsel %vm484, %v1985, -inf
    %v2047 = vsel %vm484, %v1988, -inf
    %v2048 = vmax.f32 %v2046, %v2047
    %v2049 = vrot.slane %v2048, 4
    %v2050 = vmax.f32 %v2048, %v2049
    %v2051 = vrot.slane %v2050, 2
    %v2052 = vmax.f32 %v2050, %v2051
    %v2053 = vrot.slane %v2052, 1
    %v2054 = vmax.f32 %v2052, %v2053
    %vm2055 = vcmask 1040384
    %v2056 = vsel %vm2055, %v2045, %v2054
    %2058 = vrot.lane.b32.xlu0 %v2056, 32
    %v2059 = vpop.permute.xlu0 %2058
    %v2061 = vsel %vm484, %v2032, %v2059
    %v2062 = vld [vmem:[%s37] sm:$0xf]
    %v2063 = vld [vmem:[%s37 + $0x4] sm:$0xf]
    %v2064 = vld [vmem:[%s37 + $0x8] sm:$0xf]
    %v2065 = vld [vmem:[%s37 + $0xc] sm:$0xf]
    %v2066 = vld [vmem:[%s37 + $0x10] sm:$0xf]
    %v2067 = vld [vmem:[%s37 + $0x14] sm:$0xf]
    %v2068 = vld [vmem:[%s37 + $0x18] sm:$0xf]
    %v2069 = vld [vmem:[%s37 + $0x1c] sm:$0xf]
    %v2070 = vpack.c.bf16 %v2061, %v2061
    %v2079 = vunpack.c.l.b16 %v2062
    %v2080 = vunpack.c.l.b16 %v2063
    %v2081 = vunpack.c.l.b16 %v2064
    %v2082 = vunpack.c.l.b16 %v2065
    %v2083 = vunpack.c.l.b16 %v2066
    %v2084 = vunpack.c.l.b16 %v2067
    %v2085 = vunpack.c.l.b16 %v2068
    %v2086 = vunpack.c.l.b16 %v2069
    %v2087 = vpack.c.b16 %v2080, %v2079
    %v2088 = vpack.c.b16 %v2082, %v2081
    %v2089 = vpack.c.b16 %v2084, %v2083
    %v2090 = vpack.c.b16 %v2086, %v2085
    %vm2095 = vcmask 523264
    %v2097 = vsel %vm2095, %v2070, 0
    %2099 = vmatprep.subr.bf16.mxu0 0
    %2100 = vmatpush1.bf16.msra.mxu0 %v2087
    %2101 = vmatprep.subr.bf16.mxu0 0
    %2102 = vmatpush1.bf16.msra.mxu0 %v2088
    %2103 = vmatprep.subr.bf16.mxu0 0
    %2104 = vmatpush1.bf16.msra.mxu0 %v2089
    %2105 = vmatprep.subr.bf16.mxu0 0
    %2106 = vmatpush1.bf16.msra.mxu0 %v2090
    %2107 = vmatprep.subr.bf16.mxu0 0
    %2108 = vmatpush1.bf16.msra.mxu0 0
    %2109 = vmatprep.subr.bf16.mxu0 0
    %2110 = vmatpush1.bf16.msra.mxu0 0
    %2111 = vmatprep.subr.bf16.mxu0 0
    %2112 = vmatpush1.bf16.msra.mxu0 0
    %2113 = vmatprep.subr.bf16.mxu0 0
    %2114 = vmatpush1.bf16.msra.mxu0 0
    %2115 = vmatprep.subr.bf16.mxu0 0
    %2116 = vmatpush1.bf16.msra.mxu0 0
    %2117 = vmatprep.subr.bf16.mxu0 0
    %2118 = vmatpush1.bf16.msra.mxu0 0
    %2119 = vmatprep.subr.bf16.mxu0 0
    %2120 = vmatpush1.bf16.msra.mxu0 0
    %2121 = vmatprep.subr.bf16.mxu0 0
    %2122 = vmatpush1.bf16.msra.mxu0 0
    %2123 = vmatprep.subr.bf16.mxu0 0
    %2124 = vmatpush1.bf16.msra.mxu0 0
    %2125 = vmatprep.subr.bf16.mxu0 0
    %2126 = vmatpush1.bf16.msra.mxu0 0
    %2127 = vmatprep.subr.bf16.mxu0 0
    %2128 = vmatpush1.bf16.msra.mxu0 0
    %2129 = vmatprep.subr.bf16.mxu0 0
    %2130 = vmatpush1.bf16.msra.mxu0 0
    %2131 = vmatprep.mubr.bf16.mxu0 0
    %2132 = vmatmul.mubr.bf16.gmra.mrb[0].mxu0 %v2097
    %v2133 = vpop.f32.mrb[0].mxu0
    %v2134 = vadd.f32 0.0, %v2133
    %v2135 = vpop.f32.mrb[0].mxu0
    %v2136 = vpop.f32.mrb[0].mxu0
    %v2137 = vpop.f32.mrb[0].mxu0
    %2138 = vdwg.mxu0
    %v2139 = vmax.f32 %v2134, 0.0
    %v2140 = vld [vmem:[#allocation23] sm:$0xf]
    %v2141 = vpack.c.bf16 %v2139, %v2139
    %vm2142 = vcmask 64512
    %v2144 = vsel %vm2142, %v2141, 0
    %vm2146 = vcmask 1043456
    %v2148 = vsel %vm2146, %v2140, 0
    %2150 = vmatprep.subr.bf16.mxu0 0
    %2151 = vmatpush1.bf16.msra.mxu0 %v2148
    %2152 = vmatprep.subr.bf16.mxu0 0
    %2153 = vmatpush1.bf16.msra.mxu0 0
    %2154 = vmatprep.subr.bf16.mxu0 0
    %2155 = vmatpush1.bf16.msra.mxu0 0
    %2156 = vmatprep.subr.bf16.mxu0 0
    %2157 = vmatpush1.bf16.msra.mxu0 0
    %2158 = vmatprep.subr.bf16.mxu0 0
    %2159 = vmatpush1.bf16.msra.mxu0 0
    %2160 = vmatprep.subr.bf16.mxu0 0
    %2161 = vmatpush1.bf16.msra.mxu0 0
    %2162 = vmatprep.subr.bf16.mxu0 0
    %2163 = vmatpush1.bf16.msra.mxu0 0
    %2164 = vmatprep.subr.bf16.mxu0 0
    %2165 = vmatpush1.bf16.msra.mxu0 0
    %2166 = vmatprep.subr.bf16.mxu0 0
    %2167 = vmatpush1.bf16.msra.mxu0 0
    %2168 = vmatprep.subr.bf16.mxu0 0
    %2169 = vmatpush1.bf16.msra.mxu0 0
    %2170 = vmatprep.subr.bf16.mxu0 0
    %2171 = vmatpush1.bf16.msra.mxu0 0
    %2172 = vmatprep.subr.bf16.mxu0 0
    %2173 = vmatpush1.bf16.msra.mxu0 0
    %2174 = vmatprep.subr.bf16.mxu0 0
    %2175 = vmatpush1.bf16.msra.mxu0 0
    %2176 = vmatprep.subr.bf16.mxu0 0
    %2177 = vmatpush1.bf16.msra.mxu0 0
    %2178 = vmatprep.subr.bf16.mxu0 0
    %2179 = vmatpush1.bf16.msra.mxu0 0
    %2180 = vmatprep.subr.bf16.mxu0 0
    %2181 = vmatpush1.bf16.msra.mxu0 0
    %2182 = vmatprep.mubr.bf16.mxu0 0
    %2183 = vmatmul.mubr.bf16.gmra.mrb[0].mxu0 %v2144
    %v2184 = vpop.f32.mrb[0].mxu0
    %v2185 = vadd.f32 0.0, %v2184
    %v2186 = vpop.f32.mrb[0].mxu0
    %v2187 = vpop.f32.mrb[0].mxu0
    %v2188 = vpop.f32.mrb[0].mxu0
    %2189 = vdwg.mxu0
    %2191 = vrot.lane.b32.xlu0 %v2185, 96
    %v2192 = vpop.permute.xlu0 %2191
    %v2194 = vadd.f32 %v2185, %v2192
    %v2195 = vsub.f32 0.0, %v2194
    %v2196 = vmul.f32 %v2195, 1.442695
    %v2197 = vpow.pop %v2196
    %v2198 = vadd.f32 %v2197, 1.0
    %v2199 = vrcp.pop %v2198
    %v2200 = vmul.f32 1.0, %v2199
    %v2201 = vld [vmem:[%s41] sm:$0xf]
    %v2202 = vld [vmem:[%s41 + $0x4] sm:$0xf]
    %v2203 = vld [vmem:[%s41 + $0x8] sm:$0xf]
    %v2204 = vld [vmem:[%s41 + $0xc] sm:$0xf]
    %v2205 = vpack.c.bf16 %v2200, %v2200
    %v2210 = vunpack.c.l.b16 %v2201
    %v2211 = vunpack.c.l.b16 %v2202
    %v2212 = vunpack.c.l.b16 %v2203
    %v2213 = vunpack.c.l.b16 %v2204
    %v2214 = vpack.c.b16 %v2211, %v2210
    %v2215 = vpack.c.b16 %v2213, %v2212
    %vm2216 = vcmask 15360
    %v2218 = vsel %vm2216, %v2214, 0
    %v2221 = vsel %vm2216, %v2215, 0
    %v2224 = vsel %vm2055, %v2205, 0
    %2226 = vmatprep.subr.bf16.mxu0 0
    %2227 = vmatpush1.bf16.msra.mxu0 %v2224
    %2228 = vmatprep.subr.bf16.mxu0 0
    %2229 = vmatpush1.bf16.msra.mxu0 0
    %2230 = vmatprep.subr.bf16.mxu0 0
    %2231 = vmatpush1.bf16.msra.mxu0 0
    %2232 = vmatprep.subr.bf16.mxu0 0
    %2233 = vmatpush1.bf16.msra.mxu0 0
    %2234 = vmatprep.subr.bf16.mxu0 0
    %2235 = vmatpush1.bf16.msra.mxu0 0
    %2236 = vmatprep.subr.bf16.mxu0 0
    %2237 = vmatpush1.bf16.msra.mxu0 0
    %2238 = vmatprep.subr.bf16.mxu0 0
    %2239 = vmatpush1.bf16.msra.mxu0 0
    %2240 = vmatprep.subr.bf16.mxu0 0
    %2241 = vmatpush1.bf16.msra.mxu0 0
    %2242 = vmatprep.subr.bf16.mxu0 0
    %2243 = vmatpush1.bf16.msra.mxu0 0
    %2244 = vmatprep.subr.bf16.mxu0 0
    %2245 = vmatpush1.bf16.msra.mxu0 0
    %2246 = vmatprep.subr.bf16.mxu0 0
    %2247 = vmatpush1.bf16.msra.mxu0 0
    %2248 = vmatprep.subr.bf16.mxu0 0
    %2249 = vmatpush1.bf16.msra.mxu0 0
    %2250 = vmatprep.subr.bf16.mxu0 0
    %2251 = vmatpush1.bf16.msra.mxu0 0
    %2252 = vmatprep.subr.bf16.mxu0 0
    %2253 = vmatpush1.bf16.msra.mxu0 0
    %2254 = vmatprep.subr.bf16.mxu0 0
    %2255 = vmatpush1.bf16.msra.mxu0 0
    %2256 = vmatprep.subr.bf16.mxu0 0
    %2257 = vmatpush1.bf16.msra.mxu0 0
    %2258 = vmatprep.mubr.bf16.mxu0 0
    %2259 = vmatmul.mubr.bf16.gmra.mrb[0].mxu0 %v2218
    %v2260 = vpop.f32.mrb[0].mxu0
    %v2261 = vadd.f32 0.0, %v2260
    %v2262 = vpop.f32.mrb[0].mxu0
    %v2263 = vpop.f32.mrb[0].mxu0
    %v2264 = vadd.f32 0.0, %v2263
    %v2265 = vpop.f32.mrb[0].mxu0
    %2266 = vmatprep.mubr.bf16.mxu0 0
    %2267 = vmatmul.mubr.bf16.gmra.mrb[0].mxu0 %v2221
    %v2268 = vpop.f32.mrb[0].mxu0
    %v2269 = vadd.f32 0.0, %v2268
    %v2270 = vpop.f32.mrb[0].mxu0
    %v2271 = vpop.f32.mrb[0].mxu0
    %v2272 = vadd.f32 0.0, %v2271
    %v2273 = vpop.f32.mrb[0].mxu0
    %2274 = vdwg.mxu0
    %v2275 = vmul.f32 %v1977, %v2261
    %v2276 = vmul.f32 %v1980, %v2264
    %v2277 = vmul.f32 %v1985, %v2269
    %v2278 = vmul.f32 %v1988, %v2272
    %v2279 = vsel %vm484, %v2275, 0.0
    %2280 = vadd.xlane.f32.xlu0 %v2279
    %v2281 = vpop.xlane.xlu0 %2280
    %v2282 = vsel %vm484, %v2276, 0.0
    %2283 = vadd.xlane.f32.xlu0 %v2282
    %v2284 = vpop.xlane.xlu0 %2283
    %v2285 = vsel %vm484, %v2277, 0.0
    %2286 = vadd.xlane.f32.xlu0 %v2285
    %v2287 = vpop.xlane.xlu0 %2286
    %v2288 = vsel %vm484, %v2278, 0.0
    %2289 = vadd.xlane.f32.xlu0 %v2288
    %v2290 = vpop.xlane.xlu0 %2289
    %v2291 = vrcp.pop 32.0
    %v2292 = vmul.f32 %v2281, %v2291
    %v2293 = vmul.f32 %v2284, %v2291
    %v2294 = vmul.f32 %v2287, %v2291
    %v2295 = vmul.f32 %v2290, %v2291
    %v2296 = vsel %vm484, %v2275, -inf
    %2297 = vmax.xlane.f32.xlu0 %v2296
    %v2298 = vpop.xlane.xlu0 %2297
    %v2299 = vsel %vm484, %v2276, -inf
    %2300 = vmax.xlane.f32.xlu0 %v2299
    %v2301 = vpop.xlane.xlu0 %2300
    %v2302 = vsel %vm484, %v2277, -inf
    %2303 = vmax.xlane.f32.xlu0 %v2302
    %v2304 = vpop.xlane.xlu0 %2303
    %v2305 = vsel %vm484, %v2278, -inf
    %2306 = vmax.xlane.f32.xlu0 %v2305
    %v2307 = vpop.xlane.xlu0 %2306
    %v2308 = vld [vmem:[#allocation25] sm:$0xf]
    %v2309 = vld [vmem:[#allocation25 + $0x4] sm:$0xf]
    %v2310 = vld [vmem:[#allocation25 + $0x8] sm:$0xf]
    %v2311 = vld [vmem:[#allocation25 + $0xc] sm:$0xf]
    %v2312 = vpack.c.bf16 %v2293, %v2292
    %v2313 = vpack.c.bf16 %v2295, %v2294
    %v2314 = vpack.c.bf16 %v2301, %v2298
    %v2315 = vpack.c.bf16 %v2307, %v2304
    %v2320 = vunpack.c.l.b16 %v2308
    %v2321 = vunpack.c.l.b16 %v2309
    %v2322 = vunpack.c.l.b16 %v2310
    %v2323 = vunpack.c.l.b16 %v2311
    %v2324 = vpack.c.b16 %v2321, %v2320
    %v2325 = vpack.c.b16 %v2323, %v2322
    %v2327 = vsel %vm2095, %v2324, 0
    %v2330 = vsel %vm2095, %v2325, 0
    %2332 = vmatprep.subr.bf16.mxu0 0
    %2333 = vmatpush1.bf16.msra.mxu0 %v2312
    %2334 = vmatprep.subr.bf16.mxu0 0
    %2335 = vmatpush1.bf16.msra.mxu0 %v2313
    %2336 = vmatprep.subr.bf16.mxu0 0
    %2337 = vmatpush1.bf16.msra.mxu0 %v2314
    %2338 = vmatprep.subr.bf16.mxu0 0
    %2339 = vmatpush1.bf16.msra.mxu0 %v2315
    %2340 = vmatprep.subr.bf16.mxu0 0
    %2341 = vmatpush1.bf16.msra.mxu0 0
    %2342 = vmatprep.subr.bf16.mxu0 0
    %2343 = vmatpush1.bf16.msra.mxu0 0
    %2344 = vmatprep.subr.bf16.mxu0 0
    %2345 = vmatpush1.bf16.msra.mxu0 0
    %2346 = vmatprep.subr.bf16.mxu0 0
    %2347 = vmatpush1.bf16.msra.mxu0 0
    %2348 = vmatprep.subr.bf16.mxu0 0
    %2349 = vmatpush1.bf16.msra.mxu0 0
    %2350 = vmatprep.subr.bf16.mxu0 0
    %2351 = vmatpush1.bf16.msra.mxu0 0
    %2352 = vmatprep.subr.bf16.mxu0 0
    %2353 = vmatpush1.bf16.msra.mxu0 0
    %2354 = vmatprep.subr.bf16.mxu0 0
    %2355 = vmatpush1.bf16.msra.mxu0 0
    %2356 = vmatprep.subr.bf16.mxu0 0
    %2357 = vmatpush1.bf16.msra.mxu0 0
    %2358 = vmatprep.subr.bf16.mxu0 0
    %2359 = vmatpush1.bf16.msra.mxu0 0
    %2360 = vmatprep.subr.bf16.mxu0 0
    %2361 = vmatpush1.bf16.msra.mxu0 0
    %2362 = vmatprep.subr.bf16.mxu0 0
    %2363 = vmatpush1.bf16.msra.mxu0 0
    %2364 = vmatprep.mubr.bf16.mxu0 0
    %2365 = vmatmul.mubr.bf16.gmra.mrb[0].mxu0 %v2327
    %v2366 = vpop.f32.mrb[0].mxu0
    %v2367 = vadd.f32 0.0, %v2366
    %v2368 = vpop.f32.mrb[0].mxu0
    %v2369 = vpop.f32.mrb[0].mxu0
    %v2370 = vadd.f32 0.0, %v2369
    %v2371 = vpop.f32.mrb[0].mxu0
    %2372 = vmatprep.mubr.bf16.mxu0 0
    %2373 = vmatmul.mubr.bf16.gmra.mrb[0].mxu0 %v2330
    %v2374 = vpop.f32.mrb[0].mxu0
    %v2375 = vadd.f32 0.0, %v2374
    %v2376 = vpop.f32.mrb[0].mxu0
    %v2377 = vpop.f32.mrb[0].mxu0
    %v2378 = vadd.f32 0.0, %v2377
    %v2379 = vpop.f32.mrb[0].mxu0
    %2380 = vdwg.mxu0
    %v2381 = vsub.f32 0.0, %v2367
    %v2382 = vsub.f32 0.0, %v2370
    %v2383 = vsub.f32 0.0, %v2375
    %v2384 = vsub.f32 0.0, %v2378
    %v2385 = vmul.f32 %v2381, 1.442695
    %v2386 = vpow.pop %v2385
    %v2387 = vmul.f32 %v2382, 1.442695
    %v2388 = vpow.pop %v2387
    %v2389 = vmul.f32 %v2383, 1.442695
    %v2390 = vpow.pop %v2389
    %v2391 = vmul.f32 %v2384, 1.442695
    %v2392 = vpow.pop %v2391
    %v2393 = vadd.f32 %v2386, 1.0
    %v2394 = vadd.f32 %v2388, 1.0
    %v2395 = vadd.f32 %v2390, 1.0
    %v2396 = vadd.f32 %v2392, 1.0
    %v2397 = vrcp.pop %v2393
    %v2398 = vmul.f32 1.0, %v2397
    %v2399 = vrcp.pop %v2394
    %v2400 = vmul.f32 1.0, %v2399
    %v2401 = vrcp.pop %v2395
    %v2402 = vmul.f32 1.0, %v2401
    %v2403 = vrcp.pop %v2396
    %v2404 = vmul.f32 1.0, %v2403
    %2406 = vset.pattern.permute.xlu0 0
    %2407 = vperm.xlu0 %2406, %v2398
    %v2408 = vpop.permute.xlu0 %2407
    %2411 = vset.pattern.permute.xlu0 0
    %2412 = vperm.xlu0 %2411, %v2400
    %v2413 = vpop.permute.xlu0 %2412
    %2416 = vset.pattern.permute.xlu0 0
    %2417 = vperm.xlu0 %2416, %v2402
    %v2418 = vpop.permute.xlu0 %2417
    %2421 = vset.pattern.permute.xlu0 0
    %2422 = vperm.xlu0 %2421, %v2404
    %v2423 = vpop.permute.xlu0 %2422
    %v2425 = vmul.f32 %v2275, %v2408
    %v2426 = vmul.f32 %v2276, %v2413
    %v2427 = vmul.f32 %v2277, %v2418
    %v2428 = vmul.f32 %v2278, %v2423
    %v2429 = vpack.c.bf16 %v2426, %v2425
    %v2430 = vpack.c.bf16 %v2428, %v2427
    %2431 = vmatprep.subr.bf16.mxu0 0
    %2432 = vmatpush1.bf16.msra.mxu0 %v2429
    %2433 = vmatprep.subr.bf16.mxu0 0
    %2434 = vmatpush1.bf16.msra.mxu0 %v2430
    %2435 = vmatprep.subr.bf16.mxu0 0
    %2436 = vmatpush1.bf16.msra.mxu0 0
    %2437 = vmatprep.subr.bf16.mxu0 0
    %2438 = vmatpush1.bf16.msra.mxu0 0
    %2439 = vmatprep.subr.bf16.mxu0 0
    %2440 = vmatpush1.bf16.msra.mxu0 0
    %2441 = vmatprep.subr.bf16.mxu0 0
    %2442 = vmatpush1.bf16.msra.mxu0 0
    %2443 = vmatprep.subr.bf16.mxu0 0
    %2444 = vmatpush1.bf16.msra.mxu0 0
    %2445 = vmatprep.subr.bf16.mxu0 0
    %2446 = vmatpush1.bf16.msra.mxu0 0
    %2447 = vmatprep.subr.bf16.mxu0 0
    %2448 = vmatpush1.bf16.msra.mxu0 0
    %2449 = vmatprep.subr.bf16.mxu0 0
    %2450 = vmatpush1.bf16.msra.mxu0 0
    %2451 = vmatprep.subr.bf16.mxu0 0
    %2452 = vmatpush1.bf16.msra.mxu0 0
    %2453 = vmatprep.subr.bf16.mxu0 0
    %2454 = vmatpush1.bf16.msra.mxu0 0
    %2455 = vmatprep.subr.bf16.mxu0 0
    %2456 = vmatpush1.bf16.msra.mxu0 0
    %2457 = vmatprep.subr.bf16.mxu0 0
    %2458 = vmatpush1.bf16.msra.mxu0 0
    %2459 = vmatprep.subr.bf16.mxu0 0
    %2460 = vmatpush1.bf16.msra.mxu0 0
    %2461 = vmatprep.subr.bf16.mxu0 0
    %2462 = vmatpush1.bf16.msra.mxu0 0
    %2463 = vmatprep.mubr.bf16.mxu0 0
    %2464 = vmatmul.mubr.bf16.gmra.mrb[0].mxu0 %v1995
    %v2465 = vpop.f32.mrb[0].mxu0
    %v2466 = vadd.f32 0.0, %v2465
    %v2467 = vpop.f32.mrb[0].mxu0
    %v2468 = vpop.f32.mrb[0].mxu0
    %v2469 = vpop.f32.mrb[0].mxu0
    %2470 = vdwg.mxu0
    %v2471 = vld [vmem:[#allocation26] sm:$0xf]
    %v2472 = vld [vmem:[#allocation26 + $0x4] sm:$0xf]
    %v2473 = vld [vmem:[#allocation26 + $0x8] sm:$0xf]
    %v2474 = vld [vmem:[#allocation26 + $0xc] sm:$0xf]
    %v2475 = vpack.c.bf16 %v2466, %v2466
    %v2476 = vld [vmem:[#allocation28] sm:$0x1]
    %v2478 = vlaneseq
    %v2479 = vshrl.u32 %v2478, 7
    %v2480 = vsub.s32 0, %v2479
    %v2481 = vrot.slane %v2476, %v2480
    %v2487 = vunpack.c.l.b16 %v2471
    %v2488 = vunpack.c.l.b16 %v2472
    %v2489 = vunpack.c.l.b16 %v2473
    %v2490 = vunpack.c.l.b16 %v2474
    %v2491 = vpack.c.b16 %v2488, %v2487
    %v2492 = vpack.c.b16 %v2490, %v2489
    %v2496 = vsel %vm484, %v2475, 0
    %2498 = vmatprep.subr.bf16.mxu0 0
    %2499 = vmatpush1.bf16.msra.mxu0 %v2491
    %2500 = vmatprep.subr.bf16.mxu0 0
    %2501 = vmatpush1.bf16.msra.mxu0 %v2492
    %2502 = vmatprep.subr.bf16.mxu0 0
    %2503 = vmatpush1.bf16.msra.mxu0 0
    %2504 = vmatprep.subr.bf16.mxu0 0
    %2505 = vmatpush1.bf16.msra.mxu0 0
    %2506 = vmatprep.subr.bf16.mxu0 0
    %2507 = vmatpush1.bf16.msra.mxu0 0
    %2508 = vmatprep.subr.bf16.mxu0 0
    %2509 = vmatpush1.bf16.msra.mxu0 0
    %2510 = vmatprep.subr.bf16.mxu0 0
    %2511 = vmatpush1.bf16.msra.mxu0 0
    %2512 = vmatprep.subr.bf16.mxu0 0
    %2513 = vmatpush1.bf16.msra.mxu0 0
    %2514 = vmatprep.subr.bf16.mxu0 0
    %2515 = vmatpush1.bf16.msra.mxu0 0
    %2516 = vmatprep.subr.bf16.mxu0 0
    %2517 = vmatpush1.bf16.msra.mxu0 0
    %2518 = vmatprep.subr.bf16.mxu0 0
    %2519 = vmatpush1.bf16.msra.mxu0 0
    %2520 = vmatprep.subr.bf16.mxu0 0
    %2521 = vmatpush1.bf16.msra.mxu0 0
    %2522 = vmatprep.subr.bf16.mxu0 0
    %2523 = vmatpush1.bf16.msra.mxu0 0
    %2524 = vmatprep.subr.bf16.mxu0 0
    %2525 = vmatpush1.bf16.msra.mxu0 0
    %2526 = vmatprep.subr.bf16.mxu0 0
    %2527 = vmatpush1.bf16.msra.mxu0 0
    %2528 = vmatprep.subr.bf16.mxu0 0
    %2529 = vmatpush1.bf16.msra.mxu0 0
    %2530 = vmatprep.mubr.bf16.mxu0 0
    %2531 = vmatmul.mubr.bf16.gmra.mrb[0].mxu0 %v2496
    %v2532 = vpop.f32.mrb[0].mxu0
    %v2533 = vadd.f32 %v2481, %v2532
    %v2534 = vpop.f32.mrb[0].mxu0
    %v2535 = vpop.f32.mrb[0].mxu0
    %v2536 = vpop.f32.mrb[0].mxu0
    %2537 = vdwg.mxu0
    %v2538 = vld [vmem:[%s3] sm:$0x3]
    %v2539 = vld [vmem:[#allocation29] sm:$0xf]
    %v2540 = vld [vmem:[#allocation29 + $0x4] sm:$0xf]
    %v2541 = vld [vmem:[#allocation29 + $0x8] sm:$0x1]
    %v2542 = vpack.c.bf16 %v2538, %v2538
    %v2543 = vld [vmem:[#allocation31] sm:$0x1]
    %v2545 = vlaneseq
    %v2546 = vshrl.u32 %v2545, 7
    %v2547 = vsub.s32 0, %v2546
    %v2548 = vrot.slane %v2543, %v2547
    %v2553 = vunpack.c.l.b16 %v2539
    %v2554 = vunpack.c.l.b16 %v2540
    %v2555 = vunpack.c.l.b16 %v2541
    %v2556 = vpack.c.b16 %v2554, %v2553
    %v2557 = vpack.c.b16 %v2555, %v2555
    %vm2559 = vcmask 146432
    %v2561 = vsel %vm2559, %v2542, 0
    %v2564 = vsel %vm2055, %v2557, 0
    %2566 = vmatprep.subr.bf16.mxu0 0
    %2567 = vmatpush1.bf16.msra.mxu0 %v2556
    %2568 = vmatprep.subr.bf16.mxu0 0
    %2569 = vmatpush1.bf16.msra.mxu0 %v2564
    %2570 = vmatprep.subr.bf16.mxu0 0
    %2571 = vmatpush1.bf16.msra.mxu0 0
    %2572 = vmatprep.subr.bf16.mxu0 0
    %2573 = vmatpush1.bf16.msra.mxu0 0
    %2574 = vmatprep.subr.bf16.mxu0 0
    %2575 = vmatpush1.bf16.msra.mxu0 0
    %2576 = vmatprep.subr.bf16.mxu0 0
    %2577 = vmatpush1.bf16.msra.mxu0 0
    %2578 = vmatprep.subr.bf16.mxu0 0
    %2579 = vmatpush1.bf16.msra.mxu0 0
    %2580 = vmatprep.subr.bf16.mxu0 0
    %2581 = vmatpush1.bf16.msra.mxu0 0
    %2582 = vmatprep.subr.bf16.mxu0 0
    %2583 = vmatpush1.bf16.msra.mxu0 0
    %2584 = vmatprep.subr.bf16.mxu0 0
    %2585 = vmatpush1.bf16.msra.mxu0 0
    %2586 = vmatprep.subr.bf16.mxu0 0
    %2587 = vmatpush1.bf16.msra.mxu0 0
    %2588 = vmatprep.subr.bf16.mxu0 0
    %2589 = vmatpush1.bf16.msra.mxu0 0
    %2590 = vmatprep.subr.bf16.mxu0 0
    %2591 = vmatpush1.bf16.msra.mxu0 0
    %2592 = vmatprep.subr.bf16.mxu0 0
    %2593 = vmatpush1.bf16.msra.mxu0 0
    %2594 = vmatprep.subr.bf16.mxu0 0
    %2595 = vmatpush1.bf16.msra.mxu0 0
    %2596 = vmatprep.subr.bf16.mxu0 0
    %2597 = vmatpush1.bf16.msra.mxu0 0
    %2598 = vmatprep.mubr.bf16.mxu0 0
    %2599 = vmatmul.mubr.bf16.gmra.mrb[0].mxu0 %v2561
    %v2600 = vpop.f32.mrb[0].mxu0
    %v2601 = vadd.f32 %v2548, %v2600
    %v2602 = vpop.f32.mrb[0].mxu0
    %v2603 = vpop.f32.mrb[0].mxu0
    %v2604 = vpop.f32.mrb[0].mxu0
    %2605 = vdwg.mxu0
    %v2606 = vld [vmem:[#allocation32] sm:$0x1]
    %v2607 = vld [vmem:[#allocation34] sm:$0x1]
    %vm2608 = vcmask 254976
    %v2609 = vsel %vm2608, %v2601, 0.0
    %2610 = vadd.xlane.f32.xlu0 %v2609
    %v2611 = vpop.xlane.xlu0 %2610
    %v2612 = vmul.f32 %v2611, %v2291
    %v2613 = vsub.f32 %v2601, %v2612
    %v2614 = vmul.f32 %v2613, %v2613
    %v2615 = vsel %vm2608, %v2614, 0.0
    %2616 = vadd.xlane.f32.xlu0 %v2615
    %v2617 = vpop.xlane.xlu0 %2616
    %v2618 = vmul.f32 %v2617, %v2291
    %v2619 = vadd.f32 %v2618, 1e-05
    %v2620 = vrsqrt.pop %v2619
    %v2621 = vmul.f32 %v2613, %v2620
    %v2623 = vlaneseq
    %v2624 = vshrl.u32 %v2623, 7
    %v2625 = vsub.s32 0, %v2624
    %v2626 = vrot.slane %v2606, %v2625
    %v2628 = vmul.f32 %v2621, %v2626
    %v2630 = vlaneseq
    %v2631 = vshrl.u32 %v2630, 7
    %v2632 = vsub.s32 0, %v2631
    %v2633 = vrot.slane %v2607, %v2632
    %v2635 = vadd.f32 %v2628, %v2633
    %v2636 = vmax.f32 %v2635, 0.0
    %v2637 = vld [vmem:[%s57] sm:$0xff]
    %v2638 = vld [vmem:[%s57 + $0x8] sm:$0xff]
    %v2639 = vld [vmem:[%s57 + $0x10] sm:$0xff]
    %v2640 = vld [vmem:[%s57 + $0x18] sm:$0xff]
    %v2641 = vld [vmem:[%s57 + $0x20] sm:$0xff]
    %v2642 = vld [vmem:[%s57 + $0x28] sm:$0xff]
    %v2643 = vld [vmem:[%s57 + $0x30] sm:$0xff]
    %v2644 = vld [vmem:[%s57 + $0x38] sm:$0xff]
    %v2645 = vpack.c.bf16 %v2533, %v2533
    %v2646 = vld [vmem:[#allocation35] sm:$0xff]
    %v2647 = vld [vmem:[#allocation35 + $0x8] sm:$0xff]
    %v2648 = vld [vmem:[#allocation35 + $0x10] sm:$0xff]
    %v2649 = vld [vmem:[#allocation35 + $0x18] sm:$0xff]
    %v2650 = vpack.c.bf16 %v2636, %v2636
    %v2655 = vunpack.c.l.b16 %v2646
    %v2656 = vunpack.c.h.b16 %v2646
    %v2657 = vunpack.c.l.b16 %v2647
    %v2658 = vunpack.c.h.b16 %v2647
    %v2659 = vunpack.c.l.b16 %v2648
    %v2660 = vunpack.c.h.b16 %v2648
    %v2661 = vunpack.c.l.b16 %v2649
    %v2662 = vunpack.c.h.b16 %v2649
    %v2663 = vpack.c.b16 %v2657, %v2655
    %v2664 = vpack.c.b16 %v2658, %v2656
    %v2665 = vpack.c.b16 %v2661, %v2659
    %v2666 = vpack.c.b16 %v2662, %v2660
    %v2672 = vsel %vm484, %v2650, 0
    %2674 = vmatprep.subr.bf16.mxu0 %v2664
    %2675 = vmatpush1.bf16.msra.mxu0 %v2663
    %2676 = vmatprep.subr.bf16.mxu0 %v2666
    %2677 = vmatpush1.bf16.msra.mxu0 %v2665
    %2678 = vmatprep.subr.bf16.mxu0 0
    %2679 = vmatpush1.bf16.msra.mxu0 0
    %2680 = vmatprep.subr.bf16.mxu0 0
    %2681 = vmatpush1.bf16.msra.mxu0 0
    %2682 = vmatprep.subr.bf16.mxu0 0
    %2683 = vmatpush1.bf16.msra.mxu0 0
    %2684 = vmatprep.subr.bf16.mxu0 0
    %2685 = vmatpush1.bf16.msra.mxu0 0
    %2686 = vmatprep.subr.bf16.mxu0 0
    %2687 = vmatpush1.bf16.msra.mxu0 0
    %2688 = vmatprep.subr.bf16.mxu0 0
    %2689 = vmatpush1.bf16.msra.mxu0 0
    %2690 = vmatprep.subr.bf16.mxu0 0
    %2691 = vmatpush1.bf16.msra.mxu0 0
    %2692 = vmatprep.subr.bf16.mxu0 0
    %2693 = vmatpush1.bf16.msra.mxu0 0
    %2694 = vmatprep.subr.bf16.mxu0 0
    %2695 = vmatpush1.bf16.msra.mxu0 0
    %2696 = vmatprep.subr.bf16.mxu0 0
    %2697 = vmatpush1.bf16.msra.mxu0 0
    %2698 = vmatprep.subr.bf16.mxu0 0
    %2699 = vmatpush1.bf16.msra.mxu0 0
    %2700 = vmatprep.subr.bf16.mxu0 0
    %2701 = vmatpush1.bf16.msra.mxu0 0
    %2702 = vmatprep.subr.bf16.mxu0 0
    %2703 = vmatpush1.bf16.msra.mxu0 0
    %2704 = vmatprep.subr.bf16.mxu0 0
    %2705 = vmatpush1.bf16.msra.mxu0 0
    %2706 = vmatprep.mubr.bf16.mxu0 0
    %2707 = vmatmul.mubr.bf16.gmra.mrb[0].mxu0 %v2672
    %v2708 = vpop.f32.mrb[0].mxu0
    %v2709 = vadd.f32 0.0, %v2708
    %v2710 = vpop.f32.mrb[0].mxu0
    %v2711 = vadd.f32 0.0, %v2710
    %v2712 = vpop.f32.mrb[0].mxu0
    %v2713 = vpop.f32.mrb[0].mxu0
    %2714 = vdwg.mxu0
    %v2723 = vunpack.c.l.b16 %v2637
    %v2724 = vunpack.c.h.b16 %v2637
    %v2725 = vunpack.c.l.b16 %v2638
    %v2726 = vunpack.c.h.b16 %v2638
    %v2727 = vunpack.c.l.b16 %v2639
    %v2728 = vunpack.c.h.b16 %v2639
    %v2729 = vunpack.c.l.b16 %v2640
    %v2730 = vunpack.c.h.b16 %v2640
    %v2731 = vunpack.c.l.b16 %v2641
    %v2732 = vunpack.c.h.b16 %v2641
    %v2733 = vunpack.c.l.b16 %v2642
    %v2734 = vunpack.c.h.b16 %v2642
    %v2735 = vunpack.c.l.b16 %v2643
    %v2736 = vunpack.c.h.b16 %v2643
    %v2737 = vunpack.c.l.b16 %v2644
    %v2738 = vunpack.c.h.b16 %v2644
    %v2739 = vpack.c.b16 %v2725, %v2723
    %v2740 = vpack.c.b16 %v2726, %v2724
    %v2741 = vpack.c.b16 %v2729, %v2727
    %v2742 = vpack.c.b16 %v2730, %v2728
    %v2743 = vpack.c.b16 %v2733, %v2731
    %v2744 = vpack.c.b16 %v2734, %v2732
    %v2745 = vpack.c.b16 %v2737, %v2735
    %v2746 = vpack.c.b16 %v2738, %v2736
    %v2756 = vsel %vm2095, %v2645, 0
    %2758 = vmatprep.subr.bf16.mxu0 %v2740
    %2759 = vmatpush1.bf16.msra.mxu0 %v2739
    %2760 = vmatprep.subr.bf16.mxu0 %v2742
    %2761 = vmatpush1.bf16.msra.mxu0 %v2741
    %2762 = vmatprep.subr.bf16.mxu0 %v2744
    %2763 = vmatpush1.bf16.msra.mxu0 %v2743
    %2764 = vmatprep.subr.bf16.mxu0 %v2746
    %2765 = vmatpush1.bf16.msra.mxu0 %v2745
    %2766 = vmatprep.subr.bf16.mxu0 0
    %2767 = vmatpush1.bf16.msra.mxu0 0
    %2768 = vmatprep.subr.bf16.mxu0 0
    %2769 = vmatpush1.bf16.msra.mxu0 0
    %2770 = vmatprep.subr.bf16.mxu0 0
    %2771 = vmatpush1.bf16.msra.mxu0 0
    %2772 = vmatprep.subr.bf16.mxu0 0
    %2773 = vmatpush1.bf16.msra.mxu0 0
    %2774 = vmatprep.subr.bf16.mxu0 0
    %2775 = vmatpush1.bf16.msra.mxu0 0
    %2776 = vmatprep.subr.bf16.mxu0 0
    %2777 = vmatpush1.bf16.msra.mxu0 0
    %2778 = vmatprep.subr.bf16.mxu0 0
    %2779 = vmatpush1.bf16.msra.mxu0 0
    %2780 = vmatprep.subr.bf16.mxu0 0
    %2781 = vmatpush1.bf16.msra.mxu0 0
    %2782 = vmatprep.subr.bf16.mxu0 0
    %2783 = vmatpush1.bf16.msra.mxu0 0
    %2784 = vmatprep.subr.bf16.mxu0 0
    %2785 = vmatpush1.bf16.msra.mxu0 0
    %2786 = vmatprep.subr.bf16.mxu0 0
    %2787 = vmatpush1.bf16.msra.mxu0 0
    %2788 = vmatprep.subr.bf16.mxu0 0
    %2789 = vmatpush1.bf16.msra.mxu0 0
    %2790 = vmatprep.mubr.bf16.mxu0 0
    %2791 = vmatmul.mubr.bf16.gmra.mrb[0].mxu0 %v2756
    %v2792 = vpop.f32.mrb[0].mxu0
    %v2793 = vadd.f32 %v2709, %v2792
    %v2794 = vpop.f32.mrb[0].mxu0
    %v2795 = vadd.f32 %v2711, %v2794
    %v2796 = vpop.f32.mrb[0].mxu0
    %v2797 = vpop.f32.mrb[0].mxu0
    %2798 = vdwg.mxu0
    %v2799 = vld [vmem:[#allocation37] sm:$0x3]
    %v2801 = vlaneseq
    %v2802 = vshrl.u32 %v2801, 7
    %v2803 = vsub.s32 0, %v2802
    %v2804 = vrot.slane %v2799, %v2803
    %v2805 = vlaneseq
    %v2806 = vshrl.u32 %v2805, 7
    %v2807 = vsub.s32 1, %v2806
    %v2808 = vrot.slane %v2799, %v2807
    %v2811 = vadd.f32 %v2793, %v2804
    %v2812 = vadd.f32 %v2795, %v2808
    %v2813 = vld [vmem:[#allocation38] sm:$0x3]
    %v2814 = vld [vmem:[#allocation40] sm:$0x3]
    %vm2815 = vcmask 1041408
    %v2816 = vsel %vm2815, %v2811, 0.0
    %v2817 = vsel %vm2815, %v2812, 0.0
    %v2818 = vadd.f32 %v2816, %v2817
    %2819 = vadd.xlane.f32.xlu0 %v2818
    %v2820 = vpop.xlane.xlu0 %2819
    %v2821 = vrcp.pop 256.0
    %v2822 = vmul.f32 %v2820, %v2821
    %v2823 = vsub.f32 %v2811, %v2822
    %v2824 = vsub.f32 %v2812, %v2822
    %v2825 = vmul.f32 %v2823, %v2823
    %v2826 = vmul.f32 %v2824, %v2824
    %v2827 = vsel %vm2815, %v2825, 0.0
    %v2828 = vsel %vm2815, %v2826, 0.0
    %v2829 = vadd.f32 %v2827, %v2828
    %2830 = vadd.xlane.f32.xlu0 %v2829
    %v2831 = vpop.xlane.xlu0 %2830
    %v2832 = vmul.f32 %v2831, %v2821
    %v2833 = vadd.f32 %v2832, 1e-05
    %v2834 = vrsqrt.pop %v2833
    %v2835 = vmul.f32 %v2823, %v2834
    %v2836 = vmul.f32 %v2824, %v2834
    %v2838 = vlaneseq
    %v2839 = vshrl.u32 %v2838, 7
    %v2840 = vsub.s32 0, %v2839
    %v2841 = vrot.slane %v2813, %v2840
    %v2842 = vlaneseq
    %v2843 = vshrl.u32 %v2842, 7
    %v2844 = vsub.s32 1, %v2843
    %v2845 = vrot.slane %v2813, %v2844
    %v2848 = vmul.f32 %v2835, %v2841
    %v2849 = vmul.f32 %v2836, %v2845
    %v2851 = vlaneseq
    %v2852 = vshrl.u32 %v2851, 7
    %v2853 = vsub.s32 0, %v2852
    %v2854 = vrot.slane %v2814, %v2853
    %v2855 = vlaneseq
    %v2856 = vshrl.u32 %v2855, 7
    %v2857 = vsub.s32 1, %v2856
    %v2858 = vrot.slane %v2814, %v2857
    %v2861 = vadd.f32 %v2848, %v2854
    %v2862 = vadd.f32 %v2849, %v2858
    %v2863 = vmax.f32 %v2861, 0.0
    %v2864 = vmax.f32 %v2862, 0.0
    %v2865 = vld [vmem:[%s67] sm:$0xf]
    %v2866 = vld [vmem:[%s67 + $0x4] sm:$0xf]
    %v2867 = vld [vmem:[%s67 + $0x8] sm:$0xf]
    %v2868 = vld [vmem:[%s67 + $0xc] sm:$0xf]
    %v2869 = vld [vmem:[%s67 + $0x10] sm:$0xf]
    %v2870 = vld [vmem:[%s67 + $0x14] sm:$0xf]
    %v2871 = vld [vmem:[%s67 + $0x18] sm:$0xf]
    %v2872 = vld [vmem:[%s67 + $0x1c] sm:$0xf]
    %v2873 = vld [vmem:[%s67 + $0x20] sm:$0xf]
    %v2874 = vld [vmem:[%s67 + $0x24] sm:$0xf]
    %v2875 = vld [vmem:[%s67 + $0x28] sm:$0xf]
    %v2876 = vld [vmem:[%s67 + $0x2c] sm:$0xf]
    %v2877 = vld [vmem:[%s67 + $0x30] sm:$0xf]
    %v2878 = vld [vmem:[%s67 + $0x34] sm:$0xf]
    %v2879 = vld [vmem:[%s67 + $0x38] sm:$0xf]
    %v2880 = vld [vmem:[%s67 + $0x3c] sm:$0xf]
    %v2881 = vld [vmem:[%s67 + $0x40] sm:$0xf]
    %v2882 = vld [vmem:[%s67 + $0x44] sm:$0xf]
    %v2883 = vld [vmem:[%s67 + $0x48] sm:$0xf]
    %v2884 = vld [vmem:[%s67 + $0x4c] sm:$0xf]
    %v2885 = vld [vmem:[%s67 + $0x50] sm:$0xf]
    %v2886 = vld [vmem:[%s67 + $0x54] sm:$0xf]
    %v2887 = vld [vmem:[%s67 + $0x58] sm:$0xf]
    %v2888 = vld [vmem:[%s67 + $0x5c] sm:$0xf]
    %v2889 = vld [vmem:[%s67 + $0x60] sm:$0xf]
    %v2890 = vld [vmem:[%s67 + $0x64] sm:$0xf]
    %v2891 = vld [vmem:[%s67 + $0x68] sm:$0xf]
    %v2892 = vld [vmem:[%s67 + $0x6c] sm:$0xf]
    %v2893 = vld [vmem:[%s67 + $0x70] sm:$0xf]
    %v2894 = vld [vmem:[%s67 + $0x74] sm:$0xf]
    %v2895 = vld [vmem:[%s67 + $0x78] sm:$0xf]
    %v2896 = vld [vmem:[%s67 + $0x7c] sm:$0xf]
    %v2897 = vpack.c.bf16 %v2863, %v2863
    %v2898 = vpack.c.bf16 %v2864, %v2864
    %v2899 = vld [vmem:[%s69] sm:$0x1]
    %v2901 = vlaneseq
    %v2902 = vshrl.u32 %v2901, 7
    %v2903 = vsub.s32 0, %v2902
    %v2904 = vrot.slane %v2899, %v2903
    %v2938 = vunpack.c.l.b16 %v2865
    %v2939 = vunpack.c.l.b16 %v2866
    %v2940 = vunpack.c.l.b16 %v2867
    %v2941 = vunpack.c.l.b16 %v2868
    %v2942 = vunpack.c.l.b16 %v2869
    %v2943 = vunpack.c.l.b16 %v2870
    %v2944 = vunpack.c.l.b16 %v2871
    %v2945 = vunpack.c.l.b16 %v2872
    %v2946 = vunpack.c.l.b16 %v2873
    %v2947 = vunpack.c.l.b16 %v2874
    %v2948 = vunpack.c.l.b16 %v2875
    %v2949 = vunpack.c.l.b16 %v2876
    %v2950 = vunpack.c.l.b16 %v2877
    %v2951 = vunpack.c.l.b16 %v2878
    %v2952 = vunpack.c.l.b16 %v2879
    %v2953 = vunpack.c.l.b16 %v2880
    %v2954 = vunpack.c.l.b16 %v2881
    %v2955 = vunpack.c.l.b16 %v2882
    %v2956 = vunpack.c.l.b16 %v2883
    %v2957 = vunpack.c.l.b16 %v2884
    %v2958 = vunpack.c.l.b16 %v2885
    %v2959 = vunpack.c.l.b16 %v2886
    %v2960 = vunpack.c.l.b16 %v2887
    %v2961 = vunpack.c.l.b16 %v2888
    %v2962 = vunpack.c.l.b16 %v2889
    %v2963 = vunpack.c.l.b16 %v2890
    %v2964 = vunpack.c.l.b16 %v2891
    %v2965 = vunpack.c.l.b16 %v2892
    %v2966 = vunpack.c.l.b16 %v2893
    %v2967 = vunpack.c.l.b16 %v2894
    %v2968 = vunpack.c.l.b16 %v2895
    %v2969 = vunpack.c.l.b16 %v2896
    %v2970 = vpack.c.b16 %v2939, %v2938
    %v2971 = vpack.c.b16 %v2941, %v2940
    %v2972 = vpack.c.b16 %v2943, %v2942
    %v2973 = vpack.c.b16 %v2945, %v2944
    %v2974 = vpack.c.b16 %v2947, %v2946
    %v2975 = vpack.c.b16 %v2949, %v2948
    %v2976 = vpack.c.b16 %v2951, %v2950
    %v2977 = vpack.c.b16 %v2953, %v2952
    %v2978 = vpack.c.b16 %v2955, %v2954
    %v2979 = vpack.c.b16 %v2957, %v2956
    %v2980 = vpack.c.b16 %v2959, %v2958
    %v2981 = vpack.c.b16 %v2961, %v2960
    %v2982 = vpack.c.b16 %v2963, %v2962
    %v2983 = vpack.c.b16 %v2965, %v2964
    %v2984 = vpack.c.b16 %v2967, %v2966
    %v2985 = vpack.c.b16 %v2969, %v2968
    %3002 = vmatprep.subr.bf16.mxu0 0
    %3003 = vmatpush1.bf16.msra.mxu0 %v2970
    %3004 = vmatprep.subr.bf16.mxu0 0
    %3005 = vmatpush1.bf16.msra.mxu0 %v2971
    %3006 = vmatprep.subr.bf16.mxu0 0
    %3007 = vmatpush1.bf16.msra.mxu0 %v2972
    %3008 = vmatprep.subr.bf16.mxu0 0
    %3009 = vmatpush1.bf16.msra.mxu0 %v2973
    %3010 = vmatprep.subr.bf16.mxu0 0
    %3011 = vmatpush1.bf16.msra.mxu0 %v2974
    %3012 = vmatprep.subr.bf16.mxu0 0
    %3013 = vmatpush1.bf16.msra.mxu0 %v2975
    %3014 = vmatprep.subr.bf16.mxu0 0
    %3015 = vmatpush1.bf16.msra.mxu0 %v2976
    %3016 = vmatprep.subr.bf16.mxu0 0
    %3017 = vmatpush1.bf16.msra.mxu0 %v2977
    %3018 = vmatprep.subr.bf16.mxu0 0
    %3019 = vmatpush1.bf16.msra.mxu0 %v2978
    %3020 = vmatprep.subr.bf16.mxu0 0
    %3021 = vmatpush1.bf16.msra.mxu0 %v2979
    %3022 = vmatprep.subr.bf16.mxu0 0
    %3023 = vmatpush1.bf16.msra.mxu0 %v2980
    %3024 = vmatprep.subr.bf16.mxu0 0
    %3025 = vmatpush1.bf16.msra.mxu0 %v2981
    %3026 = vmatprep.subr.bf16.mxu0 0
    %3027 = vmatpush1.bf16.msra.mxu0 %v2982
    %3028 = vmatprep.subr.bf16.mxu0 0
    %3029 = vmatpush1.bf16.msra.mxu0 %v2983
    %3030 = vmatprep.subr.bf16.mxu0 0
    %3031 = vmatpush1.bf16.msra.mxu0 %v2984
    %3032 = vmatprep.subr.bf16.mxu0 0
    %3033 = vmatpush1.bf16.msra.mxu0 %v2985
    %3034 = vmatprep.mubr.bf16.mxu0 %v2898
    %3035 = vmatmul.mubr.bf16.gmra.mrb[0].mxu0 %v2897
    %v3036 = vpop.f32.mrb[0].mxu0
    %v3037 = vadd.f32 %v2904, %v3036
    %v3038 = vpop.f32.mrb[0].mxu0
    %v3039 = vpop.f32.mrb[0].mxu0
    %v3040 = vpop.f32.mrb[0].mxu0
    %3041 = vdwg.mxu0
    %vm3042 = vcmask 74752
    %3043 = vst.msk [vmem:[#allocation41] sm:$0x3] %vm3042, %v3037
    // Predicated region
    $region242: #{forward.1} parent=1 // pred_check
      _
    $region243: #{forward.1} parent=1 // pred_check_branch
      %3045 = sbr.rel (0) target = $region245
    $region244: #{forward.1} parent=1 // pred_region
      %s3047 = ssub.s32 32, 32
      %3048 = vsyncadd [#allocation4], %s3047
      %s3050 = sshll.u32 [#allocation41], 4
      %s3051 = int_to_ptr.vmem [resolvable:$true] %s3050
      %3053 = dma.vmem_to_hbm [thread:$0]  %s3051, 32, %s71, [#allocation4]
    $region245: #{forward.1} parent=1 // pred_fallthru
      _
    // Predicated region
    $region246: #{forward.1} parent=1 // pred_check
      _
    $region247: #{forward.1} parent=1 // pred_check_branch
      %3055 = sbr.rel (0) target = $region249
    $region248: #{forward.1} parent=1 // pred_region
      %3056 = dma.done [#allocation4], 32
    $region249: #{forward.1} parent=1 // pred_fallthru
      _
    %3057 = vsyncpa [#allocation3], 1
    %3058 = vsyncpa [#allocation6], 1
    %3059 = vsyncpa [#allocation9], 1
    %3060 = vsyncpa [#allocation12], 1
    %3061 = vsyncpa [#allocation15], 1
    %3062 = vsyncpa [#allocation18], 1
    %3063 = vsyncpa [#allocation21], 1
    %3064 = vsyncpa [#allocation24], 1
    %3065 = vsyncpa [#allocation27], 1
    %3066 = vsyncpa [#allocation30], 1
    %3067 = vsyncpa [#allocation33], 1
    %3068 = vsyncpa [#allocation36], 1
    %3069 = vsyncpa [#allocation39], 1
    %3070 = vsyncpa [#allocation4], 1

</llo_original>
